<compile_context>
chip_gen: v6e
topology: v6e:2x2x1
jax: 0.10.0
libtpu: 0.0.40
codegen_flags: <defaults>
</compile_context>

<pallas_src>
import math

import jax
import jax.numpy as jnp
from jax.experimental import pallas as pl
from jax.experimental.pallas import tpu as pltpu

# ------------------- small synthetic config (structure preserved) -------------------
BATCH = 2
SEQ = 8
TOKENS = BATCH * SEQ          # batch folded into the matmul M dimension
HIDDEN = 128                  # scaled down from 768, kept a multiple of 128 (lane-dense)
N_HEADS = 4
HEAD_DIM = HIDDEN // N_HEADS
FFN = 256                     # scaled down from 3072
N_LAYERS = 2                  # scaled down from 6
VOCAB = 128
MAX_POS = 16
LN_EPS = 1e-12
NEG_BIG = -1e30

# classification head dims (scaled down from 2048 / 4096 / 2048 / 512 / 2)
H1, H2, H3, H4, OUT = 128, 256, 128, 128, 2

# TODO(synk): at real DistilBERT sizes, store weights in bf16 and N-tile the FFN
# weights over a grid axis (v7x has only 64 MiB VMEM); at these toy sizes f32
# full-resident is fine.


# --------------------------------- in-kernel helpers ---------------------------------
def _layernorm(x, gamma, beta):
    mu = jnp.mean(x, axis=-1, keepdims=True)
    var = jnp.mean(jnp.square(x - mu), axis=-1, keepdims=True)
    return (x - mu) * jax.lax.rsqrt(var + LN_EPS) * gamma + beta


def _gelu_tanh(x):
    # tanh-approx GELU: the transcendental lands on the EUP slot instead of a long
    # VPU polynomial/select chain (kept in f32 — v5e has no bf16 EUP path).
    c = math.sqrt(2.0 / math.pi)
    return 0.5 * x * (1.0 + jnp.tanh(c * (x + 0.044715 * x * x * x)))


# -------------------------------------- kernel ---------------------------------------
def model_kernel(emb_ref, bias_ref, pool_ref, eg_ref, eb_ref,
                 wqkv_ref, bqkv_ref, wo_ref, bo_ref, ln1g_ref, ln1b_ref,
                 w1_ref, b1_ref, w2_ref, b2_ref, ln2g_ref, ln2b_ref,
                 hw1_ref, hb1_ref, hw2_ref, hb2_ref, hw4_ref, hb4_ref,
                 hw5_ref, hb5_ref, hw6_ref, hb6_ref, o_ref,
                 ctx_ref):
    # Entire forward pass fused: the (TOKENS, HIDDEN) activation never leaves VMEM.
    x = _layernorm(emb_ref[...], eg_ref[...], eb_ref[...])           # (T, H)
    bias = bias_ref[...]                                             # (T, T) additive mask
    scale = 1.0 / math.sqrt(HEAD_DIM)

    for l in range(N_LAYERS):                                        # static unroll
        # fused Q/K/V projection: one (T,H)x(H,3H) MXU op; slices at 128-lane bounds
        qkv = jnp.dot(x, wqkv_ref[l], preferred_element_type=jnp.float32) + bqkv_ref[l]
        q = qkv[:, :HIDDEN] * scale                                  # DistilBERT scales q
        k = qkv[:, HIDDEN:2 * HIDDEN]
        v = qkv[:, 2 * HIDDEN:]

        # per-head attention; contexts assembled into VMEM scratch so the output
        # projection becomes ONE (T,H)x(H,H) matmul per layer (no per-head Wo dots)
        for h in range(N_HEADS):
            sl = slice(h * HEAD_DIM, (h + 1) * HEAD_DIM)
            s = jnp.dot(q[:, sl], k[:, sl].T,
                        preferred_element_type=jnp.float32) + bias    # (T, T)
            m = jnp.max(s, axis=-1, keepdims=True)
            e = jnp.exp(s - m)
            p = e * pl.reciprocal(jnp.sum(e, axis=-1, keepdims=True), approx=True)
            ctx_ref[:, sl] = jnp.dot(p, v[:, sl],
                                     preferred_element_type=jnp.float32)   # (T, D)
        attn = jnp.dot(ctx_ref[...], wo_ref[l],
                       preferred_element_type=jnp.float32) + bo_ref[l]      # (T, H)

        sa = _layernorm(attn + x, ln1g_ref[l], ln1b_ref[l])

        hdn = jnp.dot(sa, w1_ref[l], preferred_element_type=jnp.float32) + b1_ref[l]
        hdn = _gelu_tanh(hdn)
        ffn = jnp.dot(hdn, w2_ref[l], preferred_element_type=jnp.float32) + b2_ref[l]
        x = _layernorm(ffn + sa, ln2g_ref[l], ln2b_ref[l])

    # last_hidden_state.mean(dim=1) as a tiny (B, T) pooling matmul (stays on MXU,
    # no sublane reshuffle of the activation slab)
    pooled = jnp.dot(pool_ref[...], x, preferred_element_type=jnp.float32)   # (B, H)

    # ClassificationHead (dropout1/dropout2 are identity at inference)
    y = jnp.dot(pooled, hw1_ref[...], preferred_element_type=jnp.float32) + hb1_ref[...]
    y = jnp.dot(y, hw2_ref[...], preferred_element_type=jnp.float32) + hb2_ref[...]
    y = jnp.maximum(y, 0.0)                                                   # dense3 = ReLU
    y = jnp.dot(y, hw4_ref[...], preferred_element_type=jnp.float32) + hb4_ref[...]
    y = jnp.dot(y, hw5_ref[...], preferred_element_type=jnp.float32) + hb5_ref[...]
    y = jnp.dot(y, hw6_ref[...], preferred_element_type=jnp.float32) + hb6_ref[...]
    o_ref[...] = y


# ------------------------------------- wrapper ---------------------------------------
def _full_spec(shape):
    nd = len(shape)
    return pl.BlockSpec(tuple(shape), lambda *_: (0,) * nd)


def custom_distilbert_forward(params, input_ids, attention_mask):
    B, S = input_ids.shape
    # Embedding-table gathers are glue (plain JAX); everything after is one Pallas call.
    pos = jnp.arange(S)
    emb = (jnp.take(params["word_emb"], input_ids, axis=0)
           + jnp.take(params["pos_emb"], pos, axis=0)[None, :, :])            # (B, S, H)
    emb2d = emb.reshape(B * S, HIDDEN).astype(jnp.float32)                    # (T, H)

    # Additive attention bias: masks padded keys AND cross-batch pairs
    # (since the batch dim is folded into the matmul M dimension in-kernel).
    batch_id = jnp.repeat(jnp.arange(B), S)                                   # (T,)
    keep = attention_mask.reshape(B * S) > 0
    valid = (batch_id[:, None] == batch_id[None, :]) & keep[None, :]
    bias = jnp.where(valid, 0.0, NEG_BIG).astype(jnp.float32)                 # (T, T)

    # Unmasked mean over sequence as a pooling matmul.
    pool_mat = jnp.repeat(jnp.eye(B, dtype=jnp.float32), S, axis=1) / float(S)  # (B, T)

    head = params["head"]
    args = [emb2d, bias, pool_mat,
            params["emb_ln_g"], params["emb_ln_b"],
            params["wqkv"], params["bqkv"], params["wo"], params["bo"],
            params["ln1_g"], params["ln1_b"],
            params["w1"], params["b1"], params["w2"], params["b2"],
            params["ln2_g"], params["ln2_b"],
            head["w1"], head["b1"], head["w2"], head["b2"],
            head["w4"], head["b4"], head["w5"], head["b5"],
            head["w6"], head["b6"]]

    return pl.pallas_call(
        model_kernel,
        out_shape=jax.ShapeDtypeStruct((B, OUT), jnp.float32),
        grid=(1,),                                    # single fused invocation
        in_specs=[_full_spec(tuple(a.shape)) for a in args],
        out_specs=_full_spec((B, OUT)),
        scratch_shapes=[pltpu.VMEM((TOKENS, HIDDEN), jnp.float32)],  # per-head ctx slab
        compiler_params=pltpu.CompilerParams(dimension_semantics=("arbitrary",)),
    )(*args)


# ---------------------------------- parameter init -----------------------------------
def init_params(key):
    keys = iter(jax.random.split(key, 64))

    def nrm(shape, scale=0.02):
        return scale * jax.random.normal(next(keys), shape, dtype=jnp.float32)

    params = {
        "word_emb": nrm((VOCAB, HIDDEN)),
        "pos_emb": nrm((MAX_POS, HIDDEN)),
        "emb_ln_g": jnp.ones((1, HIDDEN), jnp.float32),
        "emb_ln_b": jnp.zeros((1, HIDDEN), jnp.float32),
        # per-layer weights stacked along a leading layer axis; wq|wk|wv fused
        "wqkv": nrm((N_LAYERS, HIDDEN, 3 * HIDDEN)),
        "bqkv": nrm((N_LAYERS, 1, 3 * HIDDEN)),
        "wo": nrm((N_LAYERS, HIDDEN, HIDDEN)),
        "bo": nrm((N_LAYERS, 1, HIDDEN)),
        "ln1_g": jnp.ones((N_LAYERS, 1, HIDDEN), jnp.float32),
        "ln1_b": jnp.zeros((N_LAYERS, 1, HIDDEN), jnp.float32),
        "w1": nrm((N_LAYERS, HIDDEN, FFN)),
        "b1": nrm((N_LAYERS, 1, FFN)),
        "w2": nrm((N_LAYERS, FFN, HIDDEN)),
        "b2": nrm((N_LAYERS, 1, HIDDEN)),
        "ln2_g": jnp.ones((N_LAYERS, 1, HIDDEN), jnp.float32),
        "ln2_b": jnp.zeros((N_LAYERS, 1, HIDDEN), jnp.float32),
        "head": {
            "w1": nrm((HIDDEN, H1)), "b1": nrm((1, H1)),
            "w2": nrm((H1, H2)),     "b2": nrm((1, H2)),
            "w4": nrm((H2, H3)),     "b4": nrm((1, H3)),
            "w5": nrm((H3, H4)),     "b5": nrm((1, H4)),
            "w6": nrm((H4, OUT)),    "b6": nrm((1, OUT)),
        },
    }
    return params


# --------------------------------------- main ----------------------------------------
if __name__ == "__main__":
    key = jax.random.PRNGKey(0)
    pkey, ikey = jax.random.split(key)
    params = init_params(pkey)

    input_ids = jax.random.randint(ikey, (BATCH, SEQ), 0, VOCAB, dtype=jnp.int32)
    attention_mask = jnp.ones((BATCH, SEQ), dtype=jnp.int32)
    attention_mask = attention_mask.at[1, -2:].set(0)   # exercise padding mask

    logits = custom_distilbert_forward(params, input_ids, attention_mask)
    logits = jax.block_until_ready(logits)
    assert logits.shape == (BATCH, OUT) and logits.dtype == jnp.float32
    print("KERNEL_OK")
</pallas_src>

<mosaic_0001>
module attributes {stable_mosaic.version = 11 : i64} {
  func.func @model_kernel(%arg0: i32, %arg1: memref<16x128xf32, #tpu.memory_space<vmem>>, %arg2: memref<16x16xf32, #tpu.memory_space<vmem>>, %arg3: memref<2x16xf32, #tpu.memory_space<vmem>>, %arg4: memref<1x128xf32, #tpu.memory_space<vmem>>, %arg5: memref<1x128xf32, #tpu.memory_space<vmem>>, %arg6: memref<2x128x384xf32, #tpu.memory_space<vmem>>, %arg7: memref<2x1x384xf32, #tpu.memory_space<vmem>>, %arg8: memref<2x128x128xf32, #tpu.memory_space<vmem>>, %arg9: memref<2x1x128xf32, #tpu.memory_space<vmem>>, %arg10: memref<2x1x128xf32, #tpu.memory_space<vmem>>, %arg11: memref<2x1x128xf32, #tpu.memory_space<vmem>>, %arg12: memref<2x128x256xf32, #tpu.memory_space<vmem>>, %arg13: memref<2x1x256xf32, #tpu.memory_space<vmem>>, %arg14: memref<2x256x128xf32, #tpu.memory_space<vmem>>, %arg15: memref<2x1x128xf32, #tpu.memory_space<vmem>>, %arg16: memref<2x1x128xf32, #tpu.memory_space<vmem>>, %arg17: memref<2x1x128xf32, #tpu.memory_space<vmem>>, %arg18: memref<128x128xf32, #tpu.memory_space<vmem>>, %arg19: memref<1x128xf32, #tpu.memory_space<vmem>>, %arg20: memref<128x256xf32, #tpu.memory_space<vmem>>, %arg21: memref<1x256xf32, #tpu.memory_space<vmem>>, %arg22: memref<256x128xf32, #tpu.memory_space<vmem>>, %arg23: memref<1x128xf32, #tpu.memory_space<vmem>>, %arg24: memref<128x128xf32, #tpu.memory_space<vmem>>, %arg25: memref<1x128xf32, #tpu.memory_space<vmem>>, %arg26: memref<128x2xf32, #tpu.memory_space<vmem>>, %arg27: memref<1x2xf32, #tpu.memory_space<vmem>>, %arg28: memref<2x2xf32, #tpu.memory_space<vmem>>, %arg29: memref<16x128xf32, #tpu.memory_space<vmem>>) attributes {dimension_semantics = [#tpu.dimension_semantics<arbitrary>], iteration_bounds = array<i64: 1>, scalar_prefetch = 0 : i64, scratch_operands = 1 : i64, tpu.core_type = #tpu.core_type<tc>, window_params = [{pipeline_mode = #tpu.pipeline_mode<synchronous>, transform_indices = @transform_0, window_bounds = array<i64: 16, 128>}, {pipeline_mode = #tpu.pipeline_mode<synchronous>, transform_indices = @transform_1, window_bounds = array<i64: 16, 16>}, {pipeline_mode = #tpu.pipeline_mode<synchronous>, transform_indices = @transform_2, window_bounds = array<i64: 2, 16>}, {pipeline_mode = #tpu.pipeline_mode<synchronous>, transform_indices = @transform_3, window_bounds = array<i64: 1, 128>}, {pipeline_mode = #tpu.pipeline_mode<synchronous>, transform_indices = @transform_4, window_bounds = array<i64: 1, 128>}, {pipeline_mode = #tpu.pipeline_mode<synchronous>, transform_indices = @transform_5, window_bounds = array<i64: 2, 128, 384>}, {pipeline_mode = #tpu.pipeline_mode<synchronous>, transform_indices = @transform_6, window_bounds = array<i64: 2, 1, 384>}, {pipeline_mode = #tpu.pipeline_mode<synchronous>, transform_indices = @transform_7, window_bounds = array<i64: 2, 128, 128>}, {pipeline_mode = #tpu.pipeline_mode<synchronous>, transform_indices = @transform_8, window_bounds = array<i64: 2, 1, 128>}, {pipeline_mode = #tpu.pipeline_mode<synchronous>, transform_indices = @transform_9, window_bounds = array<i64: 2, 1, 128>}, {pipeline_mode = #tpu.pipeline_mode<synchronous>, transform_indices = @transform_10, window_bounds = array<i64: 2, 1, 128>}, {pipeline_mode = #tpu.pipeline_mode<synchronous>, transform_indices = @transform_11, window_bounds = array<i64: 2, 128, 256>}, {pipeline_mode = #tpu.pipeline_mode<synchronous>, transform_indices = @transform_12, window_bounds = array<i64: 2, 1, 256>}, {pipeline_mode = #tpu.pipeline_mode<synchronous>, transform_indices = @transform_13, window_bounds = array<i64: 2, 256, 128>}, {pipeline_mode = #tpu.pipeline_mode<synchronous>, transform_indices = @transform_14, window_bounds = array<i64: 2, 1, 128>}, {pipeline_mode = #tpu.pipeline_mode<synchronous>, transform_indices = @transform_15, window_bounds = array<i64: 2, 1, 128>}, {pipeline_mode = #tpu.pipeline_mode<synchronous>, transform_indices = @transform_16, window_bounds = array<i64: 2, 1, 128>}, {pipeline_mode = #tpu.pipeline_mode<synchronous>, transform_indices = @transform_17, window_bounds = array<i64: 128, 128>}, {pipeline_mode = #tpu.pipeline_mode<synchronous>, transform_indices = @transform_18, window_bounds = array<i64: 1, 128>}, {pipeline_mode = #tpu.pipeline_mode<synchronous>, transform_indices = @transform_19, window_bounds = array<i64: 128, 256>}, {pipeline_mode = #tpu.pipeline_mode<synchronous>, transform_indices = @transform_20, window_bounds = array<i64: 1, 256>}, {pipeline_mode = #tpu.pipeline_mode<synchronous>, transform_indices = @transform_21, window_bounds = array<i64: 256, 128>}, {pipeline_mode = #tpu.pipeline_mode<synchronous>, transform_indices = @transform_22, window_bounds = array<i64: 1, 128>}, {pipeline_mode = #tpu.pipeline_mode<synchronous>, transform_indices = @transform_23, window_bounds = array<i64: 128, 128>}, {pipeline_mode = #tpu.pipeline_mode<synchronous>, transform_indices = @transform_24, window_bounds = array<i64: 1, 128>}, {pipeline_mode = #tpu.pipeline_mode<synchronous>, transform_indices = @transform_25, window_bounds = array<i64: 128, 2>}, {pipeline_mode = #tpu.pipeline_mode<synchronous>, transform_indices = @transform_26, window_bounds = array<i64: 1, 2>}, {pipeline_mode = #tpu.pipeline_mode<synchronous>, transform_indices = @transform_27, window_bounds = array<i64: 2, 2>}]} {
    %c0 = arith.constant 0 : index
    %c0_0 = arith.constant 0 : index
    %0 = vector.load %arg1[%c0, %c0_0] : memref<16x128xf32, #tpu.memory_space<vmem>>, vector<16x128xf32>
    %c0_1 = arith.constant 0 : index
    %c0_2 = arith.constant 0 : index
    %1 = vector.load %arg4[%c0_1, %c0_2] : memref<1x128xf32, #tpu.memory_space<vmem>>, vector<1x128xf32>
    %c0_3 = arith.constant 0 : index
    %c0_4 = arith.constant 0 : index
    %2 = vector.load %arg5[%c0_3, %c0_4] : memref<1x128xf32, #tpu.memory_space<vmem>>, vector<1x128xf32>
    %cst = arith.constant dense<0.000000e+00> : vector<16xf32>
    %3 = vector.multi_reduction <add>, %0, %cst [1] : vector<16x128xf32> to vector<16xf32>
    %4 = vector.shape_cast %3 : vector<16xf32> to vector<16x1xf32>
    %cst_5 = arith.constant 1.280000e+02 : f32
    %5 = vector.broadcast %cst_5 : f32 to vector<16x1xf32>
    %6 = arith.divf %4, %5 : vector<16x1xf32>
    %7 = vector.broadcast %6 : vector<16x1xf32> to vector<16x128xf32>
    %8 = arith.subf %0, %7 : vector<16x128xf32>
    %9 = arith.mulf %8, %8 : vector<16x128xf32>
    %cst_6 = arith.constant dense<0.000000e+00> : vector<16xf32>
    %10 = vector.multi_reduction <add>, %9, %cst_6 [1] : vector<16x128xf32> to vector<16xf32>
    %11 = vector.shape_cast %10 : vector<16xf32> to vector<16x1xf32>
    %cst_7 = arith.constant 1.280000e+02 : f32
    %12 = vector.broadcast %cst_7 : f32 to vector<16x1xf32>
    %13 = arith.divf %11, %12 : vector<16x1xf32>
    %14 = vector.broadcast %6 : vector<16x1xf32> to vector<16x128xf32>
    %15 = arith.subf %0, %14 : vector<16x128xf32>
    %cst_8 = arith.constant 9.99999996E-13 : f32
    %16 = vector.broadcast %cst_8 : f32 to vector<16x1xf32>
    %17 = arith.addf %13, %16 : vector<16x1xf32>
    %18 = math.rsqrt %17 : vector<16x1xf32>
    %19 = vector.broadcast %18 : vector<16x1xf32> to vector<16x128xf32>
    %20 = arith.mulf %15, %19 : vector<16x128xf32>
    %21 = vector.broadcast %1 : vector<1x128xf32> to vector<16x128xf32>
    %22 = arith.mulf %20, %21 : vector<16x128xf32>
    %23 = vector.broadcast %2 : vector<1x128xf32> to vector<16x128xf32>
    %24 = arith.addf %22, %23 : vector<16x128xf32>
    %c0_9 = arith.constant 0 : index
    %c0_10 = arith.constant 0 : index
    %25 = vector.load %arg2[%c0_9, %c0_10] : memref<16x16xf32, #tpu.memory_space<vmem>>, vector<16x16xf32>
    %c0_11 = arith.constant 0 : index
    %c0_12 = arith.constant 0 : index
    %c0_13 = arith.constant 0 : index
    %26 = vector.load %arg6[%c0_11, %c0_12, %c0_13] : memref<2x128x384xf32, #tpu.memory_space<vmem>>, vector<1x128x384xf32>
    %27 = vector.shape_cast %26 : vector<1x128x384xf32> to vector<128x384xf32>
    %cst_14 = arith.constant dense<0.000000e+00> : vector<16x384xf32>
    %28 = tpu.matmul %24, %27, %cst_14 {dimension_numbers = #tpu.dot_dimension_numbers<[1], [0], [0], [1], [0, 0, 1, 1], [], []>} : vector<16x128xf32>, vector<128x384xf32>, vector<16x384xf32> -> vector<16x384xf32>
    %c0_15 = arith.constant 0 : index
    %c0_16 = arith.constant 0 : index
    %c0_17 = arith.constant 0 : index
    %29 = vector.load %arg7[%c0_15, %c0_16, %c0_17] : memref<2x1x384xf32, #tpu.memory_space<vmem>>, vector<1x1x384xf32>
    %30 = vector.shape_cast %29 : vector<1x1x384xf32> to vector<1x384xf32>
    %31 = vector.broadcast %30 : vector<1x384xf32> to vector<16x384xf32>
    %32 = arith.addf %28, %31 : vector<16x384xf32>
    %33 = vector.extract_strided_slice %32 {offsets = [0, 0], sizes = [16, 128], strides = [1, 1]} : vector<16x384xf32> to vector<16x128xf32>
    %cst_18 = arith.constant 0.176776692 : f32
    %34 = vector.broadcast %cst_18 : f32 to vector<16x128xf32>
    %35 = arith.mulf %33, %34 : vector<16x128xf32>
    %36 = vector.extract_strided_slice %32 {offsets = [0, 128], sizes = [16, 128], strides = [1, 1]} : vector<16x384xf32> to vector<16x128xf32>
    %37 = vector.extract_strided_slice %32 {offsets = [0, 256], sizes = [16, 128], strides = [1, 1]} : vector<16x384xf32> to vector<16x128xf32>
    %38 = vector.extract_strided_slice %35 {offsets = [0, 0], sizes = [16, 32], strides = [1, 1]} : vector<16x128xf32> to vector<16x32xf32>
    %39 = vector.extract_strided_slice %36 {offsets = [0, 0], sizes = [16, 32], strides = [1, 1]} : vector<16x128xf32> to vector<16x32xf32>
    %40 = tpu.transpose %39, [1, 0] : vector<16x32xf32> -> vector<32x16xf32>
    %cst_19 = arith.constant dense<0.000000e+00> : vector<16x16xf32>
    %41 = tpu.matmul %38, %40, %cst_19 {dimension_numbers = #tpu.dot_dimension_numbers<[1], [0], [0], [1], [0, 0, 1, 1], [], []>} : vector<16x32xf32>, vector<32x16xf32>, vector<16x16xf32> -> vector<16x16xf32>
    %42 = arith.addf %41, %25 : vector<16x16xf32>
    %cst_20 = arith.constant dense<0xFF800000> : vector<16xf32>
    %43 = vector.multi_reduction <maximumf>, %42, %cst_20 [1] : vector<16x16xf32> to vector<16xf32>
    %44 = vector.shape_cast %43 : vector<16xf32> to vector<16x1xf32>
    %45 = vector.broadcast %44 : vector<16x1xf32> to vector<16x16xf32>
    %46 = arith.subf %42, %45 : vector<16x16xf32>
    %47 = math.exp %46 : vector<16x16xf32>
    %cst_21 = arith.constant dense<0.000000e+00> : vector<16xf32>
    %48 = vector.multi_reduction <add>, %47, %cst_21 [1] : vector<16x16xf32> to vector<16xf32>
    %49 = vector.shape_cast %48 : vector<16xf32> to vector<16x1xf32>
    %50 = tpu.reciprocal %49 {approx = true} : vector<16x1xf32> -> vector<16x1xf32>
    %51 = vector.broadcast %50 : vector<16x1xf32> to vector<16x16xf32>
    %52 = arith.mulf %47, %51 : vector<16x16xf32>
    %53 = vector.extract_strided_slice %37 {offsets = [0, 0], sizes = [16, 32], strides = [1, 1]} : vector<16x128xf32> to vector<16x32xf32>
    %cst_22 = arith.constant dense<0.000000e+00> : vector<16x32xf32>
    %54 = tpu.matmul %52, %53, %cst_22 {dimension_numbers = #tpu.dot_dimension_numbers<[1], [0], [0], [1], [0, 0, 1, 1], [], []>} : vector<16x16xf32>, vector<16x32xf32>, vector<16x32xf32> -> vector<16x32xf32>
    %c0_23 = arith.constant 0 : index
    %c0_24 = arith.constant 0 : index
    %55 = vector.load %arg29[%c0_23, %c0_24] : memref<16x128xf32, #tpu.memory_space<vmem>>, vector<16x32xf32>
    tpu.vector_store %arg29[%c0_23, %c0_24], %54 {strides = array<i32>} : memref<16x128xf32, #tpu.memory_space<vmem>>, vector<16x32xf32>,
    %56 = vector.extract_strided_slice %35 {offsets = [0, 32], sizes = [16, 32], strides = [1, 1]} : vector<16x128xf32> to vector<16x32xf32>
    %57 = vector.extract_strided_slice %36 {offsets = [0, 32], sizes = [16, 32], strides = [1, 1]} : vector<16x128xf32> to vector<16x32xf32>
    %58 = tpu.transpose %57, [1, 0] : vector<16x32xf32> -> vector<32x16xf32>
    %cst_25 = arith.constant dense<0.000000e+00> : vector<16x16xf32>
    %59 = tpu.matmul %56, %58, %cst_25 {dimension_numbers = #tpu.dot_dimension_numbers<[1], [0], [0], [1], [0, 0, 1, 1], [], []>} : vector<16x32xf32>, vector<32x16xf32>, vector<16x16xf32> -> vector<16x16xf32>
    %60 = arith.addf %59, %25 : vector<16x16xf32>
    %cst_26 = arith.constant dense<0xFF800000> : vector<16xf32>
    %61 = vector.multi_reduction <maximumf>, %60, %cst_26 [1] : vector<16x16xf32> to vector<16xf32>
    %62 = vector.shape_cast %61 : vector<16xf32> to vector<16x1xf32>
    %63 = vector.broadcast %62 : vector<16x1xf32> to vector<16x16xf32>
    %64 = arith.subf %60, %63 : vector<16x16xf32>
    %65 = math.exp %64 : vector<16x16xf32>
    %cst_27 = arith.constant dense<0.000000e+00> : vector<16xf32>
    %66 = vector.multi_reduction <add>, %65, %cst_27 [1] : vector<16x16xf32> to vector<16xf32>
    %67 = vector.shape_cast %66 : vector<16xf32> to vector<16x1xf32>
    %68 = tpu.reciprocal %67 {approx = true} : vector<16x1xf32> -> vector<16x1xf32>
    %69 = vector.broadcast %68 : vector<16x1xf32> to vector<16x16xf32>
    %70 = arith.mulf %65, %69 : vector<16x16xf32>
    %71 = vector.extract_strided_slice %37 {offsets = [0, 32], sizes = [16, 32], strides = [1, 1]} : vector<16x128xf32> to vector<16x32xf32>
    %cst_28 = arith.constant dense<0.000000e+00> : vector<16x32xf32>
    %72 = tpu.matmul %70, %71, %cst_28 {dimension_numbers = #tpu.dot_dimension_numbers<[1], [0], [0], [1], [0, 0, 1, 1], [], []>} : vector<16x16xf32>, vector<16x32xf32>, vector<16x32xf32> -> vector<16x32xf32>
    %c0_29 = arith.constant 0 : index
    %c32 = arith.constant 32 : index
    %73 = vector.load %arg29[%c0_29, %c32] : memref<16x128xf32, #tpu.memory_space<vmem>>, vector<16x32xf32>
    tpu.vector_store %arg29[%c0_29, %c32], %72 {strides = array<i32>} : memref<16x128xf32, #tpu.memory_space<vmem>>, vector<16x32xf32>,
    %74 = vector.extract_strided_slice %35 {offsets = [0, 64], sizes = [16, 32], strides = [1, 1]} : vector<16x128xf32> to vector<16x32xf32>
    %75 = vector.extract_strided_slice %36 {offsets = [0, 64], sizes = [16, 32], strides = [1, 1]} : vector<16x128xf32> to vector<16x32xf32>
    %76 = tpu.transpose %75, [1, 0] : vector<16x32xf32> -> vector<32x16xf32>
    %cst_30 = arith.constant dense<0.000000e+00> : vector<16x16xf32>
    %77 = tpu.matmul %74, %76, %cst_30 {dimension_numbers = #tpu.dot_dimension_numbers<[1], [0], [0], [1], [0, 0, 1, 1], [], []>} : vector<16x32xf32>, vector<32x16xf32>, vector<16x16xf32> -> vector<16x16xf32>
    %78 = arith.addf %77, %25 : vector<16x16xf32>
    %cst_31 = arith.constant dense<0xFF800000> : vector<16xf32>
    %79 = vector.multi_reduction <maximumf>, %78, %cst_31 [1] : vector<16x16xf32> to vector<16xf32>
    %80 = vector.shape_cast %79 : vector<16xf32> to vector<16x1xf32>
    %81 = vector.broadcast %80 : vector<16x1xf32> to vector<16x16xf32>
    %82 = arith.subf %78, %81 : vector<16x16xf32>
    %83 = math.exp %82 : vector<16x16xf32>
    %cst_32 = arith.constant dense<0.000000e+00> : vector<16xf32>
    %84 = vector.multi_reduction <add>, %83, %cst_32 [1] : vector<16x16xf32> to vector<16xf32>
    %85 = vector.shape_cast %84 : vector<16xf32> to vector<16x1xf32>
    %86 = tpu.reciprocal %85 {approx = true} : vector<16x1xf32> -> vector<16x1xf32>
    %87 = vector.broadcast %86 : vector<16x1xf32> to vector<16x16xf32>
    %88 = arith.mulf %83, %87 : vector<16x16xf32>
    %89 = vector.extract_strided_slice %37 {offsets = [0, 64], sizes = [16, 32], strides = [1, 1]} : vector<16x128xf32> to vector<16x32xf32>
    %cst_33 = arith.constant dense<0.000000e+00> : vector<16x32xf32>
    %90 = tpu.matmul %88, %89, %cst_33 {dimension_numbers = #tpu.dot_dimension_numbers<[1], [0], [0], [1], [0, 0, 1, 1], [], []>} : vector<16x16xf32>, vector<16x32xf32>, vector<16x32xf32> -> vector<16x32xf32>
    %c0_34 = arith.constant 0 : index
    %c64 = arith.constant 64 : index
    %91 = vector.load %arg29[%c0_34, %c64] : memref<16x128xf32, #tpu.memory_space<vmem>>, vector<16x32xf32>
    tpu.vector_store %arg29[%c0_34, %c64], %90 {strides = array<i32>} : memref<16x128xf32, #tpu.memory_space<vmem>>, vector<16x32xf32>,
    %92 = vector.extract_strided_slice %35 {offsets = [0, 96], sizes = [16, 32], strides = [1, 1]} : vector<16x128xf32> to vector<16x32xf32>
    %93 = vector.extract_strided_slice %36 {offsets = [0, 96], sizes = [16, 32], strides = [1, 1]} : vector<16x128xf32> to vector<16x32xf32>
    %94 = tpu.transpose %93, [1, 0] : vector<16x32xf32> -> vector<32x16xf32>
    %cst_35 = arith.constant dense<0.000000e+00> : vector<16x16xf32>
    %95 = tpu.matmul %92, %94, %cst_35 {dimension_numbers = #tpu.dot_dimension_numbers<[1], [0], [0], [1], [0, 0, 1, 1], [], []>} : vector<16x32xf32>, vector<32x16xf32>, vector<16x16xf32> -> vector<16x16xf32>
    %96 = arith.addf %95, %25 : vector<16x16xf32>
    %cst_36 = arith.constant dense<0xFF800000> : vector<16xf32>
    %97 = vector.multi_reduction <maximumf>, %96, %cst_36 [1] : vector<16x16xf32> to vector<16xf32>
    %98 = vector.shape_cast %97 : vector<16xf32> to vector<16x1xf32>
    %99 = vector.broadcast %98 : vector<16x1xf32> to vector<16x16xf32>
    %100 = arith.subf %96, %99 : vector<16x16xf32>
    %101 = math.exp %100 : vector<16x16xf32>
    %cst_37 = arith.constant dense<0.000000e+00> : vector<16xf32>
    %102 = vector.multi_reduction <add>, %101, %cst_37 [1] : vector<16x16xf32> to vector<16xf32>
    %103 = vector.shape_cast %102 : vector<16xf32> to vector<16x1xf32>
    %104 = tpu.reciprocal %103 {approx = true} : vector<16x1xf32> -> vector<16x1xf32>
    %105 = vector.broadcast %104 : vector<16x1xf32> to vector<16x16xf32>
    %106 = arith.mulf %101, %105 : vector<16x16xf32>
    %107 = vector.extract_strided_slice %37 {offsets = [0, 96], sizes = [16, 32], strides = [1, 1]} : vector<16x128xf32> to vector<16x32xf32>
    %cst_38 = arith.constant dense<0.000000e+00> : vector<16x32xf32>
    %108 = tpu.matmul %106, %107, %cst_38 {dimension_numbers = #tpu.dot_dimension_numbers<[1], [0], [0], [1], [0, 0, 1, 1], [], []>} : vector<16x16xf32>, vector<16x32xf32>, vector<16x32xf32> -> vector<16x32xf32>
    %c0_39 = arith.constant 0 : index
    %c96 = arith.constant 96 : index
    %109 = vector.load %arg29[%c0_39, %c96] : memref<16x128xf32, #tpu.memory_space<vmem>>, vector<16x32xf32>
    tpu.vector_store %arg29[%c0_39, %c96], %108 {strides = array<i32>} : memref<16x128xf32, #tpu.memory_space<vmem>>, vector<16x32xf32>,
    %c0_40 = arith.constant 0 : index
    %c0_41 = arith.constant 0 : index
    %110 = vector.load %arg29[%c0_40, %c0_41] : memref<16x128xf32, #tpu.memory_space<vmem>>, vector<16x128xf32>
    %c0_42 = arith.constant 0 : index
    %c0_43 = arith.constant 0 : index
    %c0_44 = arith.constant 0 : index
    %111 = vector.load %arg8[%c0_42, %c0_43, %c0_44] : memref<2x128x128xf32, #tpu.memory_space<vmem>>, vector<1x128x128xf32>
    %112 = vector.shape_cast %111 : vector<1x128x128xf32> to vector<128x128xf32>
    %cst_45 = arith.constant dense<0.000000e+00> : vector<16x128xf32>
    %113 = tpu.matmul %110, %112, %cst_45 {dimension_numbers = #tpu.dot_dimension_numbers<[1], [0], [0], [1], [0, 0, 1, 1], [], []>} : vector<16x128xf32>, vector<128x128xf32>, vector<16x128xf32> -> vector<16x128xf32>
    %c0_46 = arith.constant 0 : index
    %c0_47 = arith.constant 0 : index
    %c0_48 = arith.constant 0 : index
    %114 = vector.load %arg9[%c0_46, %c0_47, %c0_48] : memref<2x1x128xf32, #tpu.memory_space<vmem>>, vector<1x1x128xf32>
    %115 = vector.shape_cast %114 : vector<1x1x128xf32> to vector<1x128xf32>
    %116 = vector.broadcast %115 : vector<1x128xf32> to vector<16x128xf32>
    %117 = arith.addf %113, %116 : vector<16x128xf32>
    %118 = arith.addf %117, %24 : vector<16x128xf32>
    %c0_49 = arith.constant 0 : index
    %c0_50 = arith.constant 0 : index
    %c0_51 = arith.constant 0 : index
    %119 = vector.load %arg10[%c0_49, %c0_50, %c0_51] : memref<2x1x128xf32, #tpu.memory_space<vmem>>, vector<1x1x128xf32>
    %120 = vector.shape_cast %119 : vector<1x1x128xf32> to vector<1x128xf32>
    %c0_52 = arith.constant 0 : index
    %c0_53 = arith.constant 0 : index
    %c0_54 = arith.constant 0 : index
    %121 = vector.load %arg11[%c0_52, %c0_53, %c0_54] : memref<2x1x128xf32, #tpu.memory_space<vmem>>, vector<1x1x128xf32>
    %122 = vector.shape_cast %121 : vector<1x1x128xf32> to vector<1x128xf32>
    %cst_55 = arith.constant dense<0.000000e+00> : vector<16xf32>
    %123 = vector.multi_reduction <add>, %118, %cst_55 [1] : vector<16x128xf32> to vector<16xf32>
    %124 = vector.shape_cast %123 : vector<16xf32> to vector<16x1xf32>
    %cst_56 = arith.constant 1.280000e+02 : f32
    %125 = vector.broadcast %cst_56 : f32 to vector<16x1xf32>
    %126 = arith.divf %124, %125 : vector<16x1xf32>
    %127 = vector.broadcast %126 : vector<16x1xf32> to vector<16x128xf32>
    %128 = arith.subf %118, %127 : vector<16x128xf32>
    %129 = arith.mulf %128, %128 : vector<16x128xf32>
    %cst_57 = arith.constant dense<0.000000e+00> : vector<16xf32>
    %130 = vector.multi_reduction <add>, %129, %cst_57 [1] : vector<16x128xf32> to vector<16xf32>
    %131 = vector.shape_cast %130 : vector<16xf32> to vector<16x1xf32>
    %cst_58 = arith.constant 1.280000e+02 : f32
    %132 = vector.broadcast %cst_58 : f32 to vector<16x1xf32>
    %133 = arith.divf %131, %132 : vector<16x1xf32>
    %134 = vector.broadcast %126 : vector<16x1xf32> to vector<16x128xf32>
    %135 = arith.subf %118, %134 : vector<16x128xf32>
    %cst_59 = arith.constant 9.99999996E-13 : f32
    %136 = vector.broadcast %cst_59 : f32 to vector<16x1xf32>
    %137 = arith.addf %133, %136 : vector<16x1xf32>
    %138 = math.rsqrt %137 : vector<16x1xf32>
    %139 = vector.broadcast %138 : vector<16x1xf32> to vector<16x128xf32>
    %140 = arith.mulf %135, %139 : vector<16x128xf32>
    %141 = vector.broadcast %120 : vector<1x128xf32> to vector<16x128xf32>
    %142 = arith.mulf %140, %141 : vector<16x128xf32>
    %143 = vector.broadcast %122 : vector<1x128xf32> to vector<16x128xf32>
    %144 = arith.addf %142, %143 : vector<16x128xf32>
    %c0_60 = arith.constant 0 : index
    %c0_61 = arith.constant 0 : index
    %c0_62 = arith.constant 0 : index
    %145 = vector.load %arg12[%c0_60, %c0_61, %c0_62] : memref<2x128x256xf32, #tpu.memory_space<vmem>>, vector<1x128x256xf32>
    %146 = vector.shape_cast %145 : vector<1x128x256xf32> to vector<128x256xf32>
    %cst_63 = arith.constant dense<0.000000e+00> : vector<16x256xf32>
    %147 = tpu.matmul %144, %146, %cst_63 {dimension_numbers = #tpu.dot_dimension_numbers<[1], [0], [0], [1], [0, 0, 1, 1], [], []>} : vector<16x128xf32>, vector<128x256xf32>, vector<16x256xf32> -> vector<16x256xf32>
    %c0_64 = arith.constant 0 : index
    %c0_65 = arith.constant 0 : index
    %c0_66 = arith.constant 0 : index
    %148 = vector.load %arg13[%c0_64, %c0_65, %c0_66] : memref<2x1x256xf32, #tpu.memory_space<vmem>>, vector<1x1x256xf32>
    %149 = vector.shape_cast %148 : vector<1x1x256xf32> to vector<1x256xf32>
    %150 = vector.broadcast %149 : vector<1x256xf32> to vector<16x256xf32>
    %151 = arith.addf %147, %150 : vector<16x256xf32>
    %cst_67 = arith.constant 5.000000e-01 : f32
    %152 = vector.broadcast %cst_67 : f32 to vector<16x256xf32>
    %153 = arith.mulf %152, %151 : vector<16x256xf32>
    %cst_68 = arith.constant 4.471500e-02 : f32
    %154 = vector.broadcast %cst_68 : f32 to vector<16x256xf32>
    %155 = arith.mulf %154, %151 : vector<16x256xf32>
    %156 = arith.mulf %155, %151 : vector<16x256xf32>
    %157 = arith.mulf %156, %151 : vector<16x256xf32>
    %158 = arith.addf %151, %157 : vector<16x256xf32>
    %cst_69 = arith.constant 0.797884583 : f32
    %159 = vector.broadcast %cst_69 : f32 to vector<16x256xf32>
    %160 = arith.mulf %159, %158 : vector<16x256xf32>
    %161 = math.tanh %160 : vector<16x256xf32>
    %cst_70 = arith.constant 1.000000e+00 : f32
    %162 = vector.broadcast %cst_70 : f32 to vector<16x256xf32>
    %163 = arith.addf %162, %161 : vector<16x256xf32>
    %164 = arith.mulf %153, %163 : vector<16x256xf32>
    %c0_71 = arith.constant 0 : index
    %c0_72 = arith.constant 0 : index
    %c0_73 = arith.constant 0 : index
    %165 = vector.load %arg14[%c0_71, %c0_72, %c0_73] : memref<2x256x128xf32, #tpu.memory_space<vmem>>, vector<1x256x128xf32>
    %166 = vector.shape_cast %165 : vector<1x256x128xf32> to vector<256x128xf32>
    %cst_74 = arith.constant dense<0.000000e+00> : vector<16x128xf32>
    %167 = tpu.matmul %164, %166, %cst_74 {dimension_numbers = #tpu.dot_dimension_numbers<[1], [0], [0], [1], [0, 0, 1, 1], [], []>} : vector<16x256xf32>, vector<256x128xf32>, vector<16x128xf32> -> vector<16x128xf32>
    %c0_75 = arith.constant 0 : index
    %c0_76 = arith.constant 0 : index
    %c0_77 = arith.constant 0 : index
    %168 = vector.load %arg15[%c0_75, %c0_76, %c0_77] : memref<2x1x128xf32, #tpu.memory_space<vmem>>, vector<1x1x128xf32>
    %169 = vector.shape_cast %168 : vector<1x1x128xf32> to vector<1x128xf32>
    %170 = vector.broadcast %169 : vector<1x128xf32> to vector<16x128xf32>
    %171 = arith.addf %167, %170 : vector<16x128xf32>
    %172 = arith.addf %171, %144 : vector<16x128xf32>
    %c0_78 = arith.constant 0 : index
    %c0_79 = arith.constant 0 : index
    %c0_80 = arith.constant 0 : index
    %173 = vector.load %arg16[%c0_78, %c0_79, %c0_80] : memref<2x1x128xf32, #tpu.memory_space<vmem>>, vector<1x1x128xf32>
    %174 = vector.shape_cast %173 : vector<1x1x128xf32> to vector<1x128xf32>
    %c0_81 = arith.constant 0 : index
    %c0_82 = arith.constant 0 : index
    %c0_83 = arith.constant 0 : index
    %175 = vector.load %arg17[%c0_81, %c0_82, %c0_83] : memref<2x1x128xf32, #tpu.memory_space<vmem>>, vector<1x1x128xf32>
    %176 = vector.shape_cast %175 : vector<1x1x128xf32> to vector<1x128xf32>
    %cst_84 = arith.constant dense<0.000000e+00> : vector<16xf32>
    %177 = vector.multi_reduction <add>, %172, %cst_84 [1] : vector<16x128xf32> to vector<16xf32>
    %178 = vector.shape_cast %177 : vector<16xf32> to vector<16x1xf32>
    %cst_85 = arith.constant 1.280000e+02 : f32
    %179 = vector.broadcast %cst_85 : f32 to vector<16x1xf32>
    %180 = arith.divf %178, %179 : vector<16x1xf32>
    %181 = vector.broadcast %180 : vector<16x1xf32> to vector<16x128xf32>
    %182 = arith.subf %172, %181 : vector<16x128xf32>
    %183 = arith.mulf %182, %182 : vector<16x128xf32>
    %cst_86 = arith.constant dense<0.000000e+00> : vector<16xf32>
    %184 = vector.multi_reduction <add>, %183, %cst_86 [1] : vector<16x128xf32> to vector<16xf32>
    %185 = vector.shape_cast %184 : vector<16xf32> to vector<16x1xf32>
    %cst_87 = arith.constant 1.280000e+02 : f32
    %186 = vector.broadcast %cst_87 : f32 to vector<16x1xf32>
    %187 = arith.divf %185, %186 : vector<16x1xf32>
    %188 = vector.broadcast %180 : vector<16x1xf32> to vector<16x128xf32>
    %189 = arith.subf %172, %188 : vector<16x128xf32>
    %cst_88 = arith.constant 9.99999996E-13 : f32
    %190 = vector.broadcast %cst_88 : f32 to vector<16x1xf32>
    %191 = arith.addf %187, %190 : vector<16x1xf32>
    %192 = math.rsqrt %191 : vector<16x1xf32>
    %193 = vector.broadcast %192 : vector<16x1xf32> to vector<16x128xf32>
    %194 = arith.mulf %189, %193 : vector<16x128xf32>
    %195 = vector.broadcast %174 : vector<1x128xf32> to vector<16x128xf32>
    %196 = arith.mulf %194, %195 : vector<16x128xf32>
    %197 = vector.broadcast %176 : vector<1x128xf32> to vector<16x128xf32>
    %198 = arith.addf %196, %197 : vector<16x128xf32>
    %c1 = arith.constant 1 : index
    %c0_89 = arith.constant 0 : index
    %c0_90 = arith.constant 0 : index
    %199 = vector.load %arg6[%c1, %c0_89, %c0_90] : memref<2x128x384xf32, #tpu.memory_space<vmem>>, vector<1x128x384xf32>
    %200 = vector.shape_cast %199 : vector<1x128x384xf32> to vector<128x384xf32>
    %cst_91 = arith.constant dense<0.000000e+00> : vector<16x384xf32>
    %201 = tpu.matmul %198, %200, %cst_91 {dimension_numbers = #tpu.dot_dimension_numbers<[1], [0], [0], [1], [0, 0, 1, 1], [], []>} : vector<16x128xf32>, vector<128x384xf32>, vector<16x384xf32> -> vector<16x384xf32>
    %c1_92 = arith.constant 1 : index
    %c0_93 = arith.constant 0 : index
    %c0_94 = arith.constant 0 : index
    %202 = vector.load %arg7[%c1_92, %c0_93, %c0_94] : memref<2x1x384xf32, #tpu.memory_space<vmem>>, vector<1x1x384xf32>
    %203 = vector.shape_cast %202 : vector<1x1x384xf32> to vector<1x384xf32>
    %204 = vector.broadcast %203 : vector<1x384xf32> to vector<16x384xf32>
    %205 = arith.addf %201, %204 : vector<16x384xf32>
    %206 = vector.extract_strided_slice %205 {offsets = [0, 0], sizes = [16, 128], strides = [1, 1]} : vector<16x384xf32> to vector<16x128xf32>
    %cst_95 = arith.constant 0.176776692 : f32
    %207 = vector.broadcast %cst_95 : f32 to vector<16x128xf32>
    %208 = arith.mulf %206, %207 : vector<16x128xf32>
    %209 = vector.extract_strided_slice %205 {offsets = [0, 128], sizes = [16, 128], strides = [1, 1]} : vector<16x384xf32> to vector<16x128xf32>
    %210 = vector.extract_strided_slice %205 {offsets = [0, 256], sizes = [16, 128], strides = [1, 1]} : vector<16x384xf32> to vector<16x128xf32>
    %211 = vector.extract_strided_slice %208 {offsets = [0, 0], sizes = [16, 32], strides = [1, 1]} : vector<16x128xf32> to vector<16x32xf32>
    %212 = vector.extract_strided_slice %209 {offsets = [0, 0], sizes = [16, 32], strides = [1, 1]} : vector<16x128xf32> to vector<16x32xf32>
    %213 = tpu.transpose %212, [1, 0] : vector<16x32xf32> -> vector<32x16xf32>
    %cst_96 = arith.constant dense<0.000000e+00> : vector<16x16xf32>
    %214 = tpu.matmul %211, %213, %cst_96 {dimension_numbers = #tpu.dot_dimension_numbers<[1], [0], [0], [1], [0, 0, 1, 1], [], []>} : vector<16x32xf32>, vector<32x16xf32>, vector<16x16xf32> -> vector<16x16xf32>
    %215 = arith.addf %214, %25 : vector<16x16xf32>
    %cst_97 = arith.constant dense<0xFF800000> : vector<16xf32>
    %216 = vector.multi_reduction <maximumf>, %215, %cst_97 [1] : vector<16x16xf32> to vector<16xf32>
    %217 = vector.shape_cast %216 : vector<16xf32> to vector<16x1xf32>
    %218 = vector.broadcast %217 : vector<16x1xf32> to vector<16x16xf32>
    %219 = arith.subf %215, %218 : vector<16x16xf32>
    %220 = math.exp %219 : vector<16x16xf32>
    %cst_98 = arith.constant dense<0.000000e+00> : vector<16xf32>
    %221 = vector.multi_reduction <add>, %220, %cst_98 [1] : vector<16x16xf32> to vector<16xf32>
    %222 = vector.shape_cast %221 : vector<16xf32> to vector<16x1xf32>
    %223 = tpu.reciprocal %222 {approx = true} : vector<16x1xf32> -> vector<16x1xf32>
    %224 = vector.broadcast %223 : vector<16x1xf32> to vector<16x16xf32>
    %225 = arith.mulf %220, %224 : vector<16x16xf32>
    %226 = vector.extract_strided_slice %210 {offsets = [0, 0], sizes = [16, 32], strides = [1, 1]} : vector<16x128xf32> to vector<16x32xf32>
    %cst_99 = arith.constant dense<0.000000e+00> : vector<16x32xf32>
    %227 = tpu.matmul %225, %226, %cst_99 {dimension_numbers = #tpu.dot_dimension_numbers<[1], [0], [0], [1], [0, 0, 1, 1], [], []>} : vector<16x16xf32>, vector<16x32xf32>, vector<16x32xf32> -> vector<16x32xf32>
    %c0_100 = arith.constant 0 : index
    %c0_101 = arith.constant 0 : index
    %228 = vector.load %arg29[%c0_100, %c0_101] : memref<16x128xf32, #tpu.memory_space<vmem>>, vector<16x32xf32>
    tpu.vector_store %arg29[%c0_100, %c0_101], %227 {strides = array<i32>} : memref<16x128xf32, #tpu.memory_space<vmem>>, vector<16x32xf32>,
    %229 = vector.extract_strided_slice %208 {offsets = [0, 32], sizes = [16, 32], strides = [1, 1]} : vector<16x128xf32> to vector<16x32xf32>
    %230 = vector.extract_strided_slice %209 {offsets = [0, 32], sizes = [16, 32], strides = [1, 1]} : vector<16x128xf32> to vector<16x32xf32>
    %231 = tpu.transpose %230, [1, 0] : vector<16x32xf32> -> vector<32x16xf32>
    %cst_102 = arith.constant dense<0.000000e+00> : vector<16x16xf32>
    %232 = tpu.matmul %229, %231, %cst_102 {dimension_numbers = #tpu.dot_dimension_numbers<[1], [0], [0], [1], [0, 0, 1, 1], [], []>} : vector<16x32xf32>, vector<32x16xf32>, vector<16x16xf32> -> vector<16x16xf32>
    %233 = arith.addf %232, %25 : vector<16x16xf32>
    %cst_103 = arith.constant dense<0xFF800000> : vector<16xf32>
    %234 = vector.multi_reduction <maximumf>, %233, %cst_103 [1] : vector<16x16xf32> to vector<16xf32>
    %235 = vector.shape_cast %234 : vector<16xf32> to vector<16x1xf32>
    %236 = vector.broadcast %235 : vector<16x1xf32> to vector<16x16xf32>
    %237 = arith.subf %233, %236 : vector<16x16xf32>
    %238 = math.exp %237 : vector<16x16xf32>
    %cst_104 = arith.constant dense<0.000000e+00> : vector<16xf32>
    %239 = vector.multi_reduction <add>, %238, %cst_104 [1] : vector<16x16xf32> to vector<16xf32>
    %240 = vector.shape_cast %239 : vector<16xf32> to vector<16x1xf32>
    %241 = tpu.reciprocal %240 {approx = true} : vector<16x1xf32> -> vector<16x1xf32>
    %242 = vector.broadcast %241 : vector<16x1xf32> to vector<16x16xf32>
    %243 = arith.mulf %238, %242 : vector<16x16xf32>
    %244 = vector.extract_strided_slice %210 {offsets = [0, 32], sizes = [16, 32], strides = [1, 1]} : vector<16x128xf32> to vector<16x32xf32>
    %cst_105 = arith.constant dense<0.000000e+00> : vector<16x32xf32>
    %245 = tpu.matmul %243, %244, %cst_105 {dimension_numbers = #tpu.dot_dimension_numbers<[1], [0], [0], [1], [0, 0, 1, 1], [], []>} : vector<16x16xf32>, vector<16x32xf32>, vector<16x32xf32> -> vector<16x32xf32>
    %c0_106 = arith.constant 0 : index
    %c32_107 = arith.constant 32 : index
    %246 = vector.load %arg29[%c0_106, %c32_107] : memref<16x128xf32, #tpu.memory_space<vmem>>, vector<16x32xf32>
    tpu.vector_store %arg29[%c0_106, %c32_107], %245 {strides = array<i32>} : memref<16x128xf32, #tpu.memory_space<vmem>>, vector<16x32xf32>,
    %247 = vector.extract_strided_slice %208 {offsets = [0, 64], sizes = [16, 32], strides = [1, 1]} : vector<16x128xf32> to vector<16x32xf32>
    %248 = vector.extract_strided_slice %209 {offsets = [0, 64], sizes = [16, 32], strides = [1, 1]} : vector<16x128xf32> to vector<16x32xf32>
    %249 = tpu.transpose %248, [1, 0] : vector<16x32xf32> -> vector<32x16xf32>
    %cst_108 = arith.constant dense<0.000000e+00> : vector<16x16xf32>
    %250 = tpu.matmul %247, %249, %cst_108 {dimension_numbers = #tpu.dot_dimension_numbers<[1], [0], [0], [1], [0, 0, 1, 1], [], []>} : vector<16x32xf32>, vector<32x16xf32>, vector<16x16xf32> -> vector<16x16xf32>
    %251 = arith.addf %250, %25 : vector<16x16xf32>
    %cst_109 = arith.constant dense<0xFF800000> : vector<16xf32>
    %252 = vector.multi_reduction <maximumf>, %251, %cst_109 [1] : vector<16x16xf32> to vector<16xf32>
    %253 = vector.shape_cast %252 : vector<16xf32> to vector<16x1xf32>
    %254 = vector.broadcast %253 : vector<16x1xf32> to vector<16x16xf32>
    %255 = arith.subf %251, %254 : vector<16x16xf32>
    %256 = math.exp %255 : vector<16x16xf32>
    %cst_110 = arith.constant dense<0.000000e+00> : vector<16xf32>
    %257 = vector.multi_reduction <add>, %256, %cst_110 [1] : vector<16x16xf32> to vector<16xf32>
    %258 = vector.shape_cast %257 : vector<16xf32> to vector<16x1xf32>
    %259 = tpu.reciprocal %258 {approx = true} : vector<16x1xf32> -> vector<16x1xf32>
    %260 = vector.broadcast %259 : vector<16x1xf32> to vector<16x16xf32>
    %261 = arith.mulf %256, %260 : vector<16x16xf32>
    %262 = vector.extract_strided_slice %210 {offsets = [0, 64], sizes = [16, 32], strides = [1, 1]} : vector<16x128xf32> to vector<16x32xf32>
    %cst_111 = arith.constant dense<0.000000e+00> : vector<16x32xf32>
    %263 = tpu.matmul %261, %262, %cst_111 {dimension_numbers = #tpu.dot_dimension_numbers<[1], [0], [0], [1], [0, 0, 1, 1], [], []>} : vector<16x16xf32>, vector<16x32xf32>, vector<16x32xf32> -> vector<16x32xf32>
    %c0_112 = arith.constant 0 : index
    %c64_113 = arith.constant 64 : index
    %264 = vector.load %arg29[%c0_112, %c64_113] : memref<16x128xf32, #tpu.memory_space<vmem>>, vector<16x32xf32>
    tpu.vector_store %arg29[%c0_112, %c64_113], %263 {strides = array<i32>} : memref<16x128xf32, #tpu.memory_space<vmem>>, vector<16x32xf32>,
    %265 = vector.extract_strided_slice %208 {offsets = [0, 96], sizes = [16, 32], strides = [1, 1]} : vector<16x128xf32> to vector<16x32xf32>
    %266 = vector.extract_strided_slice %209 {offsets = [0, 96], sizes = [16, 32], strides = [1, 1]} : vector<16x128xf32> to vector<16x32xf32>
    %267 = tpu.transpose %266, [1, 0] : vector<16x32xf32> -> vector<32x16xf32>
    %cst_114 = arith.constant dense<0.000000e+00> : vector<16x16xf32>
    %268 = tpu.matmul %265, %267, %cst_114 {dimension_numbers = #tpu.dot_dimension_numbers<[1], [0], [0], [1], [0, 0, 1, 1], [], []>} : vector<16x32xf32>, vector<32x16xf32>, vector<16x16xf32> -> vector<16x16xf32>
    %269 = arith.addf %268, %25 : vector<16x16xf32>
    %cst_115 = arith.constant dense<0xFF800000> : vector<16xf32>
    %270 = vector.multi_reduction <maximumf>, %269, %cst_115 [1] : vector<16x16xf32> to vector<16xf32>
    %271 = vector.shape_cast %270 : vector<16xf32> to vector<16x1xf32>
    %272 = vector.broadcast %271 : vector<16x1xf32> to vector<16x16xf32>
    %273 = arith.subf %269, %272 : vector<16x16xf32>
    %274 = math.exp %273 : vector<16x16xf32>
    %cst_116 = arith.constant dense<0.000000e+00> : vector<16xf32>
    %275 = vector.multi_reduction <add>, %274, %cst_116 [1] : vector<16x16xf32> to vector<16xf32>
    %276 = vector.shape_cast %275 : vector<16xf32> to vector<16x1xf32>
    %277 = tpu.reciprocal %276 {approx = true} : vector<16x1xf32> -> vector<16x1xf32>
    %278 = vector.broadcast %277 : vector<16x1xf32> to vector<16x16xf32>
    %279 = arith.mulf %274, %278 : vector<16x16xf32>
    %280 = vector.extract_strided_slice %210 {offsets = [0, 96], sizes = [16, 32], strides = [1, 1]} : vector<16x128xf32> to vector<16x32xf32>
    %cst_117 = arith.constant dense<0.000000e+00> : vector<16x32xf32>
    %281 = tpu.matmul %279, %280, %cst_117 {dimension_numbers = #tpu.dot_dimension_numbers<[1], [0], [0], [1], [0, 0, 1, 1], [], []>} : vector<16x16xf32>, vector<16x32xf32>, vector<16x32xf32> -> vector<16x32xf32>
    %c0_118 = arith.constant 0 : index
    %c96_119 = arith.constant 96 : index
    %282 = vector.load %arg29[%c0_118, %c96_119] : memref<16x128xf32, #tpu.memory_space<vmem>>, vector<16x32xf32>
    tpu.vector_store %arg29[%c0_118, %c96_119], %281 {strides = array<i32>} : memref<16x128xf32, #tpu.memory_space<vmem>>, vector<16x32xf32>,
    %c0_120 = arith.constant 0 : index
    %c0_121 = arith.constant 0 : index
    %283 = vector.load %arg29[%c0_120, %c0_121] : memref<16x128xf32, #tpu.memory_space<vmem>>, vector<16x128xf32>
    %c1_122 = arith.constant 1 : index
    %c0_123 = arith.constant 0 : index
    %c0_124 = arith.constant 0 : index
    %284 = vector.load %arg8[%c1_122, %c0_123, %c0_124] : memref<2x128x128xf32, #tpu.memory_space<vmem>>, vector<1x128x128xf32>
    %285 = vector.shape_cast %284 : vector<1x128x128xf32> to vector<128x128xf32>
    %cst_125 = arith.constant dense<0.000000e+00> : vector<16x128xf32>
    %286 = tpu.matmul %283, %285, %cst_125 {dimension_numbers = #tpu.dot_dimension_numbers<[1], [0], [0], [1], [0, 0, 1, 1], [], []>} : vector<16x128xf32>, vector<128x128xf32>, vector<16x128xf32> -> vector<16x128xf32>
    %c1_126 = arith.constant 1 : index
    %c0_127 = arith.constant 0 : index
    %c0_128 = arith.constant 0 : index
    %287 = vector.load %arg9[%c1_126, %c0_127, %c0_128] : memref<2x1x128xf32, #tpu.memory_space<vmem>>, vector<1x1x128xf32>
    %288 = vector.shape_cast %287 : vector<1x1x128xf32> to vector<1x128xf32>
    %289 = vector.broadcast %288 : vector<1x128xf32> to vector<16x128xf32>
    %290 = arith.addf %286, %289 : vector<16x128xf32>
    %291 = arith.addf %290, %198 : vector<16x128xf32>
    %c1_129 = arith.constant 1 : index
    %c0_130 = arith.constant 0 : index
    %c0_131 = arith.constant 0 : index
    %292 = vector.load %arg10[%c1_129, %c0_130, %c0_131] : memref<2x1x128xf32, #tpu.memory_space<vmem>>, vector<1x1x128xf32>
    %293 = vector.shape_cast %292 : vector<1x1x128xf32> to vector<1x128xf32>
    %c1_132 = arith.constant 1 : index
    %c0_133 = arith.constant 0 : index
    %c0_134 = arith.constant 0 : index
    %294 = vector.load %arg11[%c1_132, %c0_133, %c0_134] : memref<2x1x128xf32, #tpu.memory_space<vmem>>, vector<1x1x128xf32>
    %295 = vector.shape_cast %294 : vector<1x1x128xf32> to vector<1x128xf32>
    %cst_135 = arith.constant dense<0.000000e+00> : vector<16xf32>
    %296 = vector.multi_reduction <add>, %291, %cst_135 [1] : vector<16x128xf32> to vector<16xf32>
    %297 = vector.shape_cast %296 : vector<16xf32> to vector<16x1xf32>
    %cst_136 = arith.constant 1.280000e+02 : f32
    %298 = vector.broadcast %cst_136 : f32 to vector<16x1xf32>
    %299 = arith.divf %297, %298 : vector<16x1xf32>
    %300 = vector.broadcast %299 : vector<16x1xf32> to vector<16x128xf32>
    %301 = arith.subf %291, %300 : vector<16x128xf32>
    %302 = arith.mulf %301, %301 : vector<16x128xf32>
    %cst_137 = arith.constant dense<0.000000e+00> : vector<16xf32>
    %303 = vector.multi_reduction <add>, %302, %cst_137 [1] : vector<16x128xf32> to vector<16xf32>
    %304 = vector.shape_cast %303 : vector<16xf32> to vector<16x1xf32>
    %cst_138 = arith.constant 1.280000e+02 : f32
    %305 = vector.broadcast %cst_138 : f32 to vector<16x1xf32>
    %306 = arith.divf %304, %305 : vector<16x1xf32>
    %307 = vector.broadcast %299 : vector<16x1xf32> to vector<16x128xf32>
    %308 = arith.subf %291, %307 : vector<16x128xf32>
    %cst_139 = arith.constant 9.99999996E-13 : f32
    %309 = vector.broadcast %cst_139 : f32 to vector<16x1xf32>
    %310 = arith.addf %306, %309 : vector<16x1xf32>
    %311 = math.rsqrt %310 : vector<16x1xf32>
    %312 = vector.broadcast %311 : vector<16x1xf32> to vector<16x128xf32>
    %313 = arith.mulf %308, %312 : vector<16x128xf32>
    %314 = vector.broadcast %293 : vector<1x128xf32> to vector<16x128xf32>
    %315 = arith.mulf %313, %314 : vector<16x128xf32>
    %316 = vector.broadcast %295 : vector<1x128xf32> to vector<16x128xf32>
    %317 = arith.addf %315, %316 : vector<16x128xf32>
    %c1_140 = arith.constant 1 : index
    %c0_141 = arith.constant 0 : index
    %c0_142 = arith.constant 0 : index
    %318 = vector.load %arg12[%c1_140, %c0_141, %c0_142] : memref<2x128x256xf32, #tpu.memory_space<vmem>>, vector<1x128x256xf32>
    %319 = vector.shape_cast %318 : vector<1x128x256xf32> to vector<128x256xf32>
    %cst_143 = arith.constant dense<0.000000e+00> : vector<16x256xf32>
    %320 = tpu.matmul %317, %319, %cst_143 {dimension_numbers = #tpu.dot_dimension_numbers<[1], [0], [0], [1], [0, 0, 1, 1], [], []>} : vector<16x128xf32>, vector<128x256xf32>, vector<16x256xf32> -> vector<16x256xf32>
    %c1_144 = arith.constant 1 : index
    %c0_145 = arith.constant 0 : index
    %c0_146 = arith.constant 0 : index
    %321 = vector.load %arg13[%c1_144, %c0_145, %c0_146] : memref<2x1x256xf32, #tpu.memory_space<vmem>>, vector<1x1x256xf32>
    %322 = vector.shape_cast %321 : vector<1x1x256xf32> to vector<1x256xf32>
    %323 = vector.broadcast %322 : vector<1x256xf32> to vector<16x256xf32>
    %324 = arith.addf %320, %323 : vector<16x256xf32>
    %cst_147 = arith.constant 5.000000e-01 : f32
    %325 = vector.broadcast %cst_147 : f32 to vector<16x256xf32>
    %326 = arith.mulf %325, %324 : vector<16x256xf32>
    %cst_148 = arith.constant 4.471500e-02 : f32
    %327 = vector.broadcast %cst_148 : f32 to vector<16x256xf32>
    %328 = arith.mulf %327, %324 : vector<16x256xf32>
    %329 = arith.mulf %328, %324 : vector<16x256xf32>
    %330 = arith.mulf %329, %324 : vector<16x256xf32>
    %331 = arith.addf %324, %330 : vector<16x256xf32>
    %cst_149 = arith.constant 0.797884583 : f32
    %332 = vector.broadcast %cst_149 : f32 to vector<16x256xf32>
    %333 = arith.mulf %332, %331 : vector<16x256xf32>
    %334 = math.tanh %333 : vector<16x256xf32>
    %cst_150 = arith.constant 1.000000e+00 : f32
    %335 = vector.broadcast %cst_150 : f32 to vector<16x256xf32>
    %336 = arith.addf %335, %334 : vector<16x256xf32>
    %337 = arith.mulf %326, %336 : vector<16x256xf32>
    %c1_151 = arith.constant 1 : index
    %c0_152 = arith.constant 0 : index
    %c0_153 = arith.constant 0 : index
    %338 = vector.load %arg14[%c1_151, %c0_152, %c0_153] : memref<2x256x128xf32, #tpu.memory_space<vmem>>, vector<1x256x128xf32>
    %339 = vector.shape_cast %338 : vector<1x256x128xf32> to vector<256x128xf32>
    %cst_154 = arith.constant dense<0.000000e+00> : vector<16x128xf32>
    %340 = tpu.matmul %337, %339, %cst_154 {dimension_numbers = #tpu.dot_dimension_numbers<[1], [0], [0], [1], [0, 0, 1, 1], [], []>} : vector<16x256xf32>, vector<256x128xf32>, vector<16x128xf32> -> vector<16x128xf32>
    %c1_155 = arith.constant 1 : index
    %c0_156 = arith.constant 0 : index
    %c0_157 = arith.constant 0 : index
    %341 = vector.load %arg15[%c1_155, %c0_156, %c0_157] : memref<2x1x128xf32, #tpu.memory_space<vmem>>, vector<1x1x128xf32>
    %342 = vector.shape_cast %341 : vector<1x1x128xf32> to vector<1x128xf32>
    %343 = vector.broadcast %342 : vector<1x128xf32> to vector<16x128xf32>
    %344 = arith.addf %340, %343 : vector<16x128xf32>
    %345 = arith.addf %344, %317 : vector<16x128xf32>
    %c1_158 = arith.constant 1 : index
    %c0_159 = arith.constant 0 : index
    %c0_160 = arith.constant 0 : index
    %346 = vector.load %arg16[%c1_158, %c0_159, %c0_160] : memref<2x1x128xf32, #tpu.memory_space<vmem>>, vector<1x1x128xf32>
    %347 = vector.shape_cast %346 : vector<1x1x128xf32> to vector<1x128xf32>
    %c1_161 = arith.constant 1 : index
    %c0_162 = arith.constant 0 : index
    %c0_163 = arith.constant 0 : index
    %348 = vector.load %arg17[%c1_161, %c0_162, %c0_163] : memref<2x1x128xf32, #tpu.memory_space<vmem>>, vector<1x1x128xf32>
    %349 = vector.shape_cast %348 : vector<1x1x128xf32> to vector<1x128xf32>
    %cst_164 = arith.constant dense<0.000000e+00> : vector<16xf32>
    %350 = vector.multi_reduction <add>, %345, %cst_164 [1] : vector<16x128xf32> to vector<16xf32>
    %351 = vector.shape_cast %350 : vector<16xf32> to vector<16x1xf32>
    %cst_165 = arith.constant 1.280000e+02 : f32
    %352 = vector.broadcast %cst_165 : f32 to vector<16x1xf32>
    %353 = arith.divf %351, %352 : vector<16x1xf32>
    %354 = vector.broadcast %353 : vector<16x1xf32> to vector<16x128xf32>
    %355 = arith.subf %345, %354 : vector<16x128xf32>
    %356 = arith.mulf %355, %355 : vector<16x128xf32>
    %cst_166 = arith.constant dense<0.000000e+00> : vector<16xf32>
    %357 = vector.multi_reduction <add>, %356, %cst_166 [1] : vector<16x128xf32> to vector<16xf32>
    %358 = vector.shape_cast %357 : vector<16xf32> to vector<16x1xf32>
    %cst_167 = arith.constant 1.280000e+02 : f32
    %359 = vector.broadcast %cst_167 : f32 to vector<16x1xf32>
    %360 = arith.divf %358, %359 : vector<16x1xf32>
    %361 = vector.broadcast %353 : vector<16x1xf32> to vector<16x128xf32>
    %362 = arith.subf %345, %361 : vector<16x128xf32>
    %cst_168 = arith.constant 9.99999996E-13 : f32
    %363 = vector.broadcast %cst_168 : f32 to vector<16x1xf32>
    %364 = arith.addf %360, %363 : vector<16x1xf32>
    %365 = math.rsqrt %364 : vector<16x1xf32>
    %366 = vector.broadcast %365 : vector<16x1xf32> to vector<16x128xf32>
    %367 = arith.mulf %362, %366 : vector<16x128xf32>
    %368 = vector.broadcast %347 : vector<1x128xf32> to vector<16x128xf32>
    %369 = arith.mulf %367, %368 : vector<16x128xf32>
    %370 = vector.broadcast %349 : vector<1x128xf32> to vector<16x128xf32>
    %371 = arith.addf %369, %370 : vector<16x128xf32>
    %c0_169 = arith.constant 0 : index
    %c0_170 = arith.constant 0 : index
    %372 = vector.load %arg3[%c0_169, %c0_170] : memref<2x16xf32, #tpu.memory_space<vmem>>, vector<2x16xf32>
    %cst_171 = arith.constant dense<0.000000e+00> : vector<2x128xf32>
    %373 = tpu.matmul %372, %371, %cst_171 {dimension_numbers = #tpu.dot_dimension_numbers<[1], [0], [0], [1], [0, 0, 1, 1], [], []>} : vector<2x16xf32>, vector<16x128xf32>, vector<2x128xf32> -> vector<2x128xf32>
    %c0_172 = arith.constant 0 : index
    %c0_173 = arith.constant 0 : index
    %374 = vector.load %arg18[%c0_172, %c0_173] : memref<128x128xf32, #tpu.memory_space<vmem>>, vector<128x128xf32>
    %cst_174 = arith.constant dense<0.000000e+00> : vector<2x128xf32>
    %375 = tpu.matmul %373, %374, %cst_174 {dimension_numbers = #tpu.dot_dimension_numbers<[1], [0], [0], [1], [0, 0, 1, 1], [], []>} : vector<2x128xf32>, vector<128x128xf32>, vector<2x128xf32> -> vector<2x128xf32>
    %c0_175 = arith.constant 0 : index
    %c0_176 = arith.constant 0 : index
    %376 = vector.load %arg19[%c0_175, %c0_176] : memref<1x128xf32, #tpu.memory_space<vmem>>, vector<1x128xf32>
    %377 = vector.broadcast %376 : vector<1x128xf32> to vector<2x128xf32>
    %378 = arith.addf %375, %377 : vector<2x128xf32>
    %c0_177 = arith.constant 0 : index
    %c0_178 = arith.constant 0 : index
    %379 = vector.load %arg20[%c0_177, %c0_178] : memref<128x256xf32, #tpu.memory_space<vmem>>, vector<128x256xf32>
    %cst_179 = arith.constant dense<0.000000e+00> : vector<2x256xf32>
    %380 = tpu.matmul %378, %379, %cst_179 {dimension_numbers = #tpu.dot_dimension_numbers<[1], [0], [0], [1], [0, 0, 1, 1], [], []>} : vector<2x128xf32>, vector<128x256xf32>, vector<2x256xf32> -> vector<2x256xf32>
    %c0_180 = arith.constant 0 : index
    %c0_181 = arith.constant 0 : index
    %381 = vector.load %arg21[%c0_180, %c0_181] : memref<1x256xf32, #tpu.memory_space<vmem>>, vector<1x256xf32>
    %382 = vector.broadcast %381 : vector<1x256xf32> to vector<2x256xf32>
    %383 = arith.addf %380, %382 : vector<2x256xf32>
    %cst_182 = arith.constant 0.000000e+00 : f32
    %384 = vector.broadcast %cst_182 : f32 to vector<2x256xf32>
    %385 = arith.maximumf %383, %384 : vector<2x256xf32>
    %c0_183 = arith.constant 0 : index
    %c0_184 = arith.constant 0 : index
    %386 = vector.load %arg22[%c0_183, %c0_184] : memref<256x128xf32, #tpu.memory_space<vmem>>, vector<256x128xf32>
    %cst_185 = arith.constant dense<0.000000e+00> : vector<2x128xf32>
    %387 = tpu.matmul %385, %386, %cst_185 {dimension_numbers = #tpu.dot_dimension_numbers<[1], [0], [0], [1], [0, 0, 1, 1], [], []>} : vector<2x256xf32>, vector<256x128xf32>, vector<2x128xf32> -> vector<2x128xf32>
    %c0_186 = arith.constant 0 : index
    %c0_187 = arith.constant 0 : index
    %388 = vector.load %arg23[%c0_186, %c0_187] : memref<1x128xf32, #tpu.memory_space<vmem>>, vector<1x128xf32>
    %389 = vector.broadcast %388 : vector<1x128xf32> to vector<2x128xf32>
    %390 = arith.addf %387, %389 : vector<2x128xf32>
    %c0_188 = arith.constant 0 : index
    %c0_189 = arith.constant 0 : index
    %391 = vector.load %arg24[%c0_188, %c0_189] : memref<128x128xf32, #tpu.memory_space<vmem>>, vector<128x128xf32>
    %cst_190 = arith.constant dense<0.000000e+00> : vector<2x128xf32>
    %392 = tpu.matmul %390, %391, %cst_190 {dimension_numbers = #tpu.dot_dimension_numbers<[1], [0], [0], [1], [0, 0, 1, 1], [], []>} : vector<2x128xf32>, vector<128x128xf32>, vector<2x128xf32> -> vector<2x128xf32>
    %c0_191 = arith.constant 0 : index
    %c0_192 = arith.constant 0 : index
    %393 = vector.load %arg25[%c0_191, %c0_192] : memref<1x128xf32, #tpu.memory_space<vmem>>, vector<1x128xf32>
    %394 = vector.broadcast %393 : vector<1x128xf32> to vector<2x128xf32>
    %395 = arith.addf %392, %394 : vector<2x128xf32>
    %c0_193 = arith.constant 0 : index
    %c0_194 = arith.constant 0 : index
    %396 = vector.load %arg26[%c0_193, %c0_194] : memref<128x2xf32, #tpu.memory_space<vmem>>, vector<128x2xf32>
    %cst_195 = arith.constant dense<0.000000e+00> : vector<2x2xf32>
    %397 = tpu.matmul %395, %396, %cst_195 {dimension_numbers = #tpu.dot_dimension_numbers<[1], [0], [0], [1], [0, 0, 1, 1], [], []>} : vector<2x128xf32>, vector<128x2xf32>, vector<2x2xf32> -> vector<2x2xf32>
    %c0_196 = arith.constant 0 : index
    %c0_197 = arith.constant 0 : index
    %398 = vector.load %arg27[%c0_196, %c0_197] : memref<1x2xf32, #tpu.memory_space<vmem>>, vector<1x2xf32>
    %399 = vector.broadcast %398 : vector<1x2xf32> to vector<2x2xf32>
    %400 = arith.addf %397, %399 : vector<2x2xf32>
    %c0_198 = arith.constant 0 : index
    %c0_199 = arith.constant 0 : index
    %401 = vector.load %arg28[%c0_198, %c0_199] : memref<2x2xf32, #tpu.memory_space<vmem>>, vector<2x2xf32>
    tpu.vector_store %arg28[%c0_198, %c0_199], %400 {strides = array<i32>} : memref<2x2xf32, #tpu.memory_space<vmem>>, vector<2x2xf32>,
    return
  }
  func.func @transform_0(%arg0: i32) -> (i32, i32) {
    %c0_i32 = arith.constant 0 : i32
    %c0_i32_0 = arith.constant 0 : i32
    %c0_i32_1 = arith.constant 0 : i32
    return %c0_i32, %c0_i32_0 : i32, i32
  }
  func.func @transform_1(%arg0: i32) -> (i32, i32) {
    %c0_i32 = arith.constant 0 : i32
    %c0_i32_0 = arith.constant 0 : i32
    %c0_i32_1 = arith.constant 0 : i32
    return %c0_i32, %c0_i32_0 : i32, i32
  }
  func.func @transform_2(%arg0: i32) -> (i32, i32) {
    %c0_i32 = arith.constant 0 : i32
    %c0_i32_0 = arith.constant 0 : i32
    %c0_i32_1 = arith.constant 0 : i32
    return %c0_i32, %c0_i32_0 : i32, i32
  }
  func.func @transform_3(%arg0: i32) -> (i32, i32) {
    %c0_i32 = arith.constant 0 : i32
    %c0_i32_0 = arith.constant 0 : i32
    %c0_i32_1 = arith.constant 0 : i32
    return %c0_i32, %c0_i32_0 : i32, i32
  }
  func.func @transform_4(%arg0: i32) -> (i32, i32) {
    %c0_i32 = arith.constant 0 : i32
    %c0_i32_0 = arith.constant 0 : i32
    %c0_i32_1 = arith.constant 0 : i32
    return %c0_i32, %c0_i32_0 : i32, i32
  }
  func.func @transform_5(%arg0: i32) -> (i32, i32, i32) {
    %c0_i32 = arith.constant 0 : i32
    %c0_i32_0 = arith.constant 0 : i32
    %c0_i32_1 = arith.constant 0 : i32
    %c0_i32_2 = arith.constant 0 : i32
    return %c0_i32, %c0_i32_0, %c0_i32_1 : i32, i32, i32
  }
  func.func @transform_6(%arg0: i32) -> (i32, i32, i32) {
    %c0_i32 = arith.constant 0 : i32
    %c0_i32_0 = arith.constant 0 : i32
    %c0_i32_1 = arith.constant 0 : i32
    %c0_i32_2 = arith.constant 0 : i32
    return %c0_i32, %c0_i32_0, %c0_i32_1 : i32, i32, i32
  }
  func.func @transform_7(%arg0: i32) -> (i32, i32, i32) {
    %c0_i32 = arith.constant 0 : i32
    %c0_i32_0 = arith.constant 0 : i32
    %c0_i32_1 = arith.constant 0 : i32
    %c0_i32_2 = arith.constant 0 : i32
    return %c0_i32, %c0_i32_0, %c0_i32_1 : i32, i32, i32
  }
  func.func @transform_8(%arg0: i32) -> (i32, i32, i32) {
    %c0_i32 = arith.constant 0 : i32
    %c0_i32_0 = arith.constant 0 : i32
    %c0_i32_1 = arith.constant 0 : i32
    %c0_i32_2 = arith.constant 0 : i32
    return %c0_i32, %c0_i32_0, %c0_i32_1 : i32, i32, i32
  }
  func.func @transform_9(%arg0: i32) -> (i32, i32, i32) {
    %c0_i32 = arith.constant 0 : i32
    %c0_i32_0 = arith.constant 0 : i32
    %c0_i32_1 = arith.constant 0 : i32
    %c0_i32_2 = arith.constant 0 : i32
    return %c0_i32, %c0_i32_0, %c0_i32_1 : i32, i32, i32
  }
  func.func @transform_10(%arg0: i32) -> (i32, i32, i32) {
    %c0_i32 = arith.constant 0 : i32
    %c0_i32_0 = arith.constant 0 : i32
    %c0_i32_1 = arith.constant 0 : i32
    %c0_i32_2 = arith.constant 0 : i32
    return %c0_i32, %c0_i32_0, %c0_i32_1 : i32, i32, i32
  }
  func.func @transform_11(%arg0: i32) -> (i32, i32, i32) {
    %c0_i32 = arith.constant 0 : i32
    %c0_i32_0 = arith.constant 0 : i32
    %c0_i32_1 = arith.constant 0 : i32
    %c0_i32_2 = arith.constant 0 : i32
    return %c0_i32, %c0_i32_0, %c0_i32_1 : i32, i32, i32
  }
  func.func @transform_12(%arg0: i32) -> (i32, i32, i32) {
    %c0_i32 = arith.constant 0 : i32
    %c0_i32_0 = arith.constant 0 : i32
    %c0_i32_1 = arith.constant 0 : i32
    %c0_i32_2 = arith.constant 0 : i32
    return %c0_i32, %c0_i32_0, %c0_i32_1 : i32, i32, i32
  }
  func.func @transform_13(%arg0: i32) -> (i32, i32, i32) {
    %c0_i32 = arith.constant 0 : i32
    %c0_i32_0 = arith.constant 0 : i32
    %c0_i32_1 = arith.constant 0 : i32
    %c0_i32_2 = arith.constant 0 : i32
    return %c0_i32, %c0_i32_0, %c0_i32_1 : i32, i32, i32
  }
  func.func @transform_14(%arg0: i32) -> (i32, i32, i32) {
    %c0_i32 = arith.constant 0 : i32
    %c0_i32_0 = arith.constant 0 : i32
    %c0_i32_1 = arith.constant 0 : i32
    %c0_i32_2 = arith.constant 0 : i32
    return %c0_i32, %c0_i32_0, %c0_i32_1 : i32, i32, i32
  }
  func.func @transform_15(%arg0: i32) -> (i32, i32, i32) {
    %c0_i32 = arith.constant 0 : i32
    %c0_i32_0 = arith.constant 0 : i32
    %c0_i32_1 = arith.constant 0 : i32
    %c0_i32_2 = arith.constant 0 : i32
    return %c0_i32, %c0_i32_0, %c0_i32_1 : i32, i32, i32
  }
  func.func @transform_16(%arg0: i32) -> (i32, i32, i32) {
    %c0_i32 = arith.constant 0 : i32
    %c0_i32_0 = arith.constant 0 : i32
    %c0_i32_1 = arith.constant 0 : i32
    %c0_i32_2 = arith.constant 0 : i32
    return %c0_i32, %c0_i32_0, %c0_i32_1 : i32, i32, i32
  }
  func.func @transform_17(%arg0: i32) -> (i32, i32) {
    %c0_i32 = arith.constant 0 : i32
    %c0_i32_0 = arith.constant 0 : i32
    %c0_i32_1 = arith.constant 0 : i32
    return %c0_i32, %c0_i32_0 : i32, i32
  }
  func.func @transform_18(%arg0: i32) -> (i32, i32) {
    %c0_i32 = arith.constant 0 : i32
    %c0_i32_0 = arith.constant 0 : i32
    %c0_i32_1 = arith.constant 0 : i32
    return %c0_i32, %c0_i32_0 : i32, i32
  }
  func.func @transform_19(%arg0: i32) -> (i32, i32) {
    %c0_i32 = arith.constant 0 : i32
    %c0_i32_0 = arith.constant 0 : i32
    %c0_i32_1 = arith.constant 0 : i32
    return %c0_i32, %c0_i32_0 : i32, i32
  }
  func.func @transform_20(%arg0: i32) -> (i32, i32) {
    %c0_i32 = arith.constant 0 : i32
    %c0_i32_0 = arith.constant 0 : i32
    %c0_i32_1 = arith.constant 0 : i32
    return %c0_i32, %c0_i32_0 : i32, i32
  }
  func.func @transform_21(%arg0: i32) -> (i32, i32) {
    %c0_i32 = arith.constant 0 : i32
    %c0_i32_0 = arith.constant 0 : i32
    %c0_i32_1 = arith.constant 0 : i32
    return %c0_i32, %c0_i32_0 : i32, i32
  }
  func.func @transform_22(%arg0: i32) -> (i32, i32) {
    %c0_i32 = arith.constant 0 : i32
    %c0_i32_0 = arith.constant 0 : i32
    %c0_i32_1 = arith.constant 0 : i32
    return %c0_i32, %c0_i32_0 : i32, i32
  }
  func.func @transform_23(%arg0: i32) -> (i32, i32) {
    %c0_i32 = arith.constant 0 : i32
    %c0_i32_0 = arith.constant 0 : i32
    %c0_i32_1 = arith.constant 0 : i32
    return %c0_i32, %c0_i32_0 : i32, i32
  }
  func.func @transform_24(%arg0: i32) -> (i32, i32) {
    %c0_i32 = arith.constant 0 : i32
    %c0_i32_0 = arith.constant 0 : i32
    %c0_i32_1 = arith.constant 0 : i32
    return %c0_i32, %c0_i32_0 : i32, i32
  }
  func.func @transform_25(%arg0: i32) -> (i32, i32) {
    %c0_i32 = arith.constant 0 : i32
    %c0_i32_0 = arith.constant 0 : i32
    %c0_i32_1 = arith.constant 0 : i32
    return %c0_i32, %c0_i32_0 : i32, i32
  }
  func.func @transform_26(%arg0: i32) -> (i32, i32) {
    %c0_i32 = arith.constant 0 : i32
    %c0_i32_0 = arith.constant 0 : i32
    %c0_i32_1 = arith.constant 0 : i32
    return %c0_i32, %c0_i32_0 : i32, i32
  }
  func.func @transform_27(%arg0: i32) -> (i32, i32) {
    %c0_i32 = arith.constant 0 : i32
    %c0_i32_0 = arith.constant 0 : i32
    %c0_i32_1 = arith.constant 0 : i32
    return %c0_i32, %c0_i32_0 : i32, i32
  }
}

</mosaic_0001>

<llo_original>
// kernel: tpu_custom_call.1
$region0: #{tpu_custom_call.1}
  #allocation0 [shape = 'u32[]', space=smem, size = 0x4, offset = 0x4, fixed_abs, tag = 'smem constant byte address 0x4 - core index']
  #allocation1 [shape = 'u32[144,128]{1,0:T(1,128)}', space=vmem, size = 0x12000, scoped, tag = 'internal scratch']
  #allocation2 [shape = 'f32[16,128]{1,0:T(8,128)}', space=vmem, size = 0x2000, scoped, tag = 'scratch operand']
  %s0 = inlined_call_operand.vmem [shape: f32[16,128], index: 0, kind: input, shape index: {}]
  %s1 = inlined_call_operand.vmem [shape: f32[16,16], index: 1, kind: input, shape index: {}]
  %s2 = inlined_call_operand.hbm [shape: f32[2,16], index: 2, kind: input, shape index: {}]
  %s3 = inlined_call_operand.hbm [shape: f32[1,128], index: 3, kind: input, shape index: {}]
  %s4 = inlined_call_operand.hbm [shape: f32[1,128], index: 4, kind: input, shape index: {}]
  %s5 = inlined_call_operand.hbm [shape: f32[2,128,384], index: 5, kind: input, shape index: {}]
  %s6 = inlined_call_operand.hbm [shape: f32[2,1,384], index: 6, kind: input, shape index: {}]
  %s7 = inlined_call_operand.hbm [shape: f32[2,128,128], index: 7, kind: input, shape index: {}]
  %s8 = inlined_call_operand.hbm [shape: f32[2,1,128], index: 8, kind: input, shape index: {}]
  %s9 = inlined_call_operand.hbm [shape: f32[2,1,128], index: 9, kind: input, shape index: {}]
  %s10 = inlined_call_operand.hbm [shape: f32[2,1,128], index: 10, kind: input, shape index: {}]
  %s11 = inlined_call_operand.hbm [shape: f32[2,128,256], index: 11, kind: input, shape index: {}]
  %s12 = inlined_call_operand.hbm [shape: f32[2,1,256], index: 12, kind: input, shape index: {}]
  %s13 = inlined_call_operand.hbm [shape: f32[2,256,128], index: 13, kind: input, shape index: {}]
  %s14 = inlined_call_operand.hbm [shape: f32[2,1,128], index: 14, kind: input, shape index: {}]
  %s15 = inlined_call_operand.hbm [shape: f32[2,1,128], index: 15, kind: input, shape index: {}]
  %s16 = inlined_call_operand.hbm [shape: f32[2,1,128], index: 16, kind: input, shape index: {}]
  %s17 = inlined_call_operand.vmem [shape: f32[128,128], index: 17, kind: input, shape index: {}]
  %s18 = inlined_call_operand.hbm [shape: f32[1,128], index: 18, kind: input, shape index: {}]
  %s19 = inlined_call_operand.hbm [shape: f32[128,256], index: 19, kind: input, shape index: {}]
  %s20 = inlined_call_operand.vmem [shape: f32[1,256], index: 20, kind: input, shape index: {}]
  %s21 = inlined_call_operand.hbm [shape: f32[256,128], index: 21, kind: input, shape index: {}]
  %s22 = inlined_call_operand.vmem [shape: f32[1,128], index: 22, kind: input, shape index: {}]
  %s23 = inlined_call_operand.hbm [shape: f32[128,128], index: 23, kind: input, shape index: {}]
  %s24 = inlined_call_operand.vmem [shape: f32[1,128], index: 24, kind: input, shape index: {}]
  %s25 = inlined_call_operand.vmem [shape: f32[128,2], index: 25, kind: input, shape index: {}]
  %s26 = inlined_call_operand.vmem [shape: f32[1,2], index: 26, kind: input, shape index: {}]
  %s27 = inlined_call_operand.hbm [shape: f32[2,2], index: 27, kind: output, shape index: {}]
  %s28 = sld [smem:[#allocation0]]
  $region194: #{tpu_custom_call.1} parent=0
    _
  %s30 = ssub.s32 1, %s28
  %s31 = scalar_select 0, %s30, %s28
  $region1: #{tpu_custom_call.1} parent=0
    #allocation3 [shape = 'u8[1024]{0}', space=vmem, size = 0x400, scoped, tag = 'input window, operand 2, single buffered']
    #allocation4 [shape = 's32[1]{0}', space=sflag, size = 0x4, scoped, tag = 'scoped memory for tpu_custom_call.1']
    #allocation5 [shape = 's32[1]{0}', space=sflag, size = 0x4, scoped, tag = 'scoped memory for tpu_custom_call.1']
    #allocation6 [shape = 'u8[512]{0}', space=vmem, size = 0x400, scoped, tag = 'input window, operand 3, single buffered']
    #allocation7 [shape = 's32[1]{0}', space=sflag, size = 0x4, scoped, tag = 'scoped memory for tpu_custom_call.1']
    #allocation8 [shape = 'u8[512]{0}', space=vmem, size = 0x400, scoped, tag = 'input window, operand 4, single buffered']
    #allocation9 [shape = 'u8[393216]{0}', space=vmem, size = 0x60000, scoped, tag = 'input window, operand 5, single buffered']
    #allocation10 [shape = 's32[1]{0}', space=sflag, size = 0x4, scoped, tag = 'scoped memory for tpu_custom_call.1']
    #allocation11 [shape = 'u8[3072]{0}', space=vmem, size = 0xc00, scoped, tag = 'input window, operand 6, single buffered']
    #allocation12 [shape = 'u8[131072]{0}', space=vmem, size = 0x20000, scoped, tag = 'input window, operand 7, single buffered']
    #allocation13 [shape = 's32[1]{0}', space=sflag, size = 0x4, scoped, tag = 'scoped memory for tpu_custom_call.1']
    #allocation14 [shape = 'u8[1024]{0}', space=vmem, size = 0x400, scoped, tag = 'input window, operand 8, single buffered']
    #allocation15 [shape = 'u8[1024]{0}', space=vmem, size = 0x400, scoped, tag = 'input window, operand 9, single buffered']
    #allocation16 [shape = 's32[1]{0}', space=sflag, size = 0x4, scoped, tag = 'scoped memory for tpu_custom_call.1']
    #allocation17 [shape = 'u8[1024]{0}', space=vmem, size = 0x400, scoped, tag = 'input window, operand 10, single buffered']
    #allocation18 [shape = 'u8[262144]{0}', space=vmem, size = 0x40000, scoped, tag = 'input window, operand 11, single buffered']
    #allocation19 [shape = 's32[1]{0}', space=sflag, size = 0x4, scoped, tag = 'scoped memory for tpu_custom_call.1']
    #allocation20 [shape = 'u8[2048]{0}', space=vmem, size = 0x800, scoped, tag = 'input window, operand 12, single buffered']
    #allocation21 [shape = 'u8[262144]{0}', space=vmem, size = 0x40000, scoped, tag = 'input window, operand 13, single buffered']
    #allocation22 [shape = 's32[1]{0}', space=sflag, size = 0x4, scoped, tag = 'scoped memory for tpu_custom_call.1']
    #allocation23 [shape = 'u8[1024]{0}', space=vmem, size = 0x400, scoped, tag = 'input window, operand 14, single buffered']
    #allocation24 [shape = 'u8[1024]{0}', space=vmem, size = 0x400, scoped, tag = 'input window, operand 15, single buffered']
    #allocation25 [shape = 's32[1]{0}', space=sflag, size = 0x4, scoped, tag = 'scoped memory for tpu_custom_call.1']
    #allocation26 [shape = 'u8[1024]{0}', space=vmem, size = 0x400, scoped, tag = 'input window, operand 16, single buffered']
    #allocation27 [shape = 'u8[512]{0}', space=vmem, size = 0x400, scoped, tag = 'input window, operand 18, single buffered']
    #allocation28 [shape = 's32[1]{0}', space=sflag, size = 0x4, scoped, tag = 'scoped memory for tpu_custom_call.1']
    #allocation29 [shape = 'u8[131072]{0}', space=vmem, size = 0x20000, scoped, tag = 'input window, operand 19, single buffered']
    #allocation30 [shape = 'u8[131072]{0}', space=vmem, size = 0x20000, scoped, tag = 'input window, operand 21, single buffered']
    #allocation31 [shape = 's32[1]{0}', space=sflag, size = 0x4, scoped, tag = 'scoped memory for tpu_custom_call.1']
    #allocation32 [shape = 'u8[65536]{0}', space=vmem, size = 0x10000, scoped, tag = 'input window, operand 23, single buffered']
    #allocation33 [shape = 'u8[1024]{0}', space=vmem, size = 0x400, scoped, tag = 'output window, operand 0, single buffered']
    %32 = vsyncpa [#allocation4], 0
    %33 = vsyncpa [#allocation7], 0
    %34 = vsyncpa [#allocation10], 0
    %35 = vsyncpa [#allocation13], 0
    %36 = vsyncpa [#allocation16], 0
    %37 = vsyncpa [#allocation19], 0
    %38 = vsyncpa [#allocation22], 0
    %39 = vsyncpa [#allocation25], 0
    %40 = vsyncpa [#allocation28], 0
    %41 = vsyncpa [#allocation31], 0
    %42 = vsyncpa [#allocation5], 0
    // Predicated region
    $region2: #{tpu_custom_call.1} parent=1 // pred_check
      _
    $region3: #{tpu_custom_call.1} parent=1 // pred_check_branch
      %44 = sbr.rel (0) target = $region5
    $region4: #{tpu_custom_call.1} parent=1 // pred_region
      _
    $region5: #{tpu_custom_call.1} parent=1 // pred_fallthru
      _
    // Predicated region
    $region6: #{tpu_custom_call.1} parent=1 // pred_check
      _
    $region7: #{tpu_custom_call.1} parent=1 // pred_check_branch
      %46 = sbr.rel (0) target = $region9
    $region8: #{tpu_custom_call.1} parent=1 // pred_region
      _
    $region9: #{tpu_custom_call.1} parent=1 // pred_fallthru
      _
    // Predicated region
    $region10: #{tpu_custom_call.1} parent=1 // pred_check
      _
    $region11: #{tpu_custom_call.1} parent=1 // pred_check_branch
      %48 = sbr.rel (0) target = $region13
    $region12: #{tpu_custom_call.1} parent=1 // pred_region
      %s50 = ssub.s32 32, 32
      %51 = vsyncadd [#allocation4], %s50
      %s53 = sshll.u32 [#allocation3], 4
      %s54 = int_to_ptr.vmem [resolvable:$true] %s53
      %56 = dma.hbm_to_vmem [thread:$0]  %s2, 32, %s54, [#allocation4]
    $region13: #{tpu_custom_call.1} parent=1 // pred_fallthru
      _
    // Predicated region
    $region14: #{tpu_custom_call.1} parent=1 // pred_check
      _
    $region15: #{tpu_custom_call.1} parent=1 // pred_check_branch
      %58 = sbr.rel (0) target = $region17
    $region16: #{tpu_custom_call.1} parent=1 // pred_region
      %s60 = ssub.s32 16, 16
      %61 = vsyncadd [#allocation7], %s60
      %s63 = sshll.u32 [#allocation6], 4
      %s64 = int_to_ptr.vmem [resolvable:$true] %s63
      %66 = dma.hbm_to_vmem [thread:$0]  %s3, 16, %s64, [#allocation7]
    $region17: #{tpu_custom_call.1} parent=1 // pred_fallthru
      _
    // Predicated region
    $region18: #{tpu_custom_call.1} parent=1 // pred_check
      _
    $region19: #{tpu_custom_call.1} parent=1 // pred_check_branch
      %68 = sbr.rel (0) target = $region21
    $region20: #{tpu_custom_call.1} parent=1 // pred_region
      %s70 = ssub.s32 16, 16
      %71 = vsyncadd [#allocation7], %s70
      %s73 = sshll.u32 [#allocation8], 4
      %s74 = int_to_ptr.vmem [resolvable:$true] %s73
      %76 = dma.hbm_to_vmem [thread:$0]  %s4, 16, %s74, [#allocation7]
    $region21: #{tpu_custom_call.1} parent=1 // pred_fallthru
      _
    // Predicated region
    $region22: #{tpu_custom_call.1} parent=1 // pred_check
      _
    $region23: #{tpu_custom_call.1} parent=1 // pred_check_branch
      %78 = sbr.rel (0) target = $region25
    $region24: #{tpu_custom_call.1} parent=1 // pred_region
      %s80 = ssub.s32 12288, 12288
      %81 = vsyncadd [#allocation10], %s80
      %s82 = sshll.u32 [#allocation9], 4
      %s83 = int_to_ptr.vmem [resolvable:$true] %s82
      %88 = dma.hbm_to_vmem [thread:$0]  %s5, 12288, %s83, [#allocation10], 384, 384, 24
    $region25: #{tpu_custom_call.1} parent=1 // pred_fallthru
      _
    // Predicated region
    $region26: #{tpu_custom_call.1} parent=1 // pred_check
      _
    $region27: #{tpu_custom_call.1} parent=1 // pred_check_branch
      %90 = sbr.rel (0) target = $region29
    $region28: #{tpu_custom_call.1} parent=1 // pred_region
      %s92 = ssub.s32 96, 96
      %93 = vsyncadd [#allocation10], %s92
      %s94 = sshll.u32 [#allocation11], 4
      %s95 = int_to_ptr.vmem [resolvable:$true] %s94
      %100 = dma.hbm_to_vmem [thread:$0]  %s6, 96, %s95, [#allocation10], 48, 48, 3
    $region29: #{tpu_custom_call.1} parent=1 // pred_fallthru
      _
    // Predicated region
    $region30: #{tpu_custom_call.1} parent=1 // pred_check
      _
    $region31: #{tpu_custom_call.1} parent=1 // pred_check_branch
      %102 = sbr.rel (0) target = $region33
    $region32: #{tpu_custom_call.1} parent=1 // pred_region
      %s104 = ssub.s32 4096, 4096
      %105 = vsyncadd [#allocation13], %s104
      %s106 = sshll.u32 [#allocation12], 4
      %s107 = int_to_ptr.vmem [resolvable:$true] %s106
      %112 = dma.hbm_to_vmem [thread:$0]  %s7, 4096, %s107, [#allocation13], 128, 128, 8
    $region33: #{tpu_custom_call.1} parent=1 // pred_fallthru
      _
    // Predicated region
    $region34: #{tpu_custom_call.1} parent=1 // pred_check
      _
    $region35: #{tpu_custom_call.1} parent=1 // pred_check_branch
      %114 = sbr.rel (0) target = $region37
    $region36: #{tpu_custom_call.1} parent=1 // pred_region
      %s116 = ssub.s32 32, 32
      %117 = vsyncadd [#allocation13], %s116
      %s118 = sshll.u32 [#allocation14], 4
      %s119 = int_to_ptr.vmem [resolvable:$true] %s118
      %124 = dma.hbm_to_vmem [thread:$0]  %s8, 32, %s119, [#allocation13], 16, 16, 1
    $region37: #{tpu_custom_call.1} parent=1 // pred_fallthru
      _
    // Predicated region
    $region38: #{tpu_custom_call.1} parent=1 // pred_check
      _
    $region39: #{tpu_custom_call.1} parent=1 // pred_check_branch
      %126 = sbr.rel (0) target = $region41
    $region40: #{tpu_custom_call.1} parent=1 // pred_region
      %s128 = ssub.s32 32, 32
      %129 = vsyncadd [#allocation16], %s128
      %s130 = sshll.u32 [#allocation15], 4
      %s131 = int_to_ptr.vmem [resolvable:$true] %s130
      %136 = dma.hbm_to_vmem [thread:$0]  %s9, 32, %s131, [#allocation16], 16, 16, 1
    $region41: #{tpu_custom_call.1} parent=1 // pred_fallthru
      _
    // Predicated region
    $region42: #{tpu_custom_call.1} parent=1 // pred_check
      _
    $region43: #{tpu_custom_call.1} parent=1 // pred_check_branch
      %138 = sbr.rel (0) target = $region45
    $region44: #{tpu_custom_call.1} parent=1 // pred_region
      %s140 = ssub.s32 32, 32
      %141 = vsyncadd [#allocation16], %s140
      %s142 = sshll.u32 [#allocation17], 4
      %s143 = int_to_ptr.vmem [resolvable:$true] %s142
      %148 = dma.hbm_to_vmem [thread:$0]  %s10, 32, %s143, [#allocation16], 16, 16, 1
    $region45: #{tpu_custom_call.1} parent=1 // pred_fallthru
      _
    // Predicated region
    $region46: #{tpu_custom_call.1} parent=1 // pred_check
      _
    $region47: #{tpu_custom_call.1} parent=1 // pred_check_branch
      %150 = sbr.rel (0) target = $region49
    $region48: #{tpu_custom_call.1} parent=1 // pred_region
      %s152 = ssub.s32 8192, 8192
      %153 = vsyncadd [#allocation19], %s152
      %s154 = sshll.u32 [#allocation18], 4
      %s155 = int_to_ptr.vmem [resolvable:$true] %s154
      %160 = dma.hbm_to_vmem [thread:$0]  %s11, 8192, %s155, [#allocation19], 256, 256, 16
    $region49: #{tpu_custom_call.1} parent=1 // pred_fallthru
      _
    // Predicated region
    $region50: #{tpu_custom_call.1} parent=1 // pred_check
      _
    $region51: #{tpu_custom_call.1} parent=1 // pred_check_branch
      %162 = sbr.rel (0) target = $region53
    $region52: #{tpu_custom_call.1} parent=1 // pred_region
      %s164 = ssub.s32 64, 64
      %165 = vsyncadd [#allocation19], %s164
      %s166 = sshll.u32 [#allocation20], 4
      %s167 = int_to_ptr.vmem [resolvable:$true] %s166
      %172 = dma.hbm_to_vmem [thread:$0]  %s12, 64, %s167, [#allocation19], 32, 32, 2
    $region53: #{tpu_custom_call.1} parent=1 // pred_fallthru
      _
    // Predicated region
    $region54: #{tpu_custom_call.1} parent=1 // pred_check
      _
    $region55: #{tpu_custom_call.1} parent=1 // pred_check_branch
      %174 = sbr.rel (0) target = $region57
    $region56: #{tpu_custom_call.1} parent=1 // pred_region
      %s176 = ssub.s32 8192, 8192
      %177 = vsyncadd [#allocation22], %s176
      %s178 = sshll.u32 [#allocation21], 4
      %s179 = int_to_ptr.vmem [resolvable:$true] %s178
      %184 = dma.hbm_to_vmem [thread:$0]  %s13, 8192, %s179, [#allocation22], 128, 128, 8
    $region57: #{tpu_custom_call.1} parent=1 // pred_fallthru
      _
    // Predicated region
    $region58: #{tpu_custom_call.1} parent=1 // pred_check
      _
    $region59: #{tpu_custom_call.1} parent=1 // pred_check_branch
      %186 = sbr.rel (0) target = $region61
    $region60: #{tpu_custom_call.1} parent=1 // pred_region
      %s188 = ssub.s32 32, 32
      %189 = vsyncadd [#allocation22], %s188
      %s190 = sshll.u32 [#allocation23], 4
      %s191 = int_to_ptr.vmem [resolvable:$true] %s190
      %196 = dma.hbm_to_vmem [thread:$0]  %s14, 32, %s191, [#allocation22], 16, 16, 1
    $region61: #{tpu_custom_call.1} parent=1 // pred_fallthru
      _
    // Predicated region
    $region62: #{tpu_custom_call.1} parent=1 // pred_check
      _
    $region63: #{tpu_custom_call.1} parent=1 // pred_check_branch
      %198 = sbr.rel (0) target = $region65
    $region64: #{tpu_custom_call.1} parent=1 // pred_region
      %s200 = ssub.s32 32, 32
      %201 = vsyncadd [#allocation25], %s200
      %s202 = sshll.u32 [#allocation24], 4
      %s203 = int_to_ptr.vmem [resolvable:$true] %s202
      %208 = dma.hbm_to_vmem [thread:$0]  %s15, 32, %s203, [#allocation25], 16, 16, 1
    $region65: #{tpu_custom_call.1} parent=1 // pred_fallthru
      _
    // Predicated region
    $region66: #{tpu_custom_call.1} parent=1 // pred_check
      _
    $region67: #{tpu_custom_call.1} parent=1 // pred_check_branch
      %210 = sbr.rel (0) target = $region69
    $region68: #{tpu_custom_call.1} parent=1 // pred_region
      %s212 = ssub.s32 32, 32
      %213 = vsyncadd [#allocation25], %s212
      %s214 = sshll.u32 [#allocation26], 4
      %s215 = int_to_ptr.vmem [resolvable:$true] %s214
      %220 = dma.hbm_to_vmem [thread:$0]  %s16, 32, %s215, [#allocation25], 16, 16, 1
    $region69: #{tpu_custom_call.1} parent=1 // pred_fallthru
      _
    // Predicated region
    $region70: #{tpu_custom_call.1} parent=1 // pred_check
      _
    $region71: #{tpu_custom_call.1} parent=1 // pred_check_branch
      %222 = sbr.rel (0) target = $region73
    $region72: #{tpu_custom_call.1} parent=1 // pred_region
      _
    $region73: #{tpu_custom_call.1} parent=1 // pred_fallthru
      _
    // Predicated region
    $region74: #{tpu_custom_call.1} parent=1 // pred_check
      _
    $region75: #{tpu_custom_call.1} parent=1 // pred_check_branch
      %224 = sbr.rel (0) target = $region77
    $region76: #{tpu_custom_call.1} parent=1 // pred_region
      %s226 = ssub.s32 16, 16
      %227 = vsyncadd [#allocation28], %s226
      %s229 = sshll.u32 [#allocation27], 4
      %s230 = int_to_ptr.vmem [resolvable:$true] %s229
      %232 = dma.hbm_to_vmem [thread:$0]  %s18, 16, %s230, [#allocation28]
    $region77: #{tpu_custom_call.1} parent=1 // pred_fallthru
      _
    // Predicated region
    $region78: #{tpu_custom_call.1} parent=1 // pred_check
      _
    $region79: #{tpu_custom_call.1} parent=1 // pred_check_branch
      %234 = sbr.rel (0) target = $region81
    $region80: #{tpu_custom_call.1} parent=1 // pred_region
      %s236 = ssub.s32 4096, 4096
      %237 = vsyncadd [#allocation28], %s236
      %s238 = sshll.u32 [#allocation29], 4
      %s239 = int_to_ptr.vmem [resolvable:$true] %s238
      %244 = dma.hbm_to_vmem [thread:$0]  %s19, 4096, %s239, [#allocation28], 256, 256, 16
    $region81: #{tpu_custom_call.1} parent=1 // pred_fallthru
      _
    // Predicated region
    $region82: #{tpu_custom_call.1} parent=1 // pred_check
      _
    $region83: #{tpu_custom_call.1} parent=1 // pred_check_branch
      %246 = sbr.rel (0) target = $region85
    $region84: #{tpu_custom_call.1} parent=1 // pred_region
      _
    $region85: #{tpu_custom_call.1} parent=1 // pred_fallthru
      _
    // Predicated region
    $region86: #{tpu_custom_call.1} parent=1 // pred_check
      _
    $region87: #{tpu_custom_call.1} parent=1 // pred_check_branch
      %248 = sbr.rel (0) target = $region89
    $region88: #{tpu_custom_call.1} parent=1 // pred_region
      %s250 = ssub.s32 4096, 4096
      %251 = vsyncadd [#allocation31], %s250
      %s252 = sshll.u32 [#allocation30], 4
      %s253 = int_to_ptr.vmem [resolvable:$true] %s252
      %258 = dma.hbm_to_vmem [thread:$0]  %s21, 4096, %s253, [#allocation31], 128, 128, 8
    $region89: #{tpu_custom_call.1} parent=1 // pred_fallthru
      _
    // Predicated region
    $region90: #{tpu_custom_call.1} parent=1 // pred_check
      _
    $region91: #{tpu_custom_call.1} parent=1 // pred_check_branch
      %260 = sbr.rel (0) target = $region93
    $region92: #{tpu_custom_call.1} parent=1 // pred_region
      _
    $region93: #{tpu_custom_call.1} parent=1 // pred_fallthru
      _
    // Predicated region
    $region94: #{tpu_custom_call.1} parent=1 // pred_check
      _
    $region95: #{tpu_custom_call.1} parent=1 // pred_check_branch
      %262 = sbr.rel (0) target = $region97
    $region96: #{tpu_custom_call.1} parent=1 // pred_region
      %s264 = ssub.s32 2048, 2048
      %265 = vsyncadd [#allocation31], %s264
      %s266 = sshll.u32 [#allocation32], 4
      %s267 = int_to_ptr.vmem [resolvable:$true] %s266
      %272 = dma.hbm_to_vmem [thread:$0]  %s23, 2048, %s267, [#allocation31], 128, 128, 8
    $region97: #{tpu_custom_call.1} parent=1 // pred_fallthru
      _
    // Predicated region
    $region98: #{tpu_custom_call.1} parent=1 // pred_check
      _
    $region99: #{tpu_custom_call.1} parent=1 // pred_check_branch
      %274 = sbr.rel (0) target = $region101
    $region100: #{tpu_custom_call.1} parent=1 // pred_region
      _
    $region101: #{tpu_custom_call.1} parent=1 // pred_fallthru
      _
    // Predicated region
    $region102: #{tpu_custom_call.1} parent=1 // pred_check
      _
    $region103: #{tpu_custom_call.1} parent=1 // pred_check_branch
      %276 = sbr.rel (0) target = $region105
    $region104: #{tpu_custom_call.1} parent=1 // pred_region
      _
    $region105: #{tpu_custom_call.1} parent=1 // pred_fallthru
      _
    // Predicated region
    $region106: #{tpu_custom_call.1} parent=1 // pred_check
      _
    $region107: #{tpu_custom_call.1} parent=1 // pred_check_branch
      %278 = sbr.rel (0) target = $region109
    $region108: #{tpu_custom_call.1} parent=1 // pred_region
      _
    $region109: #{tpu_custom_call.1} parent=1 // pred_fallthru
      _
    // Predicated region
    $region110: #{tpu_custom_call.1} parent=1 // pred_check
      _
    $region111: #{tpu_custom_call.1} parent=1 // pred_check_branch
      %280 = sbr.rel (0) target = $region113
    $region112: #{tpu_custom_call.1} parent=1 // pred_region
      %281 = dma.done [#allocation4], 32
    $region113: #{tpu_custom_call.1} parent=1 // pred_fallthru
      _
    // Predicated region
    $region114: #{tpu_custom_call.1} parent=1 // pred_check
      _
    $region115: #{tpu_custom_call.1} parent=1 // pred_check_branch
      %283 = sbr.rel (0) target = $region117
    $region116: #{tpu_custom_call.1} parent=1 // pred_region
      %284 = dma.done [#allocation7], 16
    $region117: #{tpu_custom_call.1} parent=1 // pred_fallthru
      _
    // Predicated region
    $region118: #{tpu_custom_call.1} parent=1 // pred_check
      _
    $region119: #{tpu_custom_call.1} parent=1 // pred_check_branch
      %286 = sbr.rel (0) target = $region121
    $region120: #{tpu_custom_call.1} parent=1 // pred_region
      %287 = dma.done [#allocation7], 16
    $region121: #{tpu_custom_call.1} parent=1 // pred_fallthru
      _
    // Predicated region
    $region122: #{tpu_custom_call.1} parent=1 // pred_check
      _
    $region123: #{tpu_custom_call.1} parent=1 // pred_check_branch
      %289 = sbr.rel (0) target = $region125
    $region124: #{tpu_custom_call.1} parent=1 // pred_region
      %290 = dma.done [#allocation10], 12288
    $region125: #{tpu_custom_call.1} parent=1 // pred_fallthru
      _
    // Predicated region
    $region126: #{tpu_custom_call.1} parent=1 // pred_check
      _
    $region127: #{tpu_custom_call.1} parent=1 // pred_check_branch
      %292 = sbr.rel (0) target = $region129
    $region128: #{tpu_custom_call.1} parent=1 // pred_region
      %293 = dma.done [#allocation10], 96
    $region129: #{tpu_custom_call.1} parent=1 // pred_fallthru
      _
    // Predicated region
    $region130: #{tpu_custom_call.1} parent=1 // pred_check
      _
    $region131: #{tpu_custom_call.1} parent=1 // pred_check_branch
      %295 = sbr.rel (0) target = $region133
    $region132: #{tpu_custom_call.1} parent=1 // pred_region
      %296 = dma.done [#allocation13], 4096
    $region133: #{tpu_custom_call.1} parent=1 // pred_fallthru
      _
    // Predicated region
    $region134: #{tpu_custom_call.1} parent=1 // pred_check
      _
    $region135: #{tpu_custom_call.1} parent=1 // pred_check_branch
      %298 = sbr.rel (0) target = $region137
    $region136: #{tpu_custom_call.1} parent=1 // pred_region
      %299 = dma.done [#allocation13], 32
    $region137: #{tpu_custom_call.1} parent=1 // pred_fallthru
      _
    // Predicated region
    $region138: #{tpu_custom_call.1} parent=1 // pred_check
      _
    $region139: #{tpu_custom_call.1} parent=1 // pred_check_branch
      %301 = sbr.rel (0) target = $region141
    $region140: #{tpu_custom_call.1} parent=1 // pred_region
      %302 = dma.done [#allocation16], 32
    $region141: #{tpu_custom_call.1} parent=1 // pred_fallthru
      _
    // Predicated region
    $region142: #{tpu_custom_call.1} parent=1 // pred_check
      _
    $region143: #{tpu_custom_call.1} parent=1 // pred_check_branch
      %304 = sbr.rel (0) target = $region145
    $region144: #{tpu_custom_call.1} parent=1 // pred_region
      %305 = dma.done [#allocation16], 32
    $region145: #{tpu_custom_call.1} parent=1 // pred_fallthru
      _
    // Predicated region
    $region146: #{tpu_custom_call.1} parent=1 // pred_check
      _
    $region147: #{tpu_custom_call.1} parent=1 // pred_check_branch
      %307 = sbr.rel (0) target = $region149
    $region148: #{tpu_custom_call.1} parent=1 // pred_region
      %308 = dma.done [#allocation19], 8192
    $region149: #{tpu_custom_call.1} parent=1 // pred_fallthru
      _
    // Predicated region
    $region150: #{tpu_custom_call.1} parent=1 // pred_check
      _
    $region151: #{tpu_custom_call.1} parent=1 // pred_check_branch
      %310 = sbr.rel (0) target = $region153
    $region152: #{tpu_custom_call.1} parent=1 // pred_region
      %311 = dma.done [#allocation19], 64
    $region153: #{tpu_custom_call.1} parent=1 // pred_fallthru
      _
    // Predicated region
    $region154: #{tpu_custom_call.1} parent=1 // pred_check
      _
    $region155: #{tpu_custom_call.1} parent=1 // pred_check_branch
      %313 = sbr.rel (0) target = $region157
    $region156: #{tpu_custom_call.1} parent=1 // pred_region
      %314 = dma.done [#allocation22], 8192
    $region157: #{tpu_custom_call.1} parent=1 // pred_fallthru
      _
    // Predicated region
    $region158: #{tpu_custom_call.1} parent=1 // pred_check
      _
    $region159: #{tpu_custom_call.1} parent=1 // pred_check_branch
      %316 = sbr.rel (0) target = $region161
    $region160: #{tpu_custom_call.1} parent=1 // pred_region
      %317 = dma.done [#allocation22], 32
    $region161: #{tpu_custom_call.1} parent=1 // pred_fallthru
      _
    // Predicated region
    $region162: #{tpu_custom_call.1} parent=1 // pred_check
      _
    $region163: #{tpu_custom_call.1} parent=1 // pred_check_branch
      %319 = sbr.rel (0) target = $region165
    $region164: #{tpu_custom_call.1} parent=1 // pred_region
      %320 = dma.done [#allocation25], 32
    $region165: #{tpu_custom_call.1} parent=1 // pred_fallthru
      _
    // Predicated region
    $region166: #{tpu_custom_call.1} parent=1 // pred_check
      _
    $region167: #{tpu_custom_call.1} parent=1 // pred_check_branch
      %322 = sbr.rel (0) target = $region169
    $region168: #{tpu_custom_call.1} parent=1 // pred_region
      %323 = dma.done [#allocation25], 32
    $region169: #{tpu_custom_call.1} parent=1 // pred_fallthru
      _
    // Predicated region
    $region170: #{tpu_custom_call.1} parent=1 // pred_check
      _
    $region171: #{tpu_custom_call.1} parent=1 // pred_check_branch
      %325 = sbr.rel (0) target = $region173
    $region172: #{tpu_custom_call.1} parent=1 // pred_region
      %326 = dma.done [#allocation28], 16
    $region173: #{tpu_custom_call.1} parent=1 // pred_fallthru
      _
    // Predicated region
    $region174: #{tpu_custom_call.1} parent=1 // pred_check
      _
    $region175: #{tpu_custom_call.1} parent=1 // pred_check_branch
      %328 = sbr.rel (0) target = $region177
    $region176: #{tpu_custom_call.1} parent=1 // pred_region
      %329 = dma.done [#allocation28], 4096
    $region177: #{tpu_custom_call.1} parent=1 // pred_fallthru
      _
    // Predicated region
    $region178: #{tpu_custom_call.1} parent=1 // pred_check
      _
    $region179: #{tpu_custom_call.1} parent=1 // pred_check_branch
      %331 = sbr.rel (0) target = $region181
    $region180: #{tpu_custom_call.1} parent=1 // pred_region
      %332 = dma.done [#allocation31], 4096
    $region181: #{tpu_custom_call.1} parent=1 // pred_fallthru
      _
    // Predicated region
    $region182: #{tpu_custom_call.1} parent=1 // pred_check
      _
    $region183: #{tpu_custom_call.1} parent=1 // pred_check_branch
      %334 = sbr.rel (0) target = $region185
    $region184: #{tpu_custom_call.1} parent=1 // pred_region
      %335 = dma.done [#allocation31], 2048
    $region185: #{tpu_custom_call.1} parent=1 // pred_fallthru
      _
    %v336 = vld [vmem:[%s0] sm:$0xff]
    %v337 = vld [vmem:[%s0 + $0x8] sm:$0xff]
    %v338 = vld [vmem:[#allocation6] sm:$0x1]
    %v339 = vld [vmem:[#allocation8] sm:$0x1]
    %340 = vadd.xlane.f32.xlu0 %v336
    %v341 = vpop.xlane.xlu0 %340
    %342 = vadd.xlane.f32.xlu0 %v337
    %v343 = vpop.xlane.xlu0 %342
    %v344 = vrcp.pop 128.0
    %v345 = vmul.f32 %v341, %v344
    %v346 = vmul.f32 %v343, %v344
    %v347 = vsub.f32 %v336, %v345
    %v348 = vsub.f32 %v337, %v346
    %v349 = vmul.f32 %v347, %v347
    %v350 = vmul.f32 %v348, %v348
    %351 = vadd.xlane.f32.xlu0 %v349
    %v352 = vpop.xlane.xlu0 %351
    %353 = vadd.xlane.f32.xlu0 %v350
    %v354 = vpop.xlane.xlu0 %353
    %v355 = vmul.f32 %v352, %v344
    %v356 = vmul.f32 %v354, %v344
    %v357 = vadd.f32 %v355, 1e-12
    %v358 = vadd.f32 %v356, 1e-12
    %v359 = vrsqrt.pop %v357
    %v360 = vrsqrt.pop %v358
    %v361 = vmul.f32 %v347, %v359
    %v362 = vmul.f32 %v348, %v360
    %v364 = vlaneseq
    %v365 = vshrl.u32 %v364, 7
    %v366 = vsub.s32 0, %v365
    %v367 = vrot.slane %v338, %v366
    %v369 = vmul.f32 %v361, %v367
    %v370 = vmul.f32 %v362, %v367
    %v372 = vlaneseq
    %v373 = vshrl.u32 %v372, 7
    %v374 = vsub.s32 0, %v373
    %v375 = vrot.slane %v339, %v374
    %v377 = vadd.f32 %v369, %v375
    %v378 = vadd.f32 %v370, %v375
    %v379 = vld [vmem:[%s1] sm:$0xff]
    %v380 = vld [vmem:[%s1 + $0x8] sm:$0xff]
    %v381 = vld [vmem:[#allocation9] sm:$0xff]
    %v382 = vld [vmem:[#allocation9 + $0x8] sm:$0xff]
    %v383 = vld [vmem:[#allocation9 + $0x10] sm:$0xff]
    %v384 = vld [vmem:[#allocation9 + $0x18] sm:$0xff]
    %v385 = vld [vmem:[#allocation9 + $0x20] sm:$0xff]
    %v386 = vld [vmem:[#allocation9 + $0x28] sm:$0xff]
    %v387 = vld [vmem:[#allocation9 + $0x30] sm:$0xff]
    %v388 = vld [vmem:[#allocation9 + $0x38] sm:$0xff]
    %v389 = vld [vmem:[#allocation9 + $0x40] sm:$0xff]
    %v390 = vld [vmem:[#allocation9 + $0x48] sm:$0xff]
    %v391 = vld [vmem:[#allocation9 + $0x50] sm:$0xff]
    %v392 = vld [vmem:[#allocation9 + $0x58] sm:$0xff]
    %v393 = vld [vmem:[#allocation9 + $0x60] sm:$0xff]
    %v394 = vld [vmem:[#allocation9 + $0x68] sm:$0xff]
    %v395 = vld [vmem:[#allocation9 + $0x70] sm:$0xff]
    %v396 = vld [vmem:[#allocation9 + $0x78] sm:$0xff]
    %v397 = vld [vmem:[#allocation9 + $0x80] sm:$0xff]
    %v398 = vld [vmem:[#allocation9 + $0x88] sm:$0xff]
    %v399 = vld [vmem:[#allocation9 + $0x90] sm:$0xff]
    %v400 = vld [vmem:[#allocation9 + $0x98] sm:$0xff]
    %v401 = vld [vmem:[#allocation9 + $0xa0] sm:$0xff]
    %v402 = vld [vmem:[#allocation9 + $0xa8] sm:$0xff]
    %v403 = vld [vmem:[#allocation9 + $0xb0] sm:$0xff]
    %v404 = vld [vmem:[#allocation9 + $0xb8] sm:$0xff]
    %v405 = vld [vmem:[#allocation9 + $0xc0] sm:$0xff]
    %v406 = vld [vmem:[#allocation9 + $0xc8] sm:$0xff]
    %v407 = vld [vmem:[#allocation9 + $0xd0] sm:$0xff]
    %v408 = vld [vmem:[#allocation9 + $0xd8] sm:$0xff]
    %v409 = vld [vmem:[#allocation9 + $0xe0] sm:$0xff]
    %v410 = vld [vmem:[#allocation9 + $0xe8] sm:$0xff]
    %v411 = vld [vmem:[#allocation9 + $0xf0] sm:$0xff]
    %v412 = vld [vmem:[#allocation9 + $0xf8] sm:$0xff]
    %v413 = vld [vmem:[#allocation9 + $0x100] sm:$0xff]
    %v414 = vld [vmem:[#allocation9 + $0x108] sm:$0xff]
    %v415 = vld [vmem:[#allocation9 + $0x110] sm:$0xff]
    %v416 = vld [vmem:[#allocation9 + $0x118] sm:$0xff]
    %v417 = vld [vmem:[#allocation9 + $0x120] sm:$0xff]
    %v418 = vld [vmem:[#allocation9 + $0x128] sm:$0xff]
    %v419 = vld [vmem:[#allocation9 + $0x130] sm:$0xff]
    %v420 = vld [vmem:[#allocation9 + $0x138] sm:$0xff]
    %v421 = vld [vmem:[#allocation9 + $0x140] sm:$0xff]
    %v422 = vld [vmem:[#allocation9 + $0x148] sm:$0xff]
    %v423 = vld [vmem:[#allocation9 + $0x150] sm:$0xff]
    %v424 = vld [vmem:[#allocation9 + $0x158] sm:$0xff]
    %v425 = vld [vmem:[#allocation9 + $0x160] sm:$0xff]
    %v426 = vld [vmem:[#allocation9 + $0x168] sm:$0xff]
    %v427 = vld [vmem:[#allocation9 + $0x170] sm:$0xff]
    %v428 = vld [vmem:[#allocation9 + $0x178] sm:$0xff]
    %v429 = vld [vmem:[#allocation11] sm:$0x7]
    %v431 = vlaneseq
    %v432 = vshrl.u32 %v431, 7
    %v433 = vsub.s32 0, %v432
    %v434 = vrot.slane %v429, %v433
    %v435 = vlaneseq
    %v436 = vshrl.u32 %v435, 7
    %v437 = vsub.s32 1, %v436
    %v438 = vrot.slane %v429, %v437
    %v439 = vlaneseq
    %v440 = vshrl.u32 %v439, 7
    %v441 = vsub.s32 2, %v440
    %v442 = vrot.slane %v429, %v441
    %446 = vmatprep.subr.mxu0 %v427
    %447 = vmatpush1.msra.mxu0 %v426
    %448 = vmatprep.subr.mxu0 %v424
    %449 = vmatpush1.msra.mxu0 %v423
    %450 = vmatprep.subr.mxu0 %v421
    %451 = vmatpush1.msra.mxu0 %v420
    %452 = vmatprep.subr.mxu0 %v418
    %453 = vmatpush1.msra.mxu0 %v417
    %454 = vmatprep.subr.mxu0 %v415
    %455 = vmatpush1.msra.mxu0 %v414
    %456 = vmatprep.subr.mxu0 %v412
    %457 = vmatpush1.msra.mxu0 %v411
    %458 = vmatprep.subr.mxu0 %v409
    %459 = vmatpush1.msra.mxu0 %v408
    %460 = vmatprep.subr.mxu0 %v406
    %461 = vmatpush1.msra.mxu0 %v405
    %462 = vmatprep.subr.mxu0 %v403
    %463 = vmatpush1.msra.mxu0 %v402
    %464 = vmatprep.subr.mxu0 %v400
    %465 = vmatpush1.msra.mxu0 %v399
    %466 = vmatprep.subr.mxu0 %v397
    %467 = vmatpush1.msra.mxu0 %v396
    %468 = vmatprep.subr.mxu0 %v394
    %469 = vmatpush1.msra.mxu0 %v393
    %470 = vmatprep.subr.mxu0 %v391
    %471 = vmatpush1.msra.mxu0 %v390
    %472 = vmatprep.subr.mxu0 %v388
    %473 = vmatpush1.msra.mxu0 %v387
    %474 = vmatprep.subr.mxu0 %v385
    %475 = vmatpush1.msra.mxu0 %v384
    %476 = vmatprep.subr.mxu0 %v382
    %477 = vmatpush1.msra.mxu0 %v381
    %478 = vmatprep.subr.mxu0 0.0
    %479 = vmatpush2.msra.mxu0 0.0
    %480 = vmatprep.subr.mxu0 0.0
    %481 = vmatpush2.msra.mxu0 0.0
    %482 = vmatprep.subr.mxu0 0.0
    %483 = vmatpush2.msra.mxu0 0.0
    %484 = vmatprep.subr.mxu0 0.0
    %485 = vmatpush2.msra.mxu0 0.0
    %486 = vmatprep.subr.mxu0 0.0
    %487 = vmatpush2.msra.mxu0 0.0
    %488 = vmatprep.subr.mxu0 0.0
    %489 = vmatpush2.msra.mxu0 0.0
    %490 = vmatprep.subr.mxu0 0.0
    %491 = vmatpush2.msra.mxu0 0.0
    %492 = vmatprep.subr.mxu0 0.0
    %493 = vmatpush2.msra.mxu0 0.0
    %494 = vmatprep.subr.mxu0 0.0
    %495 = vmatpush2.msra.mxu0 0.0
    %496 = vmatprep.subr.mxu0 0.0
    %497 = vmatpush2.msra.mxu0 0.0
    %498 = vmatprep.subr.mxu0 0.0
    %499 = vmatpush2.msra.mxu0 0.0
    %500 = vmatprep.subr.mxu0 0.0
    %501 = vmatpush2.msra.mxu0 0.0
    %502 = vmatprep.subr.mxu0 0.0
    %503 = vmatpush2.msra.mxu0 0.0
    %504 = vmatprep.subr.mxu0 0.0
    %505 = vmatpush2.msra.mxu0 0.0
    %506 = vmatprep.subr.mxu0 0.0
    %507 = vmatpush2.msra.mxu0 0.0
    %508 = vmatprep.subr.mxu0 0.0
    %509 = vmatpush2.msra.mxu0 0.0
    %510 = vmatprep.mubr.f32.mxu0 0.0
    %511 = vmatmul.mubr.f32.gmra.mxu0 %v377
    %v512 = vpop.f32.mrf.mxu0
    %v513 = vadd.f32 %v434, %v512
    %v514 = vpop.f32.mrf.mxu0
    %v515 = vadd.f32 %v438, %v514
    %516 = vmatprep.mubr.f32.mxu0 0.0
    %517 = vmatmul.mubr.f32.gmra.mxu0 %v378
    %v518 = vpop.f32.mrf.mxu0
    %v519 = vadd.f32 %v434, %v518
    %v520 = vpop.f32.mrf.mxu0
    %v521 = vadd.f32 %v438, %v520
    %522 = vdwg.mxu0
    %523 = vmatprep.subr.mxu0 0.0
    %524 = vmatpush1.msra.mxu0 %v428
    %525 = vmatprep.subr.mxu0 0.0
    %526 = vmatpush1.msra.mxu0 %v425
    %527 = vmatprep.subr.mxu0 0.0
    %528 = vmatpush1.msra.mxu0 %v422
    %529 = vmatprep.subr.mxu0 0.0
    %530 = vmatpush1.msra.mxu0 %v419
    %531 = vmatprep.subr.mxu0 0.0
    %532 = vmatpush1.msra.mxu0 %v416
    %533 = vmatprep.subr.mxu0 0.0
    %534 = vmatpush1.msra.mxu0 %v413
    %535 = vmatprep.subr.mxu0 0.0
    %536 = vmatpush1.msra.mxu0 %v410
    %537 = vmatprep.subr.mxu0 0.0
    %538 = vmatpush1.msra.mxu0 %v407
    %539 = vmatprep.subr.mxu0 0.0
    %540 = vmatpush1.msra.mxu0 %v404
    %541 = vmatprep.subr.mxu0 0.0
    %542 = vmatpush1.msra.mxu0 %v401
    %543 = vmatprep.subr.mxu0 0.0
    %544 = vmatpush1.msra.mxu0 %v398
    %545 = vmatprep.subr.mxu0 0.0
    %546 = vmatpush1.msra.mxu0 %v395
    %547 = vmatprep.subr.mxu0 0.0
    %548 = vmatpush1.msra.mxu0 %v392
    %549 = vmatprep.subr.mxu0 0.0
    %550 = vmatpush1.msra.mxu0 %v389
    %551 = vmatprep.subr.mxu0 0.0
    %552 = vmatpush1.msra.mxu0 %v386
    %553 = vmatprep.subr.mxu0 0.0
    %554 = vmatpush1.msra.mxu0 %v383
    %555 = vmatprep.subr.mxu0 0.0
    %556 = vmatpush2.msra.mxu0 0.0
    %557 = vmatprep.subr.mxu0 0.0
    %558 = vmatpush2.msra.mxu0 0.0
    %559 = vmatprep.subr.mxu0 0.0
    %560 = vmatpush2.msra.mxu0 0.0
    %561 = vmatprep.subr.mxu0 0.0
    %562 = vmatpush2.msra.mxu0 0.0
    %563 = vmatprep.subr.mxu0 0.0
    %564 = vmatpush2.msra.mxu0 0.0
    %565 = vmatprep.subr.mxu0 0.0
    %566 = vmatpush2.msra.mxu0 0.0
    %567 = vmatprep.subr.mxu0 0.0
    %568 = vmatpush2.msra.mxu0 0.0
    %569 = vmatprep.subr.mxu0 0.0
    %570 = vmatpush2.msra.mxu0 0.0
    %571 = vmatprep.subr.mxu0 0.0
    %572 = vmatpush2.msra.mxu0 0.0
    %573 = vmatprep.subr.mxu0 0.0
    %574 = vmatpush2.msra.mxu0 0.0
    %575 = vmatprep.subr.mxu0 0.0
    %576 = vmatpush2.msra.mxu0 0.0
    %577 = vmatprep.subr.mxu0 0.0
    %578 = vmatpush2.msra.mxu0 0.0
    %579 = vmatprep.subr.mxu0 0.0
    %580 = vmatpush2.msra.mxu0 0.0
    %581 = vmatprep.subr.mxu0 0.0
    %582 = vmatpush2.msra.mxu0 0.0
    %583 = vmatprep.subr.mxu0 0.0
    %584 = vmatpush2.msra.mxu0 0.0
    %585 = vmatprep.subr.mxu0 0.0
    %586 = vmatpush2.msra.mxu0 0.0
    %587 = vmatprep.mubr.f32.mxu0 0.0
    %588 = vmatmul.mubr.f32.gmra.mxu0 %v377
    %v589 = vpop.f32.mrf.mxu0
    %v590 = vadd.f32 %v442, %v589
    %v591 = vpop.f32.mrf.mxu0
    %592 = vmatprep.mubr.f32.mxu0 0.0
    %593 = vmatmul.mubr.f32.gmra.mxu0 %v378
    %v594 = vpop.f32.mrf.mxu0
    %v595 = vadd.f32 %v442, %v594
    %v596 = vpop.f32.mrf.mxu0
    %597 = vdwg.mxu0
    %v598 = vmul.f32 %v513, 0.17677669
    %v599 = vmul.f32 %v519, 0.17677669
    %vm600 = vcmask 261120
    %v602 = vsel %vm600, %v598, 0
    %v605 = vsel %vm600, %v599, 0
    %v608 = vsel %vm600, %v515, 0
    %v611 = vsel %vm600, %v521, 0
    %613 = vmatprep.subr.mxu0 0.0
    %614 = vmatpush1.xpose.msra.mxu0 0.0
    %615 = vmatprep.subr.mxu0 0.0
    %616 = vmatpush1.xpose.msra.mxu0 0.0
    %617 = vmatprep.subr.mxu0 0.0
    %618 = vmatpush1.xpose.msra.mxu0 0.0
    %619 = vmatprep.subr.mxu0 0.0
    %620 = vmatpush1.xpose.msra.mxu0 0.0
    %621 = vmatprep.subr.mxu0 0.0
    %622 = vmatpush1.xpose.msra.mxu0 0.0
    %623 = vmatprep.subr.mxu0 0.0
    %624 = vmatpush1.xpose.msra.mxu0 0.0
    %625 = vmatprep.subr.mxu0 0.0
    %626 = vmatpush1.xpose.msra.mxu0 0.0
    %627 = vmatprep.subr.mxu0 0.0
    %628 = vmatpush1.xpose.msra.mxu0 0.0
    %629 = vmatprep.subr.mxu0 0.0
    %630 = vmatpush1.xpose.msra.mxu0 0.0
    %631 = vmatprep.subr.mxu0 0.0
    %632 = vmatpush1.xpose.msra.mxu0 0.0
    %633 = vmatprep.subr.mxu0 0.0
    %634 = vmatpush1.xpose.msra.mxu0 0.0
    %635 = vmatprep.subr.mxu0 0.0
    %636 = vmatpush1.xpose.msra.mxu0 0.0
    %637 = vmatprep.subr.mxu0 0.0
    %638 = vmatpush1.xpose.msra.mxu0 0.0
    %639 = vmatprep.subr.mxu0 0.0
    %640 = vmatpush1.xpose.msra.mxu0 0.0
    %641 = vmatprep.subr.mxu0 0.0
    %642 = vmatpush1.xpose.msra.mxu0 %v611
    %643 = vmatprep.subr.mxu0 0.0
    %644 = vmatpush1.xpose.msra.mxu0 %v608
    %645 = vmatprep.subr.mxu0 0.0
    %646 = vmatpush2.xpose.msra.mxu0 0.0
    %647 = vmatprep.subr.mxu0 0.0
    %648 = vmatpush2.xpose.msra.mxu0 0.0
    %649 = vmatprep.subr.mxu0 0.0
    %650 = vmatpush2.xpose.msra.mxu0 0.0
    %651 = vmatprep.subr.mxu0 0.0
    %652 = vmatpush2.xpose.msra.mxu0 0.0
    %653 = vmatprep.subr.mxu0 0.0
    %654 = vmatpush2.xpose.msra.mxu0 0.0
    %655 = vmatprep.subr.mxu0 0.0
    %656 = vmatpush2.xpose.msra.mxu0 0.0
    %657 = vmatprep.subr.mxu0 0.0
    %658 = vmatpush2.xpose.msra.mxu0 0.0
    %659 = vmatprep.subr.mxu0 0.0
    %660 = vmatpush2.xpose.msra.mxu0 0.0
    %661 = vmatprep.subr.mxu0 0.0
    %662 = vmatpush2.xpose.msra.mxu0 0.0
    %663 = vmatprep.subr.mxu0 0.0
    %664 = vmatpush2.xpose.msra.mxu0 0.0
    %665 = vmatprep.subr.mxu0 0.0
    %666 = vmatpush2.xpose.msra.mxu0 0.0
    %667 = vmatprep.subr.mxu0 0.0
    %668 = vmatpush2.xpose.msra.mxu0 0.0
    %669 = vmatprep.subr.mxu0 0.0
    %670 = vmatpush2.xpose.msra.mxu0 0.0
    %671 = vmatprep.subr.mxu0 0.0
    %672 = vmatpush2.xpose.msra.mxu0 0.0
    %673 = vmatprep.subr.mxu0 0.0
    %674 = vmatpush2.xpose.msra.mxu0 0.0
    %675 = vmatprep.subr.mxu0 0.0
    %676 = vmatpush2.xpose.msra.mxu0 0.0
    %677 = vmatprep.mubr.f32.mxu0 0.0
    %678 = vmatmul.mubr.f32.gmra.mxu0 %v602
    %v679 = vpop.f32.mrf.mxu0
    %v680 = vadd.f32 %v379, %v679
    %v681 = vpop.f32.mrf.mxu0
    %682 = vmatprep.mubr.f32.mxu0 0.0
    %683 = vmatmul.mubr.f32.gmra.mxu0 %v605
    %v684 = vpop.f32.mrf.mxu0
    %v685 = vadd.f32 %v380, %v684
    %v686 = vpop.f32.mrf.mxu0
    %687 = vdwg.mxu0
    %vm688 = vcmask 130048
    %v689 = vsel %vm688, %v680, -inf
    %690 = vmax.xlane.f32.xlu0 %v689
    %v691 = vpop.xlane.xlu0 %690
    %v692 = vsel %vm688, %v685, -inf
    %693 = vmax.xlane.f32.xlu0 %v692
    %v694 = vpop.xlane.xlu0 %693
    %v695 = vsub.f32 %v680, %v691
    %v696 = vsub.f32 %v685, %v694
    %v697 = vmul.f32 %v695, 1.442695
    %v698 = vpow.pop %v697
    %v699 = vmul.f32 %v696, 1.442695
    %v700 = vpow.pop %v699
    %v701 = vsel %vm688, %v698, 0.0
    %702 = vadd.xlane.f32.xlu0 %v701
    %v703 = vpop.xlane.xlu0 %702
    %v704 = vsel %vm688, %v700, 0.0
    %705 = vadd.xlane.f32.xlu0 %v704
    %v706 = vpop.xlane.xlu0 %705
    %v707 = vrcp.pop %v703
    %v708 = vrcp.pop %v706
    %v709 = vmul.f32 %v698, %v707
    %v710 = vmul.f32 %v700, %v708
    %v712 = vsel %vm688, %v709, 0
    %v715 = vsel %vm688, %v710, 0
    %717 = vmatprep.subr.mxu0 0.0
    %718 = vmatpush1.msra.mxu0 0.0
    %719 = vmatprep.subr.mxu0 0.0
    %720 = vmatpush1.msra.mxu0 0.0
    %721 = vmatprep.subr.mxu0 0.0
    %722 = vmatpush1.msra.mxu0 0.0
    %723 = vmatprep.subr.mxu0 0.0
    %724 = vmatpush1.msra.mxu0 0.0
    %725 = vmatprep.subr.mxu0 0.0
    %726 = vmatpush1.msra.mxu0 0.0
    %727 = vmatprep.subr.mxu0 0.0
    %728 = vmatpush1.msra.mxu0 0.0
    %729 = vmatprep.subr.mxu0 0.0
    %730 = vmatpush1.msra.mxu0 0.0
    %731 = vmatprep.subr.mxu0 0.0
    %732 = vmatpush1.msra.mxu0 0.0
    %733 = vmatprep.subr.mxu0 0.0
    %734 = vmatpush1.msra.mxu0 0.0
    %735 = vmatprep.subr.mxu0 0.0
    %736 = vmatpush1.msra.mxu0 0.0
    %737 = vmatprep.subr.mxu0 0.0
    %738 = vmatpush1.msra.mxu0 0.0
    %739 = vmatprep.subr.mxu0 0.0
    %740 = vmatpush1.msra.mxu0 0.0
    %741 = vmatprep.subr.mxu0 0.0
    %742 = vmatpush1.msra.mxu0 0.0
    %743 = vmatprep.subr.mxu0 0.0
    %744 = vmatpush1.msra.mxu0 0.0
    %745 = vmatprep.subr.mxu0 0.0
    %746 = vmatpush1.msra.mxu0 %v595
    %747 = vmatprep.subr.mxu0 0.0
    %748 = vmatpush1.msra.mxu0 %v590
    %749 = vmatprep.subr.mxu0 0.0
    %750 = vmatpush2.msra.mxu0 0.0
    %751 = vmatprep.subr.mxu0 0.0
    %752 = vmatpush2.msra.mxu0 0.0
    %753 = vmatprep.subr.mxu0 0.0
    %754 = vmatpush2.msra.mxu0 0.0
    %755 = vmatprep.subr.mxu0 0.0
    %756 = vmatpush2.msra.mxu0 0.0
    %757 = vmatprep.subr.mxu0 0.0
    %758 = vmatpush2.msra.mxu0 0.0
    %759 = vmatprep.subr.mxu0 0.0
    %760 = vmatpush2.msra.mxu0 0.0
    %761 = vmatprep.subr.mxu0 0.0
    %762 = vmatpush2.msra.mxu0 0.0
    %763 = vmatprep.subr.mxu0 0.0
    %764 = vmatpush2.msra.mxu0 0.0
    %765 = vmatprep.subr.mxu0 0.0
    %766 = vmatpush2.msra.mxu0 0.0
    %767 = vmatprep.subr.mxu0 0.0
    %768 = vmatpush2.msra.mxu0 0.0
    %769 = vmatprep.subr.mxu0 0.0
    %770 = vmatpush2.msra.mxu0 0.0
    %771 = vmatprep.subr.mxu0 0.0
    %772 = vmatpush2.msra.mxu0 0.0
    %773 = vmatprep.subr.mxu0 0.0
    %774 = vmatpush2.msra.mxu0 0.0
    %775 = vmatprep.subr.mxu0 0.0
    %776 = vmatpush2.msra.mxu0 0.0
    %777 = vmatprep.subr.mxu0 0.0
    %778 = vmatpush2.msra.mxu0 0.0
    %779 = vmatprep.subr.mxu0 0.0
    %780 = vmatpush2.msra.mxu0 0.0
    %781 = vmatprep.mubr.f32.mxu0 0.0
    %782 = vmatmul.mubr.f32.gmra.mxu0 %v712
    %v783 = vpop.f32.mrf.mxu0
    %v784 = vadd.f32 0.0, %v783
    %v785 = vpop.f32.mrf.mxu0
    %786 = vmatprep.mubr.f32.mxu0 0.0
    %787 = vmatmul.mubr.f32.gmra.mxu0 %v715
    %v788 = vpop.f32.mrf.mxu0
    %v789 = vadd.f32 0.0, %v788
    %v790 = vpop.f32.mrf.mxu0
    %791 = vdwg.mxu0
    %792 = vst.msk [vmem:[#allocation2] sm:$0xff] %vm600, %v784
    %793 = vst.msk [vmem:[#allocation2 + $0x8] sm:$0xff] %vm600, %v789
    %794 = vrot.lane.b32.xlu0 %v598, 96
    %v795 = vpop.permute.xlu0 %794
    %796 = vrot.lane.b32.xlu0 %v599, 96
    %v797 = vpop.permute.xlu0 %796
    %798 = vrot.lane.b32.xlu0 %v515, 96
    %v799 = vpop.permute.xlu0 %798
    %800 = vrot.lane.b32.xlu0 %v521, 96
    %v801 = vpop.permute.xlu0 %800
    %v802 = vsel %vm600, %v795, 0
    %v804 = vsel %vm600, %v797, 0
    %v806 = vsel %vm600, %v799, 0
    %v808 = vsel %vm600, %v801, 0
    %810 = vmatprep.subr.mxu0 0.0
    %811 = vmatpush1.xpose.msra.mxu0 0.0
    %812 = vmatprep.subr.mxu0 0.0
    %813 = vmatpush1.xpose.msra.mxu0 0.0
    %814 = vmatprep.subr.mxu0 0.0
    %815 = vmatpush1.xpose.msra.mxu0 0.0
    %816 = vmatprep.subr.mxu0 0.0
    %817 = vmatpush1.xpose.msra.mxu0 0.0
    %818 = vmatprep.subr.mxu0 0.0
    %819 = vmatpush1.xpose.msra.mxu0 0.0
    %820 = vmatprep.subr.mxu0 0.0
    %821 = vmatpush1.xpose.msra.mxu0 0.0
    %822 = vmatprep.subr.mxu0 0.0
    %823 = vmatpush1.xpose.msra.mxu0 0.0
    %824 = vmatprep.subr.mxu0 0.0
    %825 = vmatpush1.xpose.msra.mxu0 0.0
    %826 = vmatprep.subr.mxu0 0.0
    %827 = vmatpush1.xpose.msra.mxu0 0.0
    %828 = vmatprep.subr.mxu0 0.0
    %829 = vmatpush1.xpose.msra.mxu0 0.0
    %830 = vmatprep.subr.mxu0 0.0
    %831 = vmatpush1.xpose.msra.mxu0 0.0
    %832 = vmatprep.subr.mxu0 0.0
    %833 = vmatpush1.xpose.msra.mxu0 0.0
    %834 = vmatprep.subr.mxu0 0.0
    %835 = vmatpush1.xpose.msra.mxu0 0.0
    %836 = vmatprep.subr.mxu0 0.0
    %837 = vmatpush1.xpose.msra.mxu0 0.0
    %838 = vmatprep.subr.mxu0 0.0
    %839 = vmatpush1.xpose.msra.mxu0 %v808
    %840 = vmatprep.subr.mxu0 0.0
    %841 = vmatpush1.xpose.msra.mxu0 %v806
    %842 = vmatprep.subr.mxu0 0.0
    %843 = vmatpush2.xpose.msra.mxu0 0.0
    %844 = vmatprep.subr.mxu0 0.0
    %845 = vmatpush2.xpose.msra.mxu0 0.0
    %846 = vmatprep.subr.mxu0 0.0
    %847 = vmatpush2.xpose.msra.mxu0 0.0
    %848 = vmatprep.subr.mxu0 0.0
    %849 = vmatpush2.xpose.msra.mxu0 0.0
    %850 = vmatprep.subr.mxu0 0.0
    %851 = vmatpush2.xpose.msra.mxu0 0.0
    %852 = vmatprep.subr.mxu0 0.0
    %853 = vmatpush2.xpose.msra.mxu0 0.0
    %854 = vmatprep.subr.mxu0 0.0
    %855 = vmatpush2.xpose.msra.mxu0 0.0
    %856 = vmatprep.subr.mxu0 0.0
    %857 = vmatpush2.xpose.msra.mxu0 0.0
    %858 = vmatprep.subr.mxu0 0.0
    %859 = vmatpush2.xpose.msra.mxu0 0.0
    %860 = vmatprep.subr.mxu0 0.0
    %861 = vmatpush2.xpose.msra.mxu0 0.0
    %862 = vmatprep.subr.mxu0 0.0
    %863 = vmatpush2.xpose.msra.mxu0 0.0
    %864 = vmatprep.subr.mxu0 0.0
    %865 = vmatpush2.xpose.msra.mxu0 0.0
    %866 = vmatprep.subr.mxu0 0.0
    %867 = vmatpush2.xpose.msra.mxu0 0.0
    %868 = vmatprep.subr.mxu0 0.0
    %869 = vmatpush2.xpose.msra.mxu0 0.0
    %870 = vmatprep.subr.mxu0 0.0
    %871 = vmatpush2.xpose.msra.mxu0 0.0
    %872 = vmatprep.subr.mxu0 0.0
    %873 = vmatpush2.xpose.msra.mxu0 0.0
    %874 = vmatprep.mubr.f32.mxu0 0.0
    %875 = vmatmul.mubr.f32.gmra.mxu0 %v802
    %v876 = vpop.f32.mrf.mxu0
    %v877 = vadd.f32 %v379, %v876
    %v878 = vpop.f32.mrf.mxu0
    %879 = vmatprep.mubr.f32.mxu0 0.0
    %880 = vmatmul.mubr.f32.gmra.mxu0 %v804
    %v881 = vpop.f32.mrf.mxu0
    %v882 = vadd.f32 %v380, %v881
    %v883 = vpop.f32.mrf.mxu0
    %884 = vdwg.mxu0
    %v885 = vsel %vm688, %v877, -inf
    %886 = vmax.xlane.f32.xlu0 %v885
    %v887 = vpop.xlane.xlu0 %886
    %v888 = vsel %vm688, %v882, -inf
    %889 = vmax.xlane.f32.xlu0 %v888
    %v890 = vpop.xlane.xlu0 %889
    %v891 = vsub.f32 %v877, %v887
    %v892 = vsub.f32 %v882, %v890
    %v893 = vmul.f32 %v891, 1.442695
    %v894 = vpow.pop %v893
    %v895 = vmul.f32 %v892, 1.442695
    %v896 = vpow.pop %v895
    %v897 = vsel %vm688, %v894, 0.0
    %898 = vadd.xlane.f32.xlu0 %v897
    %v899 = vpop.xlane.xlu0 %898
    %v900 = vsel %vm688, %v896, 0.0
    %901 = vadd.xlane.f32.xlu0 %v900
    %v902 = vpop.xlane.xlu0 %901
    %v903 = vrcp.pop %v899
    %v904 = vrcp.pop %v902
    %v905 = vmul.f32 %v894, %v903
    %v906 = vmul.f32 %v896, %v904
    %909 = vrot.lane.b32.xlu0 %v590, 96
    %v910 = vpop.permute.xlu0 %909
    %911 = vrot.lane.b32.xlu0 %v595, 96
    %v912 = vpop.permute.xlu0 %911
    %v916 = vsel %vm688, %v905, 0
    %v919 = vsel %vm688, %v906, 0
    %921 = vmatprep.subr.mxu0 0.0
    %922 = vmatpush1.msra.mxu0 0.0
    %923 = vmatprep.subr.mxu0 0.0
    %924 = vmatpush1.msra.mxu0 0.0
    %925 = vmatprep.subr.mxu0 0.0
    %926 = vmatpush1.msra.mxu0 0.0
    %927 = vmatprep.subr.mxu0 0.0
    %928 = vmatpush1.msra.mxu0 0.0
    %929 = vmatprep.subr.mxu0 0.0
    %930 = vmatpush1.msra.mxu0 0.0
    %931 = vmatprep.subr.mxu0 0.0
    %932 = vmatpush1.msra.mxu0 0.0
    %933 = vmatprep.subr.mxu0 0.0
    %934 = vmatpush1.msra.mxu0 0.0
    %935 = vmatprep.subr.mxu0 0.0
    %936 = vmatpush1.msra.mxu0 0.0
    %937 = vmatprep.subr.mxu0 0.0
    %938 = vmatpush1.msra.mxu0 0.0
    %939 = vmatprep.subr.mxu0 0.0
    %940 = vmatpush1.msra.mxu0 0.0
    %941 = vmatprep.subr.mxu0 0.0
    %942 = vmatpush1.msra.mxu0 0.0
    %943 = vmatprep.subr.mxu0 0.0
    %944 = vmatpush1.msra.mxu0 0.0
    %945 = vmatprep.subr.mxu0 0.0
    %946 = vmatpush1.msra.mxu0 0.0
    %947 = vmatprep.subr.mxu0 0.0
    %948 = vmatpush1.msra.mxu0 0.0
    %949 = vmatprep.subr.mxu0 0.0
    %950 = vmatpush1.msra.mxu0 %v912
    %951 = vmatprep.subr.mxu0 0.0
    %952 = vmatpush1.msra.mxu0 %v910
    %953 = vmatprep.subr.mxu0 0.0
    %954 = vmatpush2.msra.mxu0 0.0
    %955 = vmatprep.subr.mxu0 0.0
    %956 = vmatpush2.msra.mxu0 0.0
    %957 = vmatprep.subr.mxu0 0.0
    %958 = vmatpush2.msra.mxu0 0.0
    %959 = vmatprep.subr.mxu0 0.0
    %960 = vmatpush2.msra.mxu0 0.0
    %961 = vmatprep.subr.mxu0 0.0
    %962 = vmatpush2.msra.mxu0 0.0
    %963 = vmatprep.subr.mxu0 0.0
    %964 = vmatpush2.msra.mxu0 0.0
    %965 = vmatprep.subr.mxu0 0.0
    %966 = vmatpush2.msra.mxu0 0.0
    %967 = vmatprep.subr.mxu0 0.0
    %968 = vmatpush2.msra.mxu0 0.0
    %969 = vmatprep.subr.mxu0 0.0
    %970 = vmatpush2.msra.mxu0 0.0
    %971 = vmatprep.subr.mxu0 0.0
    %972 = vmatpush2.msra.mxu0 0.0
    %973 = vmatprep.subr.mxu0 0.0
    %974 = vmatpush2.msra.mxu0 0.0
    %975 = vmatprep.subr.mxu0 0.0
    %976 = vmatpush2.msra.mxu0 0.0
    %977 = vmatprep.subr.mxu0 0.0
    %978 = vmatpush2.msra.mxu0 0.0
    %979 = vmatprep.subr.mxu0 0.0
    %980 = vmatpush2.msra.mxu0 0.0
    %981 = vmatprep.subr.mxu0 0.0
    %982 = vmatpush2.msra.mxu0 0.0
    %983 = vmatprep.subr.mxu0 0.0
    %984 = vmatpush2.msra.mxu0 0.0
    %985 = vmatprep.mubr.f32.mxu0 0.0
    %986 = vmatmul.mubr.f32.gmra.mxu0 %v916
    %v987 = vpop.f32.mrf.mxu0
    %v988 = vadd.f32 0.0, %v987
    %v989 = vpop.f32.mrf.mxu0
    %990 = vmatprep.mubr.f32.mxu0 0.0
    %991 = vmatmul.mubr.f32.gmra.mxu0 %v919
    %v992 = vpop.f32.mrf.mxu0
    %v993 = vadd.f32 0.0, %v992
    %v994 = vpop.f32.mrf.mxu0
    %995 = vdwg.mxu0
    %998 = vrot.lane.b32.xlu0 %v988, 32
    %v999 = vpop.permute.xlu0 %998
    %1000 = vrot.lane.b32.xlu0 %v993, 32
    %v1001 = vpop.permute.xlu0 %1000
    %vm1004 = vcmask 523520
    %1005 = vst.msk [vmem:[#allocation2] sm:$0xff] %vm1004, %v999
    %1006 = vst.msk [vmem:[#allocation2 + $0x8] sm:$0xff] %vm1004, %v1001
    %1007 = vrot.lane.b32.xlu0 %v598, 64
    %v1008 = vpop.permute.xlu0 %1007
    %1009 = vrot.lane.b32.xlu0 %v599, 64
    %v1010 = vpop.permute.xlu0 %1009
    %1011 = vrot.lane.b32.xlu0 %v515, 64
    %v1012 = vpop.permute.xlu0 %1011
    %1013 = vrot.lane.b32.xlu0 %v521, 64
    %v1014 = vpop.permute.xlu0 %1013
    %v1015 = vsel %vm600, %v1008, 0
    %v1017 = vsel %vm600, %v1010, 0
    %v1019 = vsel %vm600, %v1012, 0
    %v1021 = vsel %vm600, %v1014, 0
    %1023 = vmatprep.subr.mxu0 0.0
    %1024 = vmatpush1.xpose.msra.mxu0 0.0
    %1025 = vmatprep.subr.mxu0 0.0
    %1026 = vmatpush1.xpose.msra.mxu0 0.0
    %1027 = vmatprep.subr.mxu0 0.0
    %1028 = vmatpush1.xpose.msra.mxu0 0.0
    %1029 = vmatprep.subr.mxu0 0.0
    %1030 = vmatpush1.xpose.msra.mxu0 0.0
    %1031 = vmatprep.subr.mxu0 0.0
    %1032 = vmatpush1.xpose.msra.mxu0 0.0
    %1033 = vmatprep.subr.mxu0 0.0
    %1034 = vmatpush1.xpose.msra.mxu0 0.0
    %1035 = vmatprep.subr.mxu0 0.0
    %1036 = vmatpush1.xpose.msra.mxu0 0.0
    %1037 = vmatprep.subr.mxu0 0.0
    %1038 = vmatpush1.xpose.msra.mxu0 0.0
    %1039 = vmatprep.subr.mxu0 0.0
    %1040 = vmatpush1.xpose.msra.mxu0 0.0
    %1041 = vmatprep.subr.mxu0 0.0
    %1042 = vmatpush1.xpose.msra.mxu0 0.0
    %1043 = vmatprep.subr.mxu0 0.0
    %1044 = vmatpush1.xpose.msra.mxu0 0.0
    %1045 = vmatprep.subr.mxu0 0.0
    %1046 = vmatpush1.xpose.msra.mxu0 0.0
    %1047 = vmatprep.subr.mxu0 0.0
    %1048 = vmatpush1.xpose.msra.mxu0 0.0
    %1049 = vmatprep.subr.mxu0 0.0
    %1050 = vmatpush1.xpose.msra.mxu0 0.0
    %1051 = vmatprep.subr.mxu0 0.0
    %1052 = vmatpush1.xpose.msra.mxu0 %v1021
    %1053 = vmatprep.subr.mxu0 0.0
    %1054 = vmatpush1.xpose.msra.mxu0 %v1019
    %1055 = vmatprep.subr.mxu0 0.0
    %1056 = vmatpush2.xpose.msra.mxu0 0.0
    %1057 = vmatprep.subr.mxu0 0.0
    %1058 = vmatpush2.xpose.msra.mxu0 0.0
    %1059 = vmatprep.subr.mxu0 0.0
    %1060 = vmatpush2.xpose.msra.mxu0 0.0
    %1061 = vmatprep.subr.mxu0 0.0
    %1062 = vmatpush2.xpose.msra.mxu0 0.0
    %1063 = vmatprep.subr.mxu0 0.0
    %1064 = vmatpush2.xpose.msra.mxu0 0.0
    %1065 = vmatprep.subr.mxu0 0.0
    %1066 = vmatpush2.xpose.msra.mxu0 0.0
    %1067 = vmatprep.subr.mxu0 0.0
    %1068 = vmatpush2.xpose.msra.mxu0 0.0
    %1069 = vmatprep.subr.mxu0 0.0
    %1070 = vmatpush2.xpose.msra.mxu0 0.0
    %1071 = vmatprep.subr.mxu0 0.0
    %1072 = vmatpush2.xpose.msra.mxu0 0.0
    %1073 = vmatprep.subr.mxu0 0.0
    %1074 = vmatpush2.xpose.msra.mxu0 0.0
    %1075 = vmatprep.subr.mxu0 0.0
    %1076 = vmatpush2.xpose.msra.mxu0 0.0
    %1077 = vmatprep.subr.mxu0 0.0
    %1078 = vmatpush2.xpose.msra.mxu0 0.0
    %1079 = vmatprep.subr.mxu0 0.0
    %1080 = vmatpush2.xpose.msra.mxu0 0.0
    %1081 = vmatprep.subr.mxu0 0.0
    %1082 = vmatpush2.xpose.msra.mxu0 0.0
    %1083 = vmatprep.subr.mxu0 0.0
    %1084 = vmatpush2.xpose.msra.mxu0 0.0
    %1085 = vmatprep.subr.mxu0 0.0
    %1086 = vmatpush2.xpose.msra.mxu0 0.0
    %1087 = vmatprep.mubr.f32.mxu0 0.0
    %1088 = vmatmul.mubr.f32.gmra.mxu0 %v1015
    %v1089 = vpop.f32.mrf.mxu0
    %v1090 = vadd.f32 %v379, %v1089
    %v1091 = vpop.f32.mrf.mxu0
    %1092 = vmatprep.mubr.f32.mxu0 0.0
    %1093 = vmatmul.mubr.f32.gmra.mxu0 %v1017
    %v1094 = vpop.f32.mrf.mxu0
    %v1095 = vadd.f32 %v380, %v1094
    %v1096 = vpop.f32.mrf.mxu0
    %1097 = vdwg.mxu0
    %v1098 = vsel %vm688, %v1090, -inf
    %1099 = vmax.xlane.f32.xlu0 %v1098
    %v1100 = vpop.xlane.xlu0 %1099
    %v1101 = vsel %vm688, %v1095, -inf
    %1102 = vmax.xlane.f32.xlu0 %v1101
    %v1103 = vpop.xlane.xlu0 %1102
    %v1104 = vsub.f32 %v1090, %v1100
    %v1105 = vsub.f32 %v1095, %v1103
    %v1106 = vmul.f32 %v1104, 1.442695
    %v1107 = vpow.pop %v1106
    %v1108 = vmul.f32 %v1105, 1.442695
    %v1109 = vpow.pop %v1108
    %v1110 = vsel %vm688, %v1107, 0.0
    %1111 = vadd.xlane.f32.xlu0 %v1110
    %v1112 = vpop.xlane.xlu0 %1111
    %v1113 = vsel %vm688, %v1109, 0.0
    %1114 = vadd.xlane.f32.xlu0 %v1113
    %v1115 = vpop.xlane.xlu0 %1114
    %v1116 = vrcp.pop %v1112
    %v1117 = vrcp.pop %v1115
    %v1118 = vmul.f32 %v1107, %v1116
    %v1119 = vmul.f32 %v1109, %v1117
    %1120 = vrot.lane.b32.xlu0 %v590, 64
    %v1121 = vpop.permute.xlu0 %1120
    %1122 = vrot.lane.b32.xlu0 %v595, 64
    %v1123 = vpop.permute.xlu0 %1122
    %v1127 = vsel %vm688, %v1118, 0
    %v1130 = vsel %vm688, %v1119, 0
    %1132 = vmatprep.subr.mxu0 0.0
    %1133 = vmatpush1.msra.mxu0 0.0
    %1134 = vmatprep.subr.mxu0 0.0
    %1135 = vmatpush1.msra.mxu0 0.0
    %1136 = vmatprep.subr.mxu0 0.0
    %1137 = vmatpush1.msra.mxu0 0.0
    %1138 = vmatprep.subr.mxu0 0.0
    %1139 = vmatpush1.msra.mxu0 0.0
    %1140 = vmatprep.subr.mxu0 0.0
    %1141 = vmatpush1.msra.mxu0 0.0
    %1142 = vmatprep.subr.mxu0 0.0
    %1143 = vmatpush1.msra.mxu0 0.0
    %1144 = vmatprep.subr.mxu0 0.0
    %1145 = vmatpush1.msra.mxu0 0.0
    %1146 = vmatprep.subr.mxu0 0.0
    %1147 = vmatpush1.msra.mxu0 0.0
    %1148 = vmatprep.subr.mxu0 0.0
    %1149 = vmatpush1.msra.mxu0 0.0
    %1150 = vmatprep.subr.mxu0 0.0
    %1151 = vmatpush1.msra.mxu0 0.0
    %1152 = vmatprep.subr.mxu0 0.0
    %1153 = vmatpush1.msra.mxu0 0.0
    %1154 = vmatprep.subr.mxu0 0.0
    %1155 = vmatpush1.msra.mxu0 0.0
    %1156 = vmatprep.subr.mxu0 0.0
    %1157 = vmatpush1.msra.mxu0 0.0
    %1158 = vmatprep.subr.mxu0 0.0
    %1159 = vmatpush1.msra.mxu0 0.0
    %1160 = vmatprep.subr.mxu0 0.0
    %1161 = vmatpush1.msra.mxu0 %v1123
    %1162 = vmatprep.subr.mxu0 0.0
    %1163 = vmatpush1.msra.mxu0 %v1121
    %1164 = vmatprep.subr.mxu0 0.0
    %1165 = vmatpush2.msra.mxu0 0.0
    %1166 = vmatprep.subr.mxu0 0.0
    %1167 = vmatpush2.msra.mxu0 0.0
    %1168 = vmatprep.subr.mxu0 0.0
    %1169 = vmatpush2.msra.mxu0 0.0
    %1170 = vmatprep.subr.mxu0 0.0
    %1171 = vmatpush2.msra.mxu0 0.0
    %1172 = vmatprep.subr.mxu0 0.0
    %1173 = vmatpush2.msra.mxu0 0.0
    %1174 = vmatprep.subr.mxu0 0.0
    %1175 = vmatpush2.msra.mxu0 0.0
    %1176 = vmatprep.subr.mxu0 0.0
    %1177 = vmatpush2.msra.mxu0 0.0
    %1178 = vmatprep.subr.mxu0 0.0
    %1179 = vmatpush2.msra.mxu0 0.0
    %1180 = vmatprep.subr.mxu0 0.0
    %1181 = vmatpush2.msra.mxu0 0.0
    %1182 = vmatprep.subr.mxu0 0.0
    %1183 = vmatpush2.msra.mxu0 0.0
    %1184 = vmatprep.subr.mxu0 0.0
    %1185 = vmatpush2.msra.mxu0 0.0
    %1186 = vmatprep.subr.mxu0 0.0
    %1187 = vmatpush2.msra.mxu0 0.0
    %1188 = vmatprep.subr.mxu0 0.0
    %1189 = vmatpush2.msra.mxu0 0.0
    %1190 = vmatprep.subr.mxu0 0.0
    %1191 = vmatpush2.msra.mxu0 0.0
    %1192 = vmatprep.subr.mxu0 0.0
    %1193 = vmatpush2.msra.mxu0 0.0
    %1194 = vmatprep.subr.mxu0 0.0
    %1195 = vmatpush2.msra.mxu0 0.0
    %1196 = vmatprep.mubr.f32.mxu0 0.0
    %1197 = vmatmul.mubr.f32.gmra.mxu0 %v1127
    %v1198 = vpop.f32.mrf.mxu0
    %v1199 = vadd.f32 0.0, %v1198
    %v1200 = vpop.f32.mrf.mxu0
    %1201 = vmatprep.mubr.f32.mxu0 0.0
    %1202 = vmatmul.mubr.f32.gmra.mxu0 %v1130
    %v1203 = vpop.f32.mrf.mxu0
    %v1204 = vadd.f32 0.0, %v1203
    %v1205 = vpop.f32.mrf.mxu0
    %1206 = vdwg.mxu0
    %1209 = vrot.lane.b32.xlu0 %v1199, 64
    %v1210 = vpop.permute.xlu0 %1209
    %1211 = vrot.lane.b32.xlu0 %v1204, 64
    %v1212 = vpop.permute.xlu0 %1211
    %vm1215 = vcmask 785920
    %1216 = vst.msk [vmem:[#allocation2] sm:$0xff] %vm1215, %v1210
    %1217 = vst.msk [vmem:[#allocation2 + $0x8] sm:$0xff] %vm1215, %v1212
    %1218 = vrot.lane.b32.xlu0 %v598, 32
    %v1219 = vpop.permute.xlu0 %1218
    %1220 = vrot.lane.b32.xlu0 %v599, 32
    %v1221 = vpop.permute.xlu0 %1220
    %1222 = vrot.lane.b32.xlu0 %v515, 32
    %v1223 = vpop.permute.xlu0 %1222
    %1224 = vrot.lane.b32.xlu0 %v521, 32
    %v1225 = vpop.permute.xlu0 %1224
    %v1226 = vsel %vm600, %v1219, 0
    %v1228 = vsel %vm600, %v1221, 0
    %v1230 = vsel %vm600, %v1223, 0
    %v1232 = vsel %vm600, %v1225, 0
    %1234 = vmatprep.subr.mxu0 0.0
    %1235 = vmatpush1.xpose.msra.mxu0 0.0
    %1236 = vmatprep.subr.mxu0 0.0
    %1237 = vmatpush1.xpose.msra.mxu0 0.0
    %1238 = vmatprep.subr.mxu0 0.0
    %1239 = vmatpush1.xpose.msra.mxu0 0.0
    %1240 = vmatprep.subr.mxu0 0.0
    %1241 = vmatpush1.xpose.msra.mxu0 0.0
    %1242 = vmatprep.subr.mxu0 0.0
    %1243 = vmatpush1.xpose.msra.mxu0 0.0
    %1244 = vmatprep.subr.mxu0 0.0
    %1245 = vmatpush1.xpose.msra.mxu0 0.0
    %1246 = vmatprep.subr.mxu0 0.0
    %1247 = vmatpush1.xpose.msra.mxu0 0.0
    %1248 = vmatprep.subr.mxu0 0.0
    %1249 = vmatpush1.xpose.msra.mxu0 0.0
    %1250 = vmatprep.subr.mxu0 0.0
    %1251 = vmatpush1.xpose.msra.mxu0 0.0
    %1252 = vmatprep.subr.mxu0 0.0
    %1253 = vmatpush1.xpose.msra.mxu0 0.0
    %1254 = vmatprep.subr.mxu0 0.0
    %1255 = vmatpush1.xpose.msra.mxu0 0.0
    %1256 = vmatprep.subr.mxu0 0.0
    %1257 = vmatpush1.xpose.msra.mxu0 0.0
    %1258 = vmatprep.subr.mxu0 0.0
    %1259 = vmatpush1.xpose.msra.mxu0 0.0
    %1260 = vmatprep.subr.mxu0 0.0
    %1261 = vmatpush1.xpose.msra.mxu0 0.0
    %1262 = vmatprep.subr.mxu0 0.0
    %1263 = vmatpush1.xpose.msra.mxu0 %v1232
    %1264 = vmatprep.subr.mxu0 0.0
    %1265 = vmatpush1.xpose.msra.mxu0 %v1230
    %1266 = vmatprep.subr.mxu0 0.0
    %1267 = vmatpush2.xpose.msra.mxu0 0.0
    %1268 = vmatprep.subr.mxu0 0.0
    %1269 = vmatpush2.xpose.msra.mxu0 0.0
    %1270 = vmatprep.subr.mxu0 0.0
    %1271 = vmatpush2.xpose.msra.mxu0 0.0
    %1272 = vmatprep.subr.mxu0 0.0
    %1273 = vmatpush2.xpose.msra.mxu0 0.0
    %1274 = vmatprep.subr.mxu0 0.0
    %1275 = vmatpush2.xpose.msra.mxu0 0.0
    %1276 = vmatprep.subr.mxu0 0.0
    %1277 = vmatpush2.xpose.msra.mxu0 0.0
    %1278 = vmatprep.subr.mxu0 0.0
    %1279 = vmatpush2.xpose.msra.mxu0 0.0
    %1280 = vmatprep.subr.mxu0 0.0
    %1281 = vmatpush2.xpose.msra.mxu0 0.0
    %1282 = vmatprep.subr.mxu0 0.0
    %1283 = vmatpush2.xpose.msra.mxu0 0.0
    %1284 = vmatprep.subr.mxu0 0.0
    %1285 = vmatpush2.xpose.msra.mxu0 0.0
    %1286 = vmatprep.subr.mxu0 0.0
    %1287 = vmatpush2.xpose.msra.mxu0 0.0
    %1288 = vmatprep.subr.mxu0 0.0
    %1289 = vmatpush2.xpose.msra.mxu0 0.0
    %1290 = vmatprep.subr.mxu0 0.0
    %1291 = vmatpush2.xpose.msra.mxu0 0.0
    %1292 = vmatprep.subr.mxu0 0.0
    %1293 = vmatpush2.xpose.msra.mxu0 0.0
    %1294 = vmatprep.subr.mxu0 0.0
    %1295 = vmatpush2.xpose.msra.mxu0 0.0
    %1296 = vmatprep.subr.mxu0 0.0
    %1297 = vmatpush2.xpose.msra.mxu0 0.0
    %1298 = vmatprep.mubr.f32.mxu0 0.0
    %1299 = vmatmul.mubr.f32.gmra.mxu0 %v1226
    %v1300 = vpop.f32.mrf.mxu0
    %v1301 = vadd.f32 %v379, %v1300
    %v1302 = vpop.f32.mrf.mxu0
    %1303 = vmatprep.mubr.f32.mxu0 0.0
    %1304 = vmatmul.mubr.f32.gmra.mxu0 %v1228
    %v1305 = vpop.f32.mrf.mxu0
    %v1306 = vadd.f32 %v380, %v1305
    %v1307 = vpop.f32.mrf.mxu0
    %1308 = vdwg.mxu0
    %v1309 = vsel %vm688, %v1301, -inf
    %1310 = vmax.xlane.f32.xlu0 %v1309
    %v1311 = vpop.xlane.xlu0 %1310
    %v1312 = vsel %vm688, %v1306, -inf
    %1313 = vmax.xlane.f32.xlu0 %v1312
    %v1314 = vpop.xlane.xlu0 %1313
    %v1315 = vsub.f32 %v1301, %v1311
    %v1316 = vsub.f32 %v1306, %v1314
    %v1317 = vmul.f32 %v1315, 1.442695
    %v1318 = vpow.pop %v1317
    %v1319 = vmul.f32 %v1316, 1.442695
    %v1320 = vpow.pop %v1319
    %v1321 = vsel %vm688, %v1318, 0.0
    %1322 = vadd.xlane.f32.xlu0 %v1321
    %v1323 = vpop.xlane.xlu0 %1322
    %v1324 = vsel %vm688, %v1320, 0.0
    %1325 = vadd.xlane.f32.xlu0 %v1324
    %v1326 = vpop.xlane.xlu0 %1325
    %v1327 = vrcp.pop %v1323
    %v1328 = vrcp.pop %v1326
    %v1329 = vmul.f32 %v1318, %v1327
    %v1330 = vmul.f32 %v1320, %v1328
    %1331 = vrot.lane.b32.xlu0 %v590, 32
    %v1332 = vpop.permute.xlu0 %1331
    %1333 = vrot.lane.b32.xlu0 %v595, 32
    %v1334 = vpop.permute.xlu0 %1333
    %v1338 = vsel %vm688, %v1329, 0
    %v1341 = vsel %vm688, %v1330, 0
    %1343 = vmatprep.subr.mxu0 0.0
    %1344 = vmatpush1.msra.mxu0 0.0
    %1345 = vmatprep.subr.mxu0 0.0
    %1346 = vmatpush1.msra.mxu0 0.0
    %1347 = vmatprep.subr.mxu0 0.0
    %1348 = vmatpush1.msra.mxu0 0.0
    %1349 = vmatprep.subr.mxu0 0.0
    %1350 = vmatpush1.msra.mxu0 0.0
    %1351 = vmatprep.subr.mxu0 0.0
    %1352 = vmatpush1.msra.mxu0 0.0
    %1353 = vmatprep.subr.mxu0 0.0
    %1354 = vmatpush1.msra.mxu0 0.0
    %1355 = vmatprep.subr.mxu0 0.0
    %1356 = vmatpush1.msra.mxu0 0.0
    %1357 = vmatprep.subr.mxu0 0.0
    %1358 = vmatpush1.msra.mxu0 0.0
    %1359 = vmatprep.subr.mxu0 0.0
    %1360 = vmatpush1.msra.mxu0 0.0
    %1361 = vmatprep.subr.mxu0 0.0
    %1362 = vmatpush1.msra.mxu0 0.0
    %1363 = vmatprep.subr.mxu0 0.0
    %1364 = vmatpush1.msra.mxu0 0.0
    %1365 = vmatprep.subr.mxu0 0.0
    %1366 = vmatpush1.msra.mxu0 0.0
    %1367 = vmatprep.subr.mxu0 0.0
    %1368 = vmatpush1.msra.mxu0 0.0
    %1369 = vmatprep.subr.mxu0 0.0
    %1370 = vmatpush1.msra.mxu0 0.0
    %1371 = vmatprep.subr.mxu0 0.0
    %1372 = vmatpush1.msra.mxu0 %v1334
    %1373 = vmatprep.subr.mxu0 0.0
    %1374 = vmatpush1.msra.mxu0 %v1332
    %1375 = vmatprep.subr.mxu0 0.0
    %1376 = vmatpush2.msra.mxu0 0.0
    %1377 = vmatprep.subr.mxu0 0.0
    %1378 = vmatpush2.msra.mxu0 0.0
    %1379 = vmatprep.subr.mxu0 0.0
    %1380 = vmatpush2.msra.mxu0 0.0
    %1381 = vmatprep.subr.mxu0 0.0
    %1382 = vmatpush2.msra.mxu0 0.0
    %1383 = vmatprep.subr.mxu0 0.0
    %1384 = vmatpush2.msra.mxu0 0.0
    %1385 = vmatprep.subr.mxu0 0.0
    %1386 = vmatpush2.msra.mxu0 0.0
    %1387 = vmatprep.subr.mxu0 0.0
    %1388 = vmatpush2.msra.mxu0 0.0
    %1389 = vmatprep.subr.mxu0 0.0
    %1390 = vmatpush2.msra.mxu0 0.0
    %1391 = vmatprep.subr.mxu0 0.0
    %1392 = vmatpush2.msra.mxu0 0.0
    %1393 = vmatprep.subr.mxu0 0.0
    %1394 = vmatpush2.msra.mxu0 0.0
    %1395 = vmatprep.subr.mxu0 0.0
    %1396 = vmatpush2.msra.mxu0 0.0
    %1397 = vmatprep.subr.mxu0 0.0
    %1398 = vmatpush2.msra.mxu0 0.0
    %1399 = vmatprep.subr.mxu0 0.0
    %1400 = vmatpush2.msra.mxu0 0.0
    %1401 = vmatprep.subr.mxu0 0.0
    %1402 = vmatpush2.msra.mxu0 0.0
    %1403 = vmatprep.subr.mxu0 0.0
    %1404 = vmatpush2.msra.mxu0 0.0
    %1405 = vmatprep.subr.mxu0 0.0
    %1406 = vmatpush2.msra.mxu0 0.0
    %1407 = vmatprep.mubr.f32.mxu0 0.0
    %1408 = vmatmul.mubr.f32.gmra.mxu0 %v1338
    %v1409 = vpop.f32.mrf.mxu0
    %v1410 = vadd.f32 0.0, %v1409
    %v1411 = vpop.f32.mrf.mxu0
    %1412 = vmatprep.mubr.f32.mxu0 0.0
    %1413 = vmatmul.mubr.f32.gmra.mxu0 %v1341
    %v1414 = vpop.f32.mrf.mxu0
    %v1415 = vadd.f32 0.0, %v1414
    %v1416 = vpop.f32.mrf.mxu0
    %1417 = vdwg.mxu0
    %1420 = vrot.lane.b32.xlu0 %v1410, 96
    %v1421 = vpop.permute.xlu0 %1420
    %1422 = vrot.lane.b32.xlu0 %v1415, 96
    %v1423 = vpop.permute.xlu0 %1422
    %vm1426 = vcmask 1048320
    %1427 = vst.msk [vmem:[#allocation2] sm:$0xff] %vm1426, %v1421
    %1428 = vst.msk [vmem:[#allocation2 + $0x8] sm:$0xff] %vm1426, %v1423
    %v1429 = vld [vmem:[#allocation2] sm:$0xff]
    %v1430 = vld [vmem:[#allocation2 + $0x8] sm:$0xff]
    %v1431 = vld [vmem:[#allocation12] sm:$0xff]
    %v1432 = vld [vmem:[#allocation12 + $0x8] sm:$0xff]
    %v1433 = vld [vmem:[#allocation12 + $0x10] sm:$0xff]
    %v1434 = vld [vmem:[#allocation12 + $0x18] sm:$0xff]
    %v1435 = vld [vmem:[#allocation12 + $0x20] sm:$0xff]
    %v1436 = vld [vmem:[#allocation12 + $0x28] sm:$0xff]
    %v1437 = vld [vmem:[#allocation12 + $0x30] sm:$0xff]
    %v1438 = vld [vmem:[#allocation12 + $0x38] sm:$0xff]
    %v1439 = vld [vmem:[#allocation12 + $0x40] sm:$0xff]
    %v1440 = vld [vmem:[#allocation12 + $0x48] sm:$0xff]
    %v1441 = vld [vmem:[#allocation12 + $0x50] sm:$0xff]
    %v1442 = vld [vmem:[#allocation12 + $0x58] sm:$0xff]
    %v1443 = vld [vmem:[#allocation12 + $0x60] sm:$0xff]
    %v1444 = vld [vmem:[#allocation12 + $0x68] sm:$0xff]
    %v1445 = vld [vmem:[#allocation12 + $0x70] sm:$0xff]
    %v1446 = vld [vmem:[#allocation12 + $0x78] sm:$0xff]
    %v1447 = vld [vmem:[#allocation14] sm:$0x1]
    %v1449 = vlaneseq
    %v1450 = vshrl.u32 %v1449, 7
    %v1451 = vsub.s32 0, %v1450
    %v1452 = vrot.slane %v1447, %v1451
    %1454 = vmatprep.subr.mxu0 0.0
    %1455 = vmatpush1.msra.mxu0 %v1446
    %1456 = vmatprep.subr.mxu0 0.0
    %1457 = vmatpush1.msra.mxu0 %v1445
    %1458 = vmatprep.subr.mxu0 0.0
    %1459 = vmatpush1.msra.mxu0 %v1444
    %1460 = vmatprep.subr.mxu0 0.0
    %1461 = vmatpush1.msra.mxu0 %v1443
    %1462 = vmatprep.subr.mxu0 0.0
    %1463 = vmatpush1.msra.mxu0 %v1442
    %1464 = vmatprep.subr.mxu0 0.0
    %1465 = vmatpush1.msra.mxu0 %v1441
    %1466 = vmatprep.subr.mxu0 0.0
    %1467 = vmatpush1.msra.mxu0 %v1440
    %1468 = vmatprep.subr.mxu0 0.0
    %1469 = vmatpush1.msra.mxu0 %v1439
    %1470 = vmatprep.subr.mxu0 0.0
    %1471 = vmatpush1.msra.mxu0 %v1438
    %1472 = vmatprep.subr.mxu0 0.0
    %1473 = vmatpush1.msra.mxu0 %v1437
    %1474 = vmatprep.subr.mxu0 0.0
    %1475 = vmatpush1.msra.mxu0 %v1436
    %1476 = vmatprep.subr.mxu0 0.0
    %1477 = vmatpush1.msra.mxu0 %v1435
    %1478 = vmatprep.subr.mxu0 0.0
    %1479 = vmatpush1.msra.mxu0 %v1434
    %1480 = vmatprep.subr.mxu0 0.0
    %1481 = vmatpush1.msra.mxu0 %v1433
    %1482 = vmatprep.subr.mxu0 0.0
    %1483 = vmatpush1.msra.mxu0 %v1432
    %1484 = vmatprep.subr.mxu0 0.0
    %1485 = vmatpush1.msra.mxu0 %v1431
    %1486 = vmatprep.subr.mxu0 0.0
    %1487 = vmatpush2.msra.mxu0 0.0
    %1488 = vmatprep.subr.mxu0 0.0
    %1489 = vmatpush2.msra.mxu0 0.0
    %1490 = vmatprep.subr.mxu0 0.0
    %1491 = vmatpush2.msra.mxu0 0.0
    %1492 = vmatprep.subr.mxu0 0.0
    %1493 = vmatpush2.msra.mxu0 0.0
    %1494 = vmatprep.subr.mxu0 0.0
    %1495 = vmatpush2.msra.mxu0 0.0
    %1496 = vmatprep.subr.mxu0 0.0
    %1497 = vmatpush2.msra.mxu0 0.0
    %1498 = vmatprep.subr.mxu0 0.0
    %1499 = vmatpush2.msra.mxu0 0.0
    %1500 = vmatprep.subr.mxu0 0.0
    %1501 = vmatpush2.msra.mxu0 0.0
    %1502 = vmatprep.subr.mxu0 0.0
    %1503 = vmatpush2.msra.mxu0 0.0
    %1504 = vmatprep.subr.mxu0 0.0
    %1505 = vmatpush2.msra.mxu0 0.0
    %1506 = vmatprep.subr.mxu0 0.0
    %1507 = vmatpush2.msra.mxu0 0.0
    %1508 = vmatprep.subr.mxu0 0.0
    %1509 = vmatpush2.msra.mxu0 0.0
    %1510 = vmatprep.subr.mxu0 0.0
    %1511 = vmatpush2.msra.mxu0 0.0
    %1512 = vmatprep.subr.mxu0 0.0
    %1513 = vmatpush2.msra.mxu0 0.0
    %1514 = vmatprep.subr.mxu0 0.0
    %1515 = vmatpush2.msra.mxu0 0.0
    %1516 = vmatprep.subr.mxu0 0.0
    %1517 = vmatpush2.msra.mxu0 0.0
    %1518 = vmatprep.mubr.f32.mxu0 0.0
    %1519 = vmatmul.mubr.f32.gmra.mxu0 %v1429
    %v1520 = vpop.f32.mrf.mxu0
    %v1521 = vadd.f32 %v1452, %v1520
    %v1522 = vpop.f32.mrf.mxu0
    %1523 = vmatprep.mubr.f32.mxu0 0.0
    %1524 = vmatmul.mubr.f32.gmra.mxu0 %v1430
    %v1525 = vpop.f32.mrf.mxu0
    %v1526 = vadd.f32 %v1452, %v1525
    %v1527 = vpop.f32.mrf.mxu0
    %1528 = vdwg.mxu0
    %v1529 = vadd.f32 %v1521, %v377
    %v1530 = vadd.f32 %v1526, %v378
    %v1531 = vld [vmem:[#allocation15] sm:$0x1]
    %v1532 = vld [vmem:[#allocation17] sm:$0x1]
    %1533 = vadd.xlane.f32.xlu0 %v1529
    %v1534 = vpop.xlane.xlu0 %1533
    %1535 = vadd.xlane.f32.xlu0 %v1530
    %v1536 = vpop.xlane.xlu0 %1535
    %v1537 = vmul.f32 %v1534, %v344
    %v1538 = vmul.f32 %v1536, %v344
    %v1539 = vsub.f32 %v1529, %v1537
    %v1540 = vsub.f32 %v1530, %v1538
    %v1541 = vmul.f32 %v1539, %v1539
    %v1542 = vmul.f32 %v1540, %v1540
    %1543 = vadd.xlane.f32.xlu0 %v1541
    %v1544 = vpop.xlane.xlu0 %1543
    %1545 = vadd.xlane.f32.xlu0 %v1542
    %v1546 = vpop.xlane.xlu0 %1545
    %v1547 = vmul.f32 %v1544, %v344
    %v1548 = vmul.f32 %v1546, %v344
    %v1549 = vadd.f32 %v1547, 1e-12
    %v1550 = vadd.f32 %v1548, 1e-12
    %v1551 = vrsqrt.pop %v1549
    %v1552 = vrsqrt.pop %v1550
    %v1553 = vmul.f32 %v1539, %v1551
    %v1554 = vmul.f32 %v1540, %v1552
    %v1556 = vlaneseq
    %v1557 = vshrl.u32 %v1556, 7
    %v1558 = vsub.s32 0, %v1557
    %v1559 = vrot.slane %v1531, %v1558
    %v1561 = vmul.f32 %v1553, %v1559
    %v1562 = vmul.f32 %v1554, %v1559
    %v1564 = vlaneseq
    %v1565 = vshrl.u32 %v1564, 7
    %v1566 = vsub.s32 0, %v1565
    %v1567 = vrot.slane %v1532, %v1566
    %v1569 = vadd.f32 %v1561, %v1567
    %v1570 = vadd.f32 %v1562, %v1567
    %v1571 = vld [vmem:[#allocation18] sm:$0xff]
    %v1572 = vld [vmem:[#allocation18 + $0x8] sm:$0xff]
    %v1573 = vld [vmem:[#allocation18 + $0x10] sm:$0xff]
    %v1574 = vld [vmem:[#allocation18 + $0x18] sm:$0xff]
    %v1575 = vld [vmem:[#allocation18 + $0x20] sm:$0xff]
    %v1576 = vld [vmem:[#allocation18 + $0x28] sm:$0xff]
    %v1577 = vld [vmem:[#allocation18 + $0x30] sm:$0xff]
    %v1578 = vld [vmem:[#allocation18 + $0x38] sm:$0xff]
    %v1579 = vld [vmem:[#allocation18 + $0x40] sm:$0xff]
    %v1580 = vld [vmem:[#allocation18 + $0x48] sm:$0xff]
    %v1581 = vld [vmem:[#allocation18 + $0x50] sm:$0xff]
    %v1582 = vld [vmem:[#allocation18 + $0x58] sm:$0xff]
    %v1583 = vld [vmem:[#allocation18 + $0x60] sm:$0xff]
    %v1584 = vld [vmem:[#allocation18 + $0x68] sm:$0xff]
    %v1585 = vld [vmem:[#allocation18 + $0x70] sm:$0xff]
    %v1586 = vld [vmem:[#allocation18 + $0x78] sm:$0xff]
    %v1587 = vld [vmem:[#allocation18 + $0x80] sm:$0xff]
    %v1588 = vld [vmem:[#allocation18 + $0x88] sm:$0xff]
    %v1589 = vld [vmem:[#allocation18 + $0x90] sm:$0xff]
    %v1590 = vld [vmem:[#allocation18 + $0x98] sm:$0xff]
    %v1591 = vld [vmem:[#allocation18 + $0xa0] sm:$0xff]
    %v1592 = vld [vmem:[#allocation18 + $0xa8] sm:$0xff]
    %v1593 = vld [vmem:[#allocation18 + $0xb0] sm:$0xff]
    %v1594 = vld [vmem:[#allocation18 + $0xb8] sm:$0xff]
    %v1595 = vld [vmem:[#allocation18 + $0xc0] sm:$0xff]
    %v1596 = vld [vmem:[#allocation18 + $0xc8] sm:$0xff]
    %v1597 = vld [vmem:[#allocation18 + $0xd0] sm:$0xff]
    %v1598 = vld [vmem:[#allocation18 + $0xd8] sm:$0xff]
    %v1599 = vld [vmem:[#allocation18 + $0xe0] sm:$0xff]
    %v1600 = vld [vmem:[#allocation18 + $0xe8] sm:$0xff]
    %v1601 = vld [vmem:[#allocation18 + $0xf0] sm:$0xff]
    %v1602 = vld [vmem:[#allocation18 + $0xf8] sm:$0xff]
    %v1603 = vld [vmem:[#allocation20] sm:$0x3]
    %v1605 = vlaneseq
    %v1606 = vshrl.u32 %v1605, 7
    %v1607 = vsub.s32 0, %v1606
    %v1608 = vrot.slane %v1603, %v1607
    %v1609 = vlaneseq
    %v1610 = vshrl.u32 %v1609, 7
    %v1611 = vsub.s32 1, %v1610
    %v1612 = vrot.slane %v1603, %v1611
    %1615 = vmatprep.subr.mxu0 %v1602
    %1616 = vmatpush1.msra.mxu0 %v1601
    %1617 = vmatprep.subr.mxu0 %v1600
    %1618 = vmatpush1.msra.mxu0 %v1599
    %1619 = vmatprep.subr.mxu0 %v1598
    %1620 = vmatpush1.msra.mxu0 %v1597
    %1621 = vmatprep.subr.mxu0 %v1596
    %1622 = vmatpush1.msra.mxu0 %v1595
    %1623 = vmatprep.subr.mxu0 %v1594
    %1624 = vmatpush1.msra.mxu0 %v1593
    %1625 = vmatprep.subr.mxu0 %v1592
    %1626 = vmatpush1.msra.mxu0 %v1591
    %1627 = vmatprep.subr.mxu0 %v1590
    %1628 = vmatpush1.msra.mxu0 %v1589
    %1629 = vmatprep.subr.mxu0 %v1588
    %1630 = vmatpush1.msra.mxu0 %v1587
    %1631 = vmatprep.subr.mxu0 %v1586
    %1632 = vmatpush1.msra.mxu0 %v1585
    %1633 = vmatprep.subr.mxu0 %v1584
    %1634 = vmatpush1.msra.mxu0 %v1583
    %1635 = vmatprep.subr.mxu0 %v1582
    %1636 = vmatpush1.msra.mxu0 %v1581
    %1637 = vmatprep.subr.mxu0 %v1580
    %1638 = vmatpush1.msra.mxu0 %v1579
    %1639 = vmatprep.subr.mxu0 %v1578
    %1640 = vmatpush1.msra.mxu0 %v1577
    %1641 = vmatprep.subr.mxu0 %v1576
    %1642 = vmatpush1.msra.mxu0 %v1575
    %1643 = vmatprep.subr.mxu0 %v1574
    %1644 = vmatpush1.msra.mxu0 %v1573
    %1645 = vmatprep.subr.mxu0 %v1572
    %1646 = vmatpush1.msra.mxu0 %v1571
    %1647 = vmatprep.subr.mxu0 0.0
    %1648 = vmatpush2.msra.mxu0 0.0
    %1649 = vmatprep.subr.mxu0 0.0
    %1650 = vmatpush2.msra.mxu0 0.0
    %1651 = vmatprep.subr.mxu0 0.0
    %1652 = vmatpush2.msra.mxu0 0.0
    %1653 = vmatprep.subr.mxu0 0.0
    %1654 = vmatpush2.msra.mxu0 0.0
    %1655 = vmatprep.subr.mxu0 0.0
    %1656 = vmatpush2.msra.mxu0 0.0
    %1657 = vmatprep.subr.mxu0 0.0
    %1658 = vmatpush2.msra.mxu0 0.0
    %1659 = vmatprep.subr.mxu0 0.0
    %1660 = vmatpush2.msra.mxu0 0.0
    %1661 = vmatprep.subr.mxu0 0.0
    %1662 = vmatpush2.msra.mxu0 0.0
    %1663 = vmatprep.subr.mxu0 0.0
    %1664 = vmatpush2.msra.mxu0 0.0
    %1665 = vmatprep.subr.mxu0 0.0
    %1666 = vmatpush2.msra.mxu0 0.0
    %1667 = vmatprep.subr.mxu0 0.0
    %1668 = vmatpush2.msra.mxu0 0.0
    %1669 = vmatprep.subr.mxu0 0.0
    %1670 = vmatpush2.msra.mxu0 0.0
    %1671 = vmatprep.subr.mxu0 0.0
    %1672 = vmatpush2.msra.mxu0 0.0
    %1673 = vmatprep.subr.mxu0 0.0
    %1674 = vmatpush2.msra.mxu0 0.0
    %1675 = vmatprep.subr.mxu0 0.0
    %1676 = vmatpush2.msra.mxu0 0.0
    %1677 = vmatprep.subr.mxu0 0.0
    %1678 = vmatpush2.msra.mxu0 0.0
    %1679 = vmatprep.mubr.f32.mxu0 0.0
    %1680 = vmatmul.mubr.f32.gmra.mxu0 %v1569
    %v1681 = vpop.f32.mrf.mxu0
    %v1682 = vadd.f32 %v1608, %v1681
    %v1683 = vpop.f32.mrf.mxu0
    %v1684 = vadd.f32 %v1612, %v1683
    %1685 = vmatprep.mubr.f32.mxu0 0.0
    %1686 = vmatmul.mubr.f32.gmra.mxu0 %v1570
    %v1687 = vpop.f32.mrf.mxu0
    %v1688 = vadd.f32 %v1608, %v1687
    %v1689 = vpop.f32.mrf.mxu0
    %v1690 = vadd.f32 %v1612, %v1689
    %1691 = vdwg.mxu0
    %v1692 = vmul.f32 %v1682, 0.5
    %v1693 = vmul.f32 %v1684, 0.5
    %v1694 = vmul.f32 %v1688, 0.5
    %v1695 = vmul.f32 %v1690, 0.5
    %v1696 = vmul.f32 %v1682, 0.044715
    %v1697 = vmul.f32 %v1684, 0.044715
    %v1698 = vmul.f32 %v1688, 0.044715
    %v1699 = vmul.f32 %v1690, 0.044715
    %v1700 = vmul.f32 %v1696, %v1682
    %v1701 = vmul.f32 %v1697, %v1684
    %v1702 = vmul.f32 %v1698, %v1688
    %v1703 = vmul.f32 %v1699, %v1690
    %v1704 = vmul.f32 %v1700, %v1682
    %v1705 = vmul.f32 %v1701, %v1684
    %v1706 = vmul.f32 %v1702, %v1688
    %v1707 = vmul.f32 %v1703, %v1690
    %v1708 = vadd.f32 %v1682, %v1704
    %v1709 = vadd.f32 %v1684, %v1705
    %v1710 = vadd.f32 %v1688, %v1706
    %v1711 = vadd.f32 %v1690, %v1707
    %v1712 = vmul.f32 %v1708, 0.7978846
    %v1713 = vmul.f32 %v1709, 0.7978846
    %v1714 = vmul.f32 %v1710, 0.7978846
    %v1715 = vmul.f32 %v1711, 0.7978846
    %v1716 = vtanh.pop %v1712
    %v1717 = vtanh.pop %v1713
    %v1718 = vtanh.pop %v1714
    %v1719 = vtanh.pop %v1715
    %v1720 = vadd.f32 %v1716, 1.0
    %v1721 = vadd.f32 %v1717, 1.0
    %v1722 = vadd.f32 %v1718, 1.0
    %v1723 = vadd.f32 %v1719, 1.0
    %v1724 = vmul.f32 %v1692, %v1720
    %v1725 = vmul.f32 %v1693, %v1721
    %v1726 = vmul.f32 %v1694, %v1722
    %v1727 = vmul.f32 %v1695, %v1723
    %v1728 = vld [vmem:[#allocation21] sm:$0xff]
    %v1729 = vld [vmem:[#allocation21 + $0x8] sm:$0xff]
    %v1730 = vld [vmem:[#allocation21 + $0x10] sm:$0xff]
    %v1731 = vld [vmem:[#allocation21 + $0x18] sm:$0xff]
    %v1732 = vld [vmem:[#allocation21 + $0x20] sm:$0xff]
    %v1733 = vld [vmem:[#allocation21 + $0x28] sm:$0xff]
    %v1734 = vld [vmem:[#allocation21 + $0x30] sm:$0xff]
    %v1735 = vld [vmem:[#allocation21 + $0x38] sm:$0xff]
    %v1736 = vld [vmem:[#allocation21 + $0x40] sm:$0xff]
    %v1737 = vld [vmem:[#allocation21 + $0x48] sm:$0xff]
    %v1738 = vld [vmem:[#allocation21 + $0x50] sm:$0xff]
    %v1739 = vld [vmem:[#allocation21 + $0x58] sm:$0xff]
    %v1740 = vld [vmem:[#allocation21 + $0x60] sm:$0xff]
    %v1741 = vld [vmem:[#allocation21 + $0x68] sm:$0xff]
    %v1742 = vld [vmem:[#allocation21 + $0x70] sm:$0xff]
    %v1743 = vld [vmem:[#allocation21 + $0x78] sm:$0xff]
    %v1744 = vld [vmem:[#allocation21 + $0x80] sm:$0xff]
    %v1745 = vld [vmem:[#allocation21 + $0x88] sm:$0xff]
    %v1746 = vld [vmem:[#allocation21 + $0x90] sm:$0xff]
    %v1747 = vld [vmem:[#allocation21 + $0x98] sm:$0xff]
    %v1748 = vld [vmem:[#allocation21 + $0xa0] sm:$0xff]
    %v1749 = vld [vmem:[#allocation21 + $0xa8] sm:$0xff]
    %v1750 = vld [vmem:[#allocation21 + $0xb0] sm:$0xff]
    %v1751 = vld [vmem:[#allocation21 + $0xb8] sm:$0xff]
    %v1752 = vld [vmem:[#allocation21 + $0xc0] sm:$0xff]
    %v1753 = vld [vmem:[#allocation21 + $0xc8] sm:$0xff]
    %v1754 = vld [vmem:[#allocation21 + $0xd0] sm:$0xff]
    %v1755 = vld [vmem:[#allocation21 + $0xd8] sm:$0xff]
    %v1756 = vld [vmem:[#allocation21 + $0xe0] sm:$0xff]
    %v1757 = vld [vmem:[#allocation21 + $0xe8] sm:$0xff]
    %v1758 = vld [vmem:[#allocation21 + $0xf0] sm:$0xff]
    %v1759 = vld [vmem:[#allocation21 + $0xf8] sm:$0xff]
    %v1760 = vld [vmem:[#allocation23] sm:$0x1]
    %v1762 = vlaneseq
    %v1763 = vshrl.u32 %v1762, 7
    %v1764 = vsub.s32 0, %v1763
    %v1765 = vrot.slane %v1760, %v1764
    %1767 = vmatprep.subr.mxu0 0.0
    %1768 = vmatpush1.msra.mxu0 %v1743
    %1769 = vmatprep.subr.mxu0 0.0
    %1770 = vmatpush1.msra.mxu0 %v1742
    %1771 = vmatprep.subr.mxu0 0.0
    %1772 = vmatpush1.msra.mxu0 %v1741
    %1773 = vmatprep.subr.mxu0 0.0
    %1774 = vmatpush1.msra.mxu0 %v1740
    %1775 = vmatprep.subr.mxu0 0.0
    %1776 = vmatpush1.msra.mxu0 %v1739
    %1777 = vmatprep.subr.mxu0 0.0
    %1778 = vmatpush1.msra.mxu0 %v1738
    %1779 = vmatprep.subr.mxu0 0.0
    %1780 = vmatpush1.msra.mxu0 %v1737
    %1781 = vmatprep.subr.mxu0 0.0
    %1782 = vmatpush1.msra.mxu0 %v1736
    %1783 = vmatprep.subr.mxu0 0.0
    %1784 = vmatpush1.msra.mxu0 %v1735
    %1785 = vmatprep.subr.mxu0 0.0
    %1786 = vmatpush1.msra.mxu0 %v1734
    %1787 = vmatprep.subr.mxu0 0.0
    %1788 = vmatpush1.msra.mxu0 %v1733
    %1789 = vmatprep.subr.mxu0 0.0
    %1790 = vmatpush1.msra.mxu0 %v1732
    %1791 = vmatprep.subr.mxu0 0.0
    %1792 = vmatpush1.msra.mxu0 %v1731
    %1793 = vmatprep.subr.mxu0 0.0
    %1794 = vmatpush1.msra.mxu0 %v1730
    %1795 = vmatprep.subr.mxu0 0.0
    %1796 = vmatpush1.msra.mxu0 %v1729
    %1797 = vmatprep.subr.mxu0 0.0
    %1798 = vmatpush1.msra.mxu0 %v1728
    %1799 = vmatprep.subr.mxu0 0.0
    %1800 = vmatpush2.msra.mxu0 %v1759
    %1801 = vmatprep.subr.mxu0 0.0
    %1802 = vmatpush2.msra.mxu0 %v1758
    %1803 = vmatprep.subr.mxu0 0.0
    %1804 = vmatpush2.msra.mxu0 %v1757
    %1805 = vmatprep.subr.mxu0 0.0
    %1806 = vmatpush2.msra.mxu0 %v1756
    %1807 = vmatprep.subr.mxu0 0.0
    %1808 = vmatpush2.msra.mxu0 %v1755
    %1809 = vmatprep.subr.mxu0 0.0
    %1810 = vmatpush2.msra.mxu0 %v1754
    %1811 = vmatprep.subr.mxu0 0.0
    %1812 = vmatpush2.msra.mxu0 %v1753
    %1813 = vmatprep.subr.mxu0 0.0
    %1814 = vmatpush2.msra.mxu0 %v1752
    %1815 = vmatprep.subr.mxu0 0.0
    %1816 = vmatpush2.msra.mxu0 %v1751
    %1817 = vmatprep.subr.mxu0 0.0
    %1818 = vmatpush2.msra.mxu0 %v1750
    %1819 = vmatprep.subr.mxu0 0.0
    %1820 = vmatpush2.msra.mxu0 %v1749
    %1821 = vmatprep.subr.mxu0 0.0
    %1822 = vmatpush2.msra.mxu0 %v1748
    %1823 = vmatprep.subr.mxu0 0.0
    %1824 = vmatpush2.msra.mxu0 %v1747
    %1825 = vmatprep.subr.mxu0 0.0
    %1826 = vmatpush2.msra.mxu0 %v1746
    %1827 = vmatprep.subr.mxu0 0.0
    %1828 = vmatpush2.msra.mxu0 %v1745
    %1829 = vmatprep.subr.mxu0 0.0
    %1830 = vmatpush2.msra.mxu0 %v1744
    %1831 = vmatprep.mubr.f32.mxu0 %v1725
    %1832 = vmatmul.mubr.f32.gmra.mxu0 %v1724
    %v1833 = vpop.f32.mrf.mxu0
    %v1834 = vadd.f32 %v1765, %v1833
    %v1835 = vpop.f32.mrf.mxu0
    %1836 = vmatprep.mubr.f32.mxu0 %v1727
    %1837 = vmatmul.mubr.f32.gmra.mxu0 %v1726
    %v1838 = vpop.f32.mrf.mxu0
    %v1839 = vadd.f32 %v1765, %v1838
    %v1840 = vpop.f32.mrf.mxu0
    %1841 = vdwg.mxu0
    %v1842 = vadd.f32 %v1834, %v1569
    %v1843 = vadd.f32 %v1839, %v1570
    %v1844 = vld [vmem:[#allocation24] sm:$0x1]
    %v1845 = vld [vmem:[#allocation26] sm:$0x1]
    %1846 = vadd.xlane.f32.xlu0 %v1842
    %v1847 = vpop.xlane.xlu0 %1846
    %1848 = vadd.xlane.f32.xlu0 %v1843
    %v1849 = vpop.xlane.xlu0 %1848
    %v1850 = vmul.f32 %v1847, %v344
    %v1851 = vmul.f32 %v1849, %v344
    %v1852 = vsub.f32 %v1842, %v1850
    %v1853 = vsub.f32 %v1843, %v1851
    %v1854 = vmul.f32 %v1852, %v1852
    %v1855 = vmul.f32 %v1853, %v1853
    %1856 = vadd.xlane.f32.xlu0 %v1854
    %v1857 = vpop.xlane.xlu0 %1856
    %1858 = vadd.xlane.f32.xlu0 %v1855
    %v1859 = vpop.xlane.xlu0 %1858
    %v1860 = vmul.f32 %v1857, %v344
    %v1861 = vmul.f32 %v1859, %v344
    %v1862 = vadd.f32 %v1860, 1e-12
    %v1863 = vadd.f32 %v1861, 1e-12
    %v1864 = vrsqrt.pop %v1862
    %v1865 = vrsqrt.pop %v1863
    %v1866 = vmul.f32 %v1852, %v1864
    %v1867 = vmul.f32 %v1853, %v1865
    %v1869 = vlaneseq
    %v1870 = vshrl.u32 %v1869, 7
    %v1871 = vsub.s32 0, %v1870
    %v1872 = vrot.slane %v1844, %v1871
    %v1874 = vmul.f32 %v1866, %v1872
    %v1875 = vmul.f32 %v1867, %v1872
    %v1877 = vlaneseq
    %v1878 = vshrl.u32 %v1877, 7
    %v1879 = vsub.s32 0, %v1878
    %v1880 = vrot.slane %v1845, %v1879
    %v1882 = vadd.f32 %v1874, %v1880
    %v1883 = vadd.f32 %v1875, %v1880
    %s1884 = scalar_lea.vmem [#allocation9], 384
    %v1885 = vld [vmem:[%s1884] sm:$0xff]
    %v1886 = vld [vmem:[%s1884 + $0x8] sm:$0xff]
    %v1887 = vld [vmem:[%s1884 + $0x10] sm:$0xff]
    %v1888 = vld [vmem:[%s1884 + $0x18] sm:$0xff]
    %v1889 = vld [vmem:[%s1884 + $0x20] sm:$0xff]
    %v1890 = vld [vmem:[%s1884 + $0x28] sm:$0xff]
    %v1891 = vld [vmem:[%s1884 + $0x30] sm:$0xff]
    %v1892 = vld [vmem:[%s1884 + $0x38] sm:$0xff]
    %v1893 = vld [vmem:[%s1884 + $0x40] sm:$0xff]
    %v1894 = vld [vmem:[%s1884 + $0x48] sm:$0xff]
    %v1895 = vld [vmem:[%s1884 + $0x50] sm:$0xff]
    %v1896 = vld [vmem:[%s1884 + $0x58] sm:$0xff]
    %v1897 = vld [vmem:[%s1884 + $0x60] sm:$0xff]
    %v1898 = vld [vmem:[%s1884 + $0x68] sm:$0xff]
    %v1899 = vld [vmem:[%s1884 + $0x70] sm:$0xff]
    %v1900 = vld [vmem:[%s1884 + $0x78] sm:$0xff]
    %v1901 = vld [vmem:[%s1884 + $0x80] sm:$0xff]
    %v1902 = vld [vmem:[%s1884 + $0x88] sm:$0xff]
    %v1903 = vld [vmem:[%s1884 + $0x90] sm:$0xff]
    %v1904 = vld [vmem:[%s1884 + $0x98] sm:$0xff]
    %v1905 = vld [vmem:[%s1884 + $0xa0] sm:$0xff]
    %v1906 = vld [vmem:[%s1884 + $0xa8] sm:$0xff]
    %v1907 = vld [vmem:[%s1884 + $0xb0] sm:$0xff]
    %v1908 = vld [vmem:[%s1884 + $0xb8] sm:$0xff]
    %v1909 = vld [vmem:[%s1884 + $0xc0] sm:$0xff]
    %v1910 = vld [vmem:[%s1884 + $0xc8] sm:$0xff]
    %v1911 = vld [vmem:[%s1884 + $0xd0] sm:$0xff]
    %v1912 = vld [vmem:[%s1884 + $0xd8] sm:$0xff]
    %v1913 = vld [vmem:[%s1884 + $0xe0] sm:$0xff]
    %v1914 = vld [vmem:[%s1884 + $0xe8] sm:$0xff]
    %v1915 = vld [vmem:[%s1884 + $0xf0] sm:$0xff]
    %v1916 = vld [vmem:[%s1884 + $0xf8] sm:$0xff]
    %v1917 = vld [vmem:[%s1884 + $0x100] sm:$0xff]
    %v1918 = vld [vmem:[%s1884 + $0x108] sm:$0xff]
    %v1919 = vld [vmem:[%s1884 + $0x110] sm:$0xff]
    %v1920 = vld [vmem:[%s1884 + $0x118] sm:$0xff]
    %v1921 = vld [vmem:[%s1884 + $0x120] sm:$0xff]
    %v1922 = vld [vmem:[%s1884 + $0x128] sm:$0xff]
    %v1923 = vld [vmem:[%s1884 + $0x130] sm:$0xff]
    %v1924 = vld [vmem:[%s1884 + $0x138] sm:$0xff]
    %v1925 = vld [vmem:[%s1884 + $0x140] sm:$0xff]
    %v1926 = vld [vmem:[%s1884 + $0x148] sm:$0xff]
    %v1927 = vld [vmem:[%s1884 + $0x150] sm:$0xff]
    %v1928 = vld [vmem:[%s1884 + $0x158] sm:$0xff]
    %v1929 = vld [vmem:[%s1884 + $0x160] sm:$0xff]
    %v1930 = vld [vmem:[%s1884 + $0x168] sm:$0xff]
    %v1931 = vld [vmem:[%s1884 + $0x170] sm:$0xff]
    %v1932 = vld [vmem:[%s1884 + $0x178] sm:$0xff]
    %s1933 = scalar_lea.vmem [#allocation11], 3
    %v1934 = vld [vmem:[%s1933] sm:$0x7]
    %v1936 = vlaneseq
    %v1937 = vshrl.u32 %v1936, 7
    %v1938 = vsub.s32 0, %v1937
    %v1939 = vrot.slane %v1934, %v1938
    %v1940 = vlaneseq
    %v1941 = vshrl.u32 %v1940, 7
    %v1942 = vsub.s32 1, %v1941
    %v1943 = vrot.slane %v1934, %v1942
    %v1944 = vlaneseq
    %v1945 = vshrl.u32 %v1944, 7
    %v1946 = vsub.s32 2, %v1945
    %v1947 = vrot.slane %v1934, %v1946
    %1951 = vmatprep.subr.mxu0 %v1931
    %1952 = vmatpush1.msra.mxu0 %v1930
    %1953 = vmatprep.subr.mxu0 %v1928
    %1954 = vmatpush1.msra.mxu0 %v1927
    %1955 = vmatprep.subr.mxu0 %v1925
    %1956 = vmatpush1.msra.mxu0 %v1924
    %1957 = vmatprep.subr.mxu0 %v1922
    %1958 = vmatpush1.msra.mxu0 %v1921
    %1959 = vmatprep.subr.mxu0 %v1919
    %1960 = vmatpush1.msra.mxu0 %v1918
    %1961 = vmatprep.subr.mxu0 %v1916
    %1962 = vmatpush1.msra.mxu0 %v1915
    %1963 = vmatprep.subr.mxu0 %v1913
    %1964 = vmatpush1.msra.mxu0 %v1912
    %1965 = vmatprep.subr.mxu0 %v1910
    %1966 = vmatpush1.msra.mxu0 %v1909
    %1967 = vmatprep.subr.mxu0 %v1907
    %1968 = vmatpush1.msra.mxu0 %v1906
    %1969 = vmatprep.subr.mxu0 %v1904
    %1970 = vmatpush1.msra.mxu0 %v1903
    %1971 = vmatprep.subr.mxu0 %v1901
    %1972 = vmatpush1.msra.mxu0 %v1900
    %1973 = vmatprep.subr.mxu0 %v1898
    %1974 = vmatpush1.msra.mxu0 %v1897
    %1975 = vmatprep.subr.mxu0 %v1895
    %1976 = vmatpush1.msra.mxu0 %v1894
    %1977 = vmatprep.subr.mxu0 %v1892
    %1978 = vmatpush1.msra.mxu0 %v1891
    %1979 = vmatprep.subr.mxu0 %v1889
    %1980 = vmatpush1.msra.mxu0 %v1888
    %1981 = vmatprep.subr.mxu0 %v1886
    %1982 = vmatpush1.msra.mxu0 %v1885
    %1983 = vmatprep.subr.mxu0 0.0
    %1984 = vmatpush2.msra.mxu0 0.0
    %1985 = vmatprep.subr.mxu0 0.0
    %1986 = vmatpush2.msra.mxu0 0.0
    %1987 = vmatprep.subr.mxu0 0.0
    %1988 = vmatpush2.msra.mxu0 0.0
    %1989 = vmatprep.subr.mxu0 0.0
    %1990 = vmatpush2.msra.mxu0 0.0
    %1991 = vmatprep.subr.mxu0 0.0
    %1992 = vmatpush2.msra.mxu0 0.0
    %1993 = vmatprep.subr.mxu0 0.0
    %1994 = vmatpush2.msra.mxu0 0.0
    %1995 = vmatprep.subr.mxu0 0.0
    %1996 = vmatpush2.msra.mxu0 0.0
    %1997 = vmatprep.subr.mxu0 0.0
    %1998 = vmatpush2.msra.mxu0 0.0
    %1999 = vmatprep.subr.mxu0 0.0
    %2000 = vmatpush2.msra.mxu0 0.0
    %2001 = vmatprep.subr.mxu0 0.0
    %2002 = vmatpush2.msra.mxu0 0.0
    %2003 = vmatprep.subr.mxu0 0.0
    %2004 = vmatpush2.msra.mxu0 0.0
    %2005 = vmatprep.subr.mxu0 0.0
    %2006 = vmatpush2.msra.mxu0 0.0
    %2007 = vmatprep.subr.mxu0 0.0
    %2008 = vmatpush2.msra.mxu0 0.0
    %2009 = vmatprep.subr.mxu0 0.0
    %2010 = vmatpush2.msra.mxu0 0.0
    %2011 = vmatprep.subr.mxu0 0.0
    %2012 = vmatpush2.msra.mxu0 0.0
    %2013 = vmatprep.subr.mxu0 0.0
    %2014 = vmatpush2.msra.mxu0 0.0
    %2015 = vmatprep.mubr.f32.mxu0 0.0
    %2016 = vmatmul.mubr.f32.gmra.mxu0 %v1882
    %v2017 = vpop.f32.mrf.mxu0
    %v2018 = vadd.f32 %v1939, %v2017
    %v2019 = vpop.f32.mrf.mxu0
    %v2020 = vadd.f32 %v1943, %v2019
    %2021 = vmatprep.mubr.f32.mxu0 0.0
    %2022 = vmatmul.mubr.f32.gmra.mxu0 %v1883
    %v2023 = vpop.f32.mrf.mxu0
    %v2024 = vadd.f32 %v1939, %v2023
    %v2025 = vpop.f32.mrf.mxu0
    %v2026 = vadd.f32 %v1943, %v2025
    %2027 = vdwg.mxu0
    %2028 = vmatprep.subr.mxu0 0.0
    %2029 = vmatpush1.msra.mxu0 %v1932
    %2030 = vmatprep.subr.mxu0 0.0
    %2031 = vmatpush1.msra.mxu0 %v1929
    %2032 = vmatprep.subr.mxu0 0.0
    %2033 = vmatpush1.msra.mxu0 %v1926
    %2034 = vmatprep.subr.mxu0 0.0
    %2035 = vmatpush1.msra.mxu0 %v1923
    %2036 = vmatprep.subr.mxu0 0.0
    %2037 = vmatpush1.msra.mxu0 %v1920
    %2038 = vmatprep.subr.mxu0 0.0
    %2039 = vmatpush1.msra.mxu0 %v1917
    %2040 = vmatprep.subr.mxu0 0.0
    %2041 = vmatpush1.msra.mxu0 %v1914
    %2042 = vmatprep.subr.mxu0 0.0
    %2043 = vmatpush1.msra.mxu0 %v1911
    %2044 = vmatprep.subr.mxu0 0.0
    %2045 = vmatpush1.msra.mxu0 %v1908
    %2046 = vmatprep.subr.mxu0 0.0
    %2047 = vmatpush1.msra.mxu0 %v1905
    %2048 = vmatprep.subr.mxu0 0.0
    %2049 = vmatpush1.msra.mxu0 %v1902
    %2050 = vmatprep.subr.mxu0 0.0
    %2051 = vmatpush1.msra.mxu0 %v1899
    %2052 = vmatprep.subr.mxu0 0.0
    %2053 = vmatpush1.msra.mxu0 %v1896
    %2054 = vmatprep.subr.mxu0 0.0
    %2055 = vmatpush1.msra.mxu0 %v1893
    %2056 = vmatprep.subr.mxu0 0.0
    %2057 = vmatpush1.msra.mxu0 %v1890
    %2058 = vmatprep.subr.mxu0 0.0
    %2059 = vmatpush1.msra.mxu0 %v1887
    %2060 = vmatprep.subr.mxu0 0.0
    %2061 = vmatpush2.msra.mxu0 0.0
    %2062 = vmatprep.subr.mxu0 0.0
    %2063 = vmatpush2.msra.mxu0 0.0
    %2064 = vmatprep.subr.mxu0 0.0
    %2065 = vmatpush2.msra.mxu0 0.0
    %2066 = vmatprep.subr.mxu0 0.0
    %2067 = vmatpush2.msra.mxu0 0.0
    %2068 = vmatprep.subr.mxu0 0.0
    %2069 = vmatpush2.msra.mxu0 0.0
    %2070 = vmatprep.subr.mxu0 0.0
    %2071 = vmatpush2.msra.mxu0 0.0
    %2072 = vmatprep.subr.mxu0 0.0
    %2073 = vmatpush2.msra.mxu0 0.0
    %2074 = vmatprep.subr.mxu0 0.0
    %2075 = vmatpush2.msra.mxu0 0.0
    %2076 = vmatprep.subr.mxu0 0.0
    %2077 = vmatpush2.msra.mxu0 0.0
    %2078 = vmatprep.subr.mxu0 0.0
    %2079 = vmatpush2.msra.mxu0 0.0
    %2080 = vmatprep.subr.mxu0 0.0
    %2081 = vmatpush2.msra.mxu0 0.0
    %2082 = vmatprep.subr.mxu0 0.0
    %2083 = vmatpush2.msra.mxu0 0.0
    %2084 = vmatprep.subr.mxu0 0.0
    %2085 = vmatpush2.msra.mxu0 0.0
    %2086 = vmatprep.subr.mxu0 0.0
    %2087 = vmatpush2.msra.mxu0 0.0
    %2088 = vmatprep.subr.mxu0 0.0
    %2089 = vmatpush2.msra.mxu0 0.0
    %2090 = vmatprep.subr.mxu0 0.0
    %2091 = vmatpush2.msra.mxu0 0.0
    %2092 = vmatprep.mubr.f32.mxu0 0.0
    %2093 = vmatmul.mubr.f32.gmra.mxu0 %v1882
    %v2094 = vpop.f32.mrf.mxu0
    %v2095 = vadd.f32 %v1947, %v2094
    %v2096 = vpop.f32.mrf.mxu0
    %2097 = vmatprep.mubr.f32.mxu0 0.0
    %2098 = vmatmul.mubr.f32.gmra.mxu0 %v1883
    %v2099 = vpop.f32.mrf.mxu0
    %v2100 = vadd.f32 %v1947, %v2099
    %v2101 = vpop.f32.mrf.mxu0
    %2102 = vdwg.mxu0
    %v2103 = vmul.f32 %v2018, 0.17677669
    %v2104 = vmul.f32 %v2024, 0.17677669
    %v2106 = vsel %vm600, %v2103, 0
    %v2109 = vsel %vm600, %v2104, 0
    %v2112 = vsel %vm600, %v2020, 0
    %v2115 = vsel %vm600, %v2026, 0
    %2117 = vmatprep.subr.mxu0 0.0
    %2118 = vmatpush1.xpose.msra.mxu0 0.0
    %2119 = vmatprep.subr.mxu0 0.0
    %2120 = vmatpush1.xpose.msra.mxu0 0.0
    %2121 = vmatprep.subr.mxu0 0.0
    %2122 = vmatpush1.xpose.msra.mxu0 0.0
    %2123 = vmatprep.subr.mxu0 0.0
    %2124 = vmatpush1.xpose.msra.mxu0 0.0
    %2125 = vmatprep.subr.mxu0 0.0
    %2126 = vmatpush1.xpose.msra.mxu0 0.0
    %2127 = vmatprep.subr.mxu0 0.0
    %2128 = vmatpush1.xpose.msra.mxu0 0.0
    %2129 = vmatprep.subr.mxu0 0.0
    %2130 = vmatpush1.xpose.msra.mxu0 0.0
    %2131 = vmatprep.subr.mxu0 0.0
    %2132 = vmatpush1.xpose.msra.mxu0 0.0
    %2133 = vmatprep.subr.mxu0 0.0
    %2134 = vmatpush1.xpose.msra.mxu0 0.0
    %2135 = vmatprep.subr.mxu0 0.0
    %2136 = vmatpush1.xpose.msra.mxu0 0.0
    %2137 = vmatprep.subr.mxu0 0.0
    %2138 = vmatpush1.xpose.msra.mxu0 0.0
    %2139 = vmatprep.subr.mxu0 0.0
    %2140 = vmatpush1.xpose.msra.mxu0 0.0
    %2141 = vmatprep.subr.mxu0 0.0
    %2142 = vmatpush1.xpose.msra.mxu0 0.0
    %2143 = vmatprep.subr.mxu0 0.0
    %2144 = vmatpush1.xpose.msra.mxu0 0.0
    %2145 = vmatprep.subr.mxu0 0.0
    %2146 = vmatpush1.xpose.msra.mxu0 %v2115
    %2147 = vmatprep.subr.mxu0 0.0
    %2148 = vmatpush1.xpose.msra.mxu0 %v2112
    %2149 = vmatprep.subr.mxu0 0.0
    %2150 = vmatpush2.xpose.msra.mxu0 0.0
    %2151 = vmatprep.subr.mxu0 0.0
    %2152 = vmatpush2.xpose.msra.mxu0 0.0
    %2153 = vmatprep.subr.mxu0 0.0
    %2154 = vmatpush2.xpose.msra.mxu0 0.0
    %2155 = vmatprep.subr.mxu0 0.0
    %2156 = vmatpush2.xpose.msra.mxu0 0.0
    %2157 = vmatprep.subr.mxu0 0.0
    %2158 = vmatpush2.xpose.msra.mxu0 0.0
    %2159 = vmatprep.subr.mxu0 0.0
    %2160 = vmatpush2.xpose.msra.mxu0 0.0
    %2161 = vmatprep.subr.mxu0 0.0
    %2162 = vmatpush2.xpose.msra.mxu0 0.0
    %2163 = vmatprep.subr.mxu0 0.0
    %2164 = vmatpush2.xpose.msra.mxu0 0.0
    %2165 = vmatprep.subr.mxu0 0.0
    %2166 = vmatpush2.xpose.msra.mxu0 0.0
    %2167 = vmatprep.subr.mxu0 0.0
    %2168 = vmatpush2.xpose.msra.mxu0 0.0
    %2169 = vmatprep.subr.mxu0 0.0
    %2170 = vmatpush2.xpose.msra.mxu0 0.0
    %2171 = vmatprep.subr.mxu0 0.0
    %2172 = vmatpush2.xpose.msra.mxu0 0.0
    %2173 = vmatprep.subr.mxu0 0.0
    %2174 = vmatpush2.xpose.msra.mxu0 0.0
    %2175 = vmatprep.subr.mxu0 0.0
    %2176 = vmatpush2.xpose.msra.mxu0 0.0
    %2177 = vmatprep.subr.mxu0 0.0
    %2178 = vmatpush2.xpose.msra.mxu0 0.0
    %2179 = vmatprep.subr.mxu0 0.0
    %2180 = vmatpush2.xpose.msra.mxu0 0.0
    %2181 = vmatprep.mubr.f32.mxu0 0.0
    %2182 = vmatmul.mubr.f32.gmra.mxu0 %v2106
    %v2183 = vpop.f32.mrf.mxu0
    %v2184 = vadd.f32 %v379, %v2183
    %v2185 = vpop.f32.mrf.mxu0
    %2186 = vmatprep.mubr.f32.mxu0 0.0
    %2187 = vmatmul.mubr.f32.gmra.mxu0 %v2109
    %v2188 = vpop.f32.mrf.mxu0
    %v2189 = vadd.f32 %v380, %v2188
    %v2190 = vpop.f32.mrf.mxu0
    %2191 = vdwg.mxu0
    %v2192 = vsel %vm688, %v2184, -inf
    %2193 = vmax.xlane.f32.xlu0 %v2192
    %v2194 = vpop.xlane.xlu0 %2193
    %v2195 = vsel %vm688, %v2189, -inf
    %2196 = vmax.xlane.f32.xlu0 %v2195
    %v2197 = vpop.xlane.xlu0 %2196
    %v2198 = vsub.f32 %v2184, %v2194
    %v2199 = vsub.f32 %v2189, %v2197
    %v2200 = vmul.f32 %v2198, 1.442695
    %v2201 = vpow.pop %v2200
    %v2202 = vmul.f32 %v2199, 1.442695
    %v2203 = vpow.pop %v2202
    %v2204 = vsel %vm688, %v2201, 0.0
    %2205 = vadd.xlane.f32.xlu0 %v2204
    %v2206 = vpop.xlane.xlu0 %2205
    %v2207 = vsel %vm688, %v2203, 0.0
    %2208 = vadd.xlane.f32.xlu0 %v2207
    %v2209 = vpop.xlane.xlu0 %2208
    %v2210 = vrcp.pop %v2206
    %v2211 = vrcp.pop %v2209
    %v2212 = vmul.f32 %v2201, %v2210
    %v2213 = vmul.f32 %v2203, %v2211
    %v2215 = vsel %vm688, %v2212, 0
    %v2218 = vsel %vm688, %v2213, 0
    %2220 = vmatprep.subr.mxu0 0.0
    %2221 = vmatpush1.msra.mxu0 0.0
    %2222 = vmatprep.subr.mxu0 0.0
    %2223 = vmatpush1.msra.mxu0 0.0
    %2224 = vmatprep.subr.mxu0 0.0
    %2225 = vmatpush1.msra.mxu0 0.0
    %2226 = vmatprep.subr.mxu0 0.0
    %2227 = vmatpush1.msra.mxu0 0.0
    %2228 = vmatprep.subr.mxu0 0.0
    %2229 = vmatpush1.msra.mxu0 0.0
    %2230 = vmatprep.subr.mxu0 0.0
    %2231 = vmatpush1.msra.mxu0 0.0
    %2232 = vmatprep.subr.mxu0 0.0
    %2233 = vmatpush1.msra.mxu0 0.0
    %2234 = vmatprep.subr.mxu0 0.0
    %2235 = vmatpush1.msra.mxu0 0.0
    %2236 = vmatprep.subr.mxu0 0.0
    %2237 = vmatpush1.msra.mxu0 0.0
    %2238 = vmatprep.subr.mxu0 0.0
    %2239 = vmatpush1.msra.mxu0 0.0
    %2240 = vmatprep.subr.mxu0 0.0
    %2241 = vmatpush1.msra.mxu0 0.0
    %2242 = vmatprep.subr.mxu0 0.0
    %2243 = vmatpush1.msra.mxu0 0.0
    %2244 = vmatprep.subr.mxu0 0.0
    %2245 = vmatpush1.msra.mxu0 0.0
    %2246 = vmatprep.subr.mxu0 0.0
    %2247 = vmatpush1.msra.mxu0 0.0
    %2248 = vmatprep.subr.mxu0 0.0
    %2249 = vmatpush1.msra.mxu0 %v2100
    %2250 = vmatprep.subr.mxu0 0.0
    %2251 = vmatpush1.msra.mxu0 %v2095
    %2252 = vmatprep.subr.mxu0 0.0
    %2253 = vmatpush2.msra.mxu0 0.0
    %2254 = vmatprep.subr.mxu0 0.0
    %2255 = vmatpush2.msra.mxu0 0.0
    %2256 = vmatprep.subr.mxu0 0.0
    %2257 = vmatpush2.msra.mxu0 0.0
    %2258 = vmatprep.subr.mxu0 0.0
    %2259 = vmatpush2.msra.mxu0 0.0
    %2260 = vmatprep.subr.mxu0 0.0
    %2261 = vmatpush2.msra.mxu0 0.0
    %2262 = vmatprep.subr.mxu0 0.0
    %2263 = vmatpush2.msra.mxu0 0.0
    %2264 = vmatprep.subr.mxu0 0.0
    %2265 = vmatpush2.msra.mxu0 0.0
    %2266 = vmatprep.subr.mxu0 0.0
    %2267 = vmatpush2.msra.mxu0 0.0
    %2268 = vmatprep.subr.mxu0 0.0
    %2269 = vmatpush2.msra.mxu0 0.0
    %2270 = vmatprep.subr.mxu0 0.0
    %2271 = vmatpush2.msra.mxu0 0.0
    %2272 = vmatprep.subr.mxu0 0.0
    %2273 = vmatpush2.msra.mxu0 0.0
    %2274 = vmatprep.subr.mxu0 0.0
    %2275 = vmatpush2.msra.mxu0 0.0
    %2276 = vmatprep.subr.mxu0 0.0
    %2277 = vmatpush2.msra.mxu0 0.0
    %2278 = vmatprep.subr.mxu0 0.0
    %2279 = vmatpush2.msra.mxu0 0.0
    %2280 = vmatprep.subr.mxu0 0.0
    %2281 = vmatpush2.msra.mxu0 0.0
    %2282 = vmatprep.subr.mxu0 0.0
    %2283 = vmatpush2.msra.mxu0 0.0
    %2284 = vmatprep.mubr.f32.mxu0 0.0
    %2285 = vmatmul.mubr.f32.gmra.mxu0 %v2215
    %v2286 = vpop.f32.mrf.mxu0
    %v2287 = vadd.f32 0.0, %v2286
    %v2288 = vpop.f32.mrf.mxu0
    %2289 = vmatprep.mubr.f32.mxu0 0.0
    %2290 = vmatmul.mubr.f32.gmra.mxu0 %v2218
    %v2291 = vpop.f32.mrf.mxu0
    %v2292 = vadd.f32 0.0, %v2291
    %v2293 = vpop.f32.mrf.mxu0
    %2294 = vdwg.mxu0
    %2295 = vst.msk [vmem:[#allocation2] sm:$0xff] %vm600, %v2287
    %2296 = vst.msk [vmem:[#allocation2 + $0x8] sm:$0xff] %vm600, %v2292
    %2297 = vrot.lane.b32.xlu0 %v2103, 96
    %v2298 = vpop.permute.xlu0 %2297
    %2299 = vrot.lane.b32.xlu0 %v2104, 96
    %v2300 = vpop.permute.xlu0 %2299
    %2301 = vrot.lane.b32.xlu0 %v2020, 96
    %v2302 = vpop.permute.xlu0 %2301
    %2303 = vrot.lane.b32.xlu0 %v2026, 96
    %v2304 = vpop.permute.xlu0 %2303
    %v2305 = vsel %vm600, %v2298, 0
    %v2307 = vsel %vm600, %v2300, 0
    %v2309 = vsel %vm600, %v2302, 0
    %v2311 = vsel %vm600, %v2304, 0
    %2313 = vmatprep.subr.mxu0 0.0
    %2314 = vmatpush1.xpose.msra.mxu0 0.0
    %2315 = vmatprep.subr.mxu0 0.0
    %2316 = vmatpush1.xpose.msra.mxu0 0.0
    %2317 = vmatprep.subr.mxu0 0.0
    %2318 = vmatpush1.xpose.msra.mxu0 0.0
    %2319 = vmatprep.subr.mxu0 0.0
    %2320 = vmatpush1.xpose.msra.mxu0 0.0
    %2321 = vmatprep.subr.mxu0 0.0
    %2322 = vmatpush1.xpose.msra.mxu0 0.0
    %2323 = vmatprep.subr.mxu0 0.0
    %2324 = vmatpush1.xpose.msra.mxu0 0.0
    %2325 = vmatprep.subr.mxu0 0.0
    %2326 = vmatpush1.xpose.msra.mxu0 0.0
    %2327 = vmatprep.subr.mxu0 0.0
    %2328 = vmatpush1.xpose.msra.mxu0 0.0
    %2329 = vmatprep.subr.mxu0 0.0
    %2330 = vmatpush1.xpose.msra.mxu0 0.0
    %2331 = vmatprep.subr.mxu0 0.0
    %2332 = vmatpush1.xpose.msra.mxu0 0.0
    %2333 = vmatprep.subr.mxu0 0.0
    %2334 = vmatpush1.xpose.msra.mxu0 0.0
    %2335 = vmatprep.subr.mxu0 0.0
    %2336 = vmatpush1.xpose.msra.mxu0 0.0
    %2337 = vmatprep.subr.mxu0 0.0
    %2338 = vmatpush1.xpose.msra.mxu0 0.0
    %2339 = vmatprep.subr.mxu0 0.0
    %2340 = vmatpush1.xpose.msra.mxu0 0.0
    %2341 = vmatprep.subr.mxu0 0.0
    %2342 = vmatpush1.xpose.msra.mxu0 %v2311
    %2343 = vmatprep.subr.mxu0 0.0
    %2344 = vmatpush1.xpose.msra.mxu0 %v2309
    %2345 = vmatprep.subr.mxu0 0.0
    %2346 = vmatpush2.xpose.msra.mxu0 0.0
    %2347 = vmatprep.subr.mxu0 0.0
    %2348 = vmatpush2.xpose.msra.mxu0 0.0
    %2349 = vmatprep.subr.mxu0 0.0
    %2350 = vmatpush2.xpose.msra.mxu0 0.0
    %2351 = vmatprep.subr.mxu0 0.0
    %2352 = vmatpush2.xpose.msra.mxu0 0.0
    %2353 = vmatprep.subr.mxu0 0.0
    %2354 = vmatpush2.xpose.msra.mxu0 0.0
    %2355 = vmatprep.subr.mxu0 0.0
    %2356 = vmatpush2.xpose.msra.mxu0 0.0
    %2357 = vmatprep.subr.mxu0 0.0
    %2358 = vmatpush2.xpose.msra.mxu0 0.0
    %2359 = vmatprep.subr.mxu0 0.0
    %2360 = vmatpush2.xpose.msra.mxu0 0.0
    %2361 = vmatprep.subr.mxu0 0.0
    %2362 = vmatpush2.xpose.msra.mxu0 0.0
    %2363 = vmatprep.subr.mxu0 0.0
    %2364 = vmatpush2.xpose.msra.mxu0 0.0
    %2365 = vmatprep.subr.mxu0 0.0
    %2366 = vmatpush2.xpose.msra.mxu0 0.0
    %2367 = vmatprep.subr.mxu0 0.0
    %2368 = vmatpush2.xpose.msra.mxu0 0.0
    %2369 = vmatprep.subr.mxu0 0.0
    %2370 = vmatpush2.xpose.msra.mxu0 0.0
    %2371 = vmatprep.subr.mxu0 0.0
    %2372 = vmatpush2.xpose.msra.mxu0 0.0
    %2373 = vmatprep.subr.mxu0 0.0
    %2374 = vmatpush2.xpose.msra.mxu0 0.0
    %2375 = vmatprep.subr.mxu0 0.0
    %2376 = vmatpush2.xpose.msra.mxu0 0.0
    %2377 = vmatprep.mubr.f32.mxu0 0.0
    %2378 = vmatmul.mubr.f32.gmra.mxu0 %v2305
    %v2379 = vpop.f32.mrf.mxu0
    %v2380 = vadd.f32 %v379, %v2379
    %v2381 = vpop.f32.mrf.mxu0
    %2382 = vmatprep.mubr.f32.mxu0 0.0
    %2383 = vmatmul.mubr.f32.gmra.mxu0 %v2307
    %v2384 = vpop.f32.mrf.mxu0
    %v2385 = vadd.f32 %v380, %v2384
    %v2386 = vpop.f32.mrf.mxu0
    %2387 = vdwg.mxu0
    %v2388 = vsel %vm688, %v2380, -inf
    %2389 = vmax.xlane.f32.xlu0 %v2388
    %v2390 = vpop.xlane.xlu0 %2389
    %v2391 = vsel %vm688, %v2385, -inf
    %2392 = vmax.xlane.f32.xlu0 %v2391
    %v2393 = vpop.xlane.xlu0 %2392
    %v2394 = vsub.f32 %v2380, %v2390
    %v2395 = vsub.f32 %v2385, %v2393
    %v2396 = vmul.f32 %v2394, 1.442695
    %v2397 = vpow.pop %v2396
    %v2398 = vmul.f32 %v2395, 1.442695
    %v2399 = vpow.pop %v2398
    %v2400 = vsel %vm688, %v2397, 0.0
    %2401 = vadd.xlane.f32.xlu0 %v2400
    %v2402 = vpop.xlane.xlu0 %2401
    %v2403 = vsel %vm688, %v2399, 0.0
    %2404 = vadd.xlane.f32.xlu0 %v2403
    %v2405 = vpop.xlane.xlu0 %2404
    %v2406 = vrcp.pop %v2402
    %v2407 = vrcp.pop %v2405
    %v2408 = vmul.f32 %v2397, %v2406
    %v2409 = vmul.f32 %v2399, %v2407
    %2412 = vrot.lane.b32.xlu0 %v2095, 96
    %v2413 = vpop.permute.xlu0 %2412
    %2414 = vrot.lane.b32.xlu0 %v2100, 96
    %v2415 = vpop.permute.xlu0 %2414
    %v2419 = vsel %vm688, %v2408, 0
    %v2422 = vsel %vm688, %v2409, 0
    %2424 = vmatprep.subr.mxu0 0.0
    %2425 = vmatpush1.msra.mxu0 0.0
    %2426 = vmatprep.subr.mxu0 0.0
    %2427 = vmatpush1.msra.mxu0 0.0
    %2428 = vmatprep.subr.mxu0 0.0
    %2429 = vmatpush1.msra.mxu0 0.0
    %2430 = vmatprep.subr.mxu0 0.0
    %2431 = vmatpush1.msra.mxu0 0.0
    %2432 = vmatprep.subr.mxu0 0.0
    %2433 = vmatpush1.msra.mxu0 0.0
    %2434 = vmatprep.subr.mxu0 0.0
    %2435 = vmatpush1.msra.mxu0 0.0
    %2436 = vmatprep.subr.mxu0 0.0
    %2437 = vmatpush1.msra.mxu0 0.0
    %2438 = vmatprep.subr.mxu0 0.0
    %2439 = vmatpush1.msra.mxu0 0.0
    %2440 = vmatprep.subr.mxu0 0.0
    %2441 = vmatpush1.msra.mxu0 0.0
    %2442 = vmatprep.subr.mxu0 0.0
    %2443 = vmatpush1.msra.mxu0 0.0
    %2444 = vmatprep.subr.mxu0 0.0
    %2445 = vmatpush1.msra.mxu0 0.0
    %2446 = vmatprep.subr.mxu0 0.0
    %2447 = vmatpush1.msra.mxu0 0.0
    %2448 = vmatprep.subr.mxu0 0.0
    %2449 = vmatpush1.msra.mxu0 0.0
    %2450 = vmatprep.subr.mxu0 0.0
    %2451 = vmatpush1.msra.mxu0 0.0
    %2452 = vmatprep.subr.mxu0 0.0
    %2453 = vmatpush1.msra.mxu0 %v2415
    %2454 = vmatprep.subr.mxu0 0.0
    %2455 = vmatpush1.msra.mxu0 %v2413
    %2456 = vmatprep.subr.mxu0 0.0
    %2457 = vmatpush2.msra.mxu0 0.0
    %2458 = vmatprep.subr.mxu0 0.0
    %2459 = vmatpush2.msra.mxu0 0.0
    %2460 = vmatprep.subr.mxu0 0.0
    %2461 = vmatpush2.msra.mxu0 0.0
    %2462 = vmatprep.subr.mxu0 0.0
    %2463 = vmatpush2.msra.mxu0 0.0
    %2464 = vmatprep.subr.mxu0 0.0
    %2465 = vmatpush2.msra.mxu0 0.0
    %2466 = vmatprep.subr.mxu0 0.0
    %2467 = vmatpush2.msra.mxu0 0.0
    %2468 = vmatprep.subr.mxu0 0.0
    %2469 = vmatpush2.msra.mxu0 0.0
    %2470 = vmatprep.subr.mxu0 0.0
    %2471 = vmatpush2.msra.mxu0 0.0
    %2472 = vmatprep.subr.mxu0 0.0
    %2473 = vmatpush2.msra.mxu0 0.0
    %2474 = vmatprep.subr.mxu0 0.0
    %2475 = vmatpush2.msra.mxu0 0.0
    %2476 = vmatprep.subr.mxu0 0.0
    %2477 = vmatpush2.msra.mxu0 0.0
    %2478 = vmatprep.subr.mxu0 0.0
    %2479 = vmatpush2.msra.mxu0 0.0
    %2480 = vmatprep.subr.mxu0 0.0
    %2481 = vmatpush2.msra.mxu0 0.0
    %2482 = vmatprep.subr.mxu0 0.0
    %2483 = vmatpush2.msra.mxu0 0.0
    %2484 = vmatprep.subr.mxu0 0.0
    %2485 = vmatpush2.msra.mxu0 0.0
    %2486 = vmatprep.subr.mxu0 0.0
    %2487 = vmatpush2.msra.mxu0 0.0
    %2488 = vmatprep.mubr.f32.mxu0 0.0
    %2489 = vmatmul.mubr.f32.gmra.mxu0 %v2419
    %v2490 = vpop.f32.mrf.mxu0
    %v2491 = vadd.f32 0.0, %v2490
    %v2492 = vpop.f32.mrf.mxu0
    %2493 = vmatprep.mubr.f32.mxu0 0.0
    %2494 = vmatmul.mubr.f32.gmra.mxu0 %v2422
    %v2495 = vpop.f32.mrf.mxu0
    %v2496 = vadd.f32 0.0, %v2495
    %v2497 = vpop.f32.mrf.mxu0
    %2498 = vdwg.mxu0
    %2501 = vrot.lane.b32.xlu0 %v2491, 32
    %v2502 = vpop.permute.xlu0 %2501
    %2503 = vrot.lane.b32.xlu0 %v2496, 32
    %v2504 = vpop.permute.xlu0 %2503
    %2507 = vst.msk [vmem:[#allocation2] sm:$0xff] %vm1004, %v2502
    %2508 = vst.msk [vmem:[#allocation2 + $0x8] sm:$0xff] %vm1004, %v2504
    %2509 = vrot.lane.b32.xlu0 %v2103, 64
    %v2510 = vpop.permute.xlu0 %2509
    %2511 = vrot.lane.b32.xlu0 %v2104, 64
    %v2512 = vpop.permute.xlu0 %2511
    %2513 = vrot.lane.b32.xlu0 %v2020, 64
    %v2514 = vpop.permute.xlu0 %2513
    %2515 = vrot.lane.b32.xlu0 %v2026, 64
    %v2516 = vpop.permute.xlu0 %2515
    %v2517 = vsel %vm600, %v2510, 0
    %v2519 = vsel %vm600, %v2512, 0
    %v2521 = vsel %vm600, %v2514, 0
    %v2523 = vsel %vm600, %v2516, 0
    %2525 = vmatprep.subr.mxu0 0.0
    %2526 = vmatpush1.xpose.msra.mxu0 0.0
    %2527 = vmatprep.subr.mxu0 0.0
    %2528 = vmatpush1.xpose.msra.mxu0 0.0
    %2529 = vmatprep.subr.mxu0 0.0
    %2530 = vmatpush1.xpose.msra.mxu0 0.0
    %2531 = vmatprep.subr.mxu0 0.0
    %2532 = vmatpush1.xpose.msra.mxu0 0.0
    %2533 = vmatprep.subr.mxu0 0.0
    %2534 = vmatpush1.xpose.msra.mxu0 0.0
    %2535 = vmatprep.subr.mxu0 0.0
    %2536 = vmatpush1.xpose.msra.mxu0 0.0
    %2537 = vmatprep.subr.mxu0 0.0
    %2538 = vmatpush1.xpose.msra.mxu0 0.0
    %2539 = vmatprep.subr.mxu0 0.0
    %2540 = vmatpush1.xpose.msra.mxu0 0.0
    %2541 = vmatprep.subr.mxu0 0.0
    %2542 = vmatpush1.xpose.msra.mxu0 0.0
    %2543 = vmatprep.subr.mxu0 0.0
    %2544 = vmatpush1.xpose.msra.mxu0 0.0
    %2545 = vmatprep.subr.mxu0 0.0
    %2546 = vmatpush1.xpose.msra.mxu0 0.0
    %2547 = vmatprep.subr.mxu0 0.0
    %2548 = vmatpush1.xpose.msra.mxu0 0.0
    %2549 = vmatprep.subr.mxu0 0.0
    %2550 = vmatpush1.xpose.msra.mxu0 0.0
    %2551 = vmatprep.subr.mxu0 0.0
    %2552 = vmatpush1.xpose.msra.mxu0 0.0
    %2553 = vmatprep.subr.mxu0 0.0
    %2554 = vmatpush1.xpose.msra.mxu0 %v2523
    %2555 = vmatprep.subr.mxu0 0.0
    %2556 = vmatpush1.xpose.msra.mxu0 %v2521
    %2557 = vmatprep.subr.mxu0 0.0
    %2558 = vmatpush2.xpose.msra.mxu0 0.0
    %2559 = vmatprep.subr.mxu0 0.0
    %2560 = vmatpush2.xpose.msra.mxu0 0.0
    %2561 = vmatprep.subr.mxu0 0.0
    %2562 = vmatpush2.xpose.msra.mxu0 0.0
    %2563 = vmatprep.subr.mxu0 0.0
    %2564 = vmatpush2.xpose.msra.mxu0 0.0
    %2565 = vmatprep.subr.mxu0 0.0
    %2566 = vmatpush2.xpose.msra.mxu0 0.0
    %2567 = vmatprep.subr.mxu0 0.0
    %2568 = vmatpush2.xpose.msra.mxu0 0.0
    %2569 = vmatprep.subr.mxu0 0.0
    %2570 = vmatpush2.xpose.msra.mxu0 0.0
    %2571 = vmatprep.subr.mxu0 0.0
    %2572 = vmatpush2.xpose.msra.mxu0 0.0
    %2573 = vmatprep.subr.mxu0 0.0
    %2574 = vmatpush2.xpose.msra.mxu0 0.0
    %2575 = vmatprep.subr.mxu0 0.0
    %2576 = vmatpush2.xpose.msra.mxu0 0.0
    %2577 = vmatprep.subr.mxu0 0.0
    %2578 = vmatpush2.xpose.msra.mxu0 0.0
    %2579 = vmatprep.subr.mxu0 0.0
    %2580 = vmatpush2.xpose.msra.mxu0 0.0
    %2581 = vmatprep.subr.mxu0 0.0
    %2582 = vmatpush2.xpose.msra.mxu0 0.0
    %2583 = vmatprep.subr.mxu0 0.0
    %2584 = vmatpush2.xpose.msra.mxu0 0.0
    %2585 = vmatprep.subr.mxu0 0.0
    %2586 = vmatpush2.xpose.msra.mxu0 0.0
    %2587 = vmatprep.subr.mxu0 0.0
    %2588 = vmatpush2.xpose.msra.mxu0 0.0
    %2589 = vmatprep.mubr.f32.mxu0 0.0
    %2590 = vmatmul.mubr.f32.gmra.mxu0 %v2517
    %v2591 = vpop.f32.mrf.mxu0
    %v2592 = vadd.f32 %v379, %v2591
    %v2593 = vpop.f32.mrf.mxu0
    %2594 = vmatprep.mubr.f32.mxu0 0.0
    %2595 = vmatmul.mubr.f32.gmra.mxu0 %v2519
    %v2596 = vpop.f32.mrf.mxu0
    %v2597 = vadd.f32 %v380, %v2596
    %v2598 = vpop.f32.mrf.mxu0
    %2599 = vdwg.mxu0
    %v2600 = vsel %vm688, %v2592, -inf
    %2601 = vmax.xlane.f32.xlu0 %v2600
    %v2602 = vpop.xlane.xlu0 %2601
    %v2603 = vsel %vm688, %v2597, -inf
    %2604 = vmax.xlane.f32.xlu0 %v2603
    %v2605 = vpop.xlane.xlu0 %2604
    %v2606 = vsub.f32 %v2592, %v2602
    %v2607 = vsub.f32 %v2597, %v2605
    %v2608 = vmul.f32 %v2606, 1.442695
    %v2609 = vpow.pop %v2608
    %v2610 = vmul.f32 %v2607, 1.442695
    %v2611 = vpow.pop %v2610
    %v2612 = vsel %vm688, %v2609, 0.0
    %2613 = vadd.xlane.f32.xlu0 %v2612
    %v2614 = vpop.xlane.xlu0 %2613
    %v2615 = vsel %vm688, %v2611, 0.0
    %2616 = vadd.xlane.f32.xlu0 %v2615
    %v2617 = vpop.xlane.xlu0 %2616
    %v2618 = vrcp.pop %v2614
    %v2619 = vrcp.pop %v2617
    %v2620 = vmul.f32 %v2609, %v2618
    %v2621 = vmul.f32 %v2611, %v2619
    %2622 = vrot.lane.b32.xlu0 %v2095, 64
    %v2623 = vpop.permute.xlu0 %2622
    %2624 = vrot.lane.b32.xlu0 %v2100, 64
    %v2625 = vpop.permute.xlu0 %2624
    %v2629 = vsel %vm688, %v2620, 0
    %v2632 = vsel %vm688, %v2621, 0
    %2634 = vmatprep.subr.mxu0 0.0
    %2635 = vmatpush1.msra.mxu0 0.0
    %2636 = vmatprep.subr.mxu0 0.0
    %2637 = vmatpush1.msra.mxu0 0.0
    %2638 = vmatprep.subr.mxu0 0.0
    %2639 = vmatpush1.msra.mxu0 0.0
    %2640 = vmatprep.subr.mxu0 0.0
    %2641 = vmatpush1.msra.mxu0 0.0
    %2642 = vmatprep.subr.mxu0 0.0
    %2643 = vmatpush1.msra.mxu0 0.0
    %2644 = vmatprep.subr.mxu0 0.0
    %2645 = vmatpush1.msra.mxu0 0.0
    %2646 = vmatprep.subr.mxu0 0.0
    %2647 = vmatpush1.msra.mxu0 0.0
    %2648 = vmatprep.subr.mxu0 0.0
    %2649 = vmatpush1.msra.mxu0 0.0
    %2650 = vmatprep.subr.mxu0 0.0
    %2651 = vmatpush1.msra.mxu0 0.0
    %2652 = vmatprep.subr.mxu0 0.0
    %2653 = vmatpush1.msra.mxu0 0.0
    %2654 = vmatprep.subr.mxu0 0.0
    %2655 = vmatpush1.msra.mxu0 0.0
    %2656 = vmatprep.subr.mxu0 0.0
    %2657 = vmatpush1.msra.mxu0 0.0
    %2658 = vmatprep.subr.mxu0 0.0
    %2659 = vmatpush1.msra.mxu0 0.0
    %2660 = vmatprep.subr.mxu0 0.0
    %2661 = vmatpush1.msra.mxu0 0.0
    %2662 = vmatprep.subr.mxu0 0.0
    %2663 = vmatpush1.msra.mxu0 %v2625
    %2664 = vmatprep.subr.mxu0 0.0
    %2665 = vmatpush1.msra.mxu0 %v2623
    %2666 = vmatprep.subr.mxu0 0.0
    %2667 = vmatpush2.msra.mxu0 0.0
    %2668 = vmatprep.subr.mxu0 0.0
    %2669 = vmatpush2.msra.mxu0 0.0
    %2670 = vmatprep.subr.mxu0 0.0
    %2671 = vmatpush2.msra.mxu0 0.0
    %2672 = vmatprep.subr.mxu0 0.0
    %2673 = vmatpush2.msra.mxu0 0.0
    %2674 = vmatprep.subr.mxu0 0.0
    %2675 = vmatpush2.msra.mxu0 0.0
    %2676 = vmatprep.subr.mxu0 0.0
    %2677 = vmatpush2.msra.mxu0 0.0
    %2678 = vmatprep.subr.mxu0 0.0
    %2679 = vmatpush2.msra.mxu0 0.0
    %2680 = vmatprep.subr.mxu0 0.0
    %2681 = vmatpush2.msra.mxu0 0.0
    %2682 = vmatprep.subr.mxu0 0.0
    %2683 = vmatpush2.msra.mxu0 0.0
    %2684 = vmatprep.subr.mxu0 0.0
    %2685 = vmatpush2.msra.mxu0 0.0
    %2686 = vmatprep.subr.mxu0 0.0
    %2687 = vmatpush2.msra.mxu0 0.0
    %2688 = vmatprep.subr.mxu0 0.0
    %2689 = vmatpush2.msra.mxu0 0.0
    %2690 = vmatprep.subr.mxu0 0.0
    %2691 = vmatpush2.msra.mxu0 0.0
    %2692 = vmatprep.subr.mxu0 0.0
    %2693 = vmatpush2.msra.mxu0 0.0
    %2694 = vmatprep.subr.mxu0 0.0
    %2695 = vmatpush2.msra.mxu0 0.0
    %2696 = vmatprep.subr.mxu0 0.0
    %2697 = vmatpush2.msra.mxu0 0.0
    %2698 = vmatprep.mubr.f32.mxu0 0.0
    %2699 = vmatmul.mubr.f32.gmra.mxu0 %v2629
    %v2700 = vpop.f32.mrf.mxu0
    %v2701 = vadd.f32 0.0, %v2700
    %v2702 = vpop.f32.mrf.mxu0
    %2703 = vmatprep.mubr.f32.mxu0 0.0
    %2704 = vmatmul.mubr.f32.gmra.mxu0 %v2632
    %v2705 = vpop.f32.mrf.mxu0
    %v2706 = vadd.f32 0.0, %v2705
    %v2707 = vpop.f32.mrf.mxu0
    %2708 = vdwg.mxu0
    %2711 = vrot.lane.b32.xlu0 %v2701, 64
    %v2712 = vpop.permute.xlu0 %2711
    %2713 = vrot.lane.b32.xlu0 %v2706, 64
    %v2714 = vpop.permute.xlu0 %2713
    %2717 = vst.msk [vmem:[#allocation2] sm:$0xff] %vm1215, %v2712
    %2718 = vst.msk [vmem:[#allocation2 + $0x8] sm:$0xff] %vm1215, %v2714
    %2719 = vrot.lane.b32.xlu0 %v2103, 32
    %v2720 = vpop.permute.xlu0 %2719
    %2721 = vrot.lane.b32.xlu0 %v2104, 32
    %v2722 = vpop.permute.xlu0 %2721
    %2723 = vrot.lane.b32.xlu0 %v2020, 32
    %v2724 = vpop.permute.xlu0 %2723
    %2725 = vrot.lane.b32.xlu0 %v2026, 32
    %v2726 = vpop.permute.xlu0 %2725
    %v2727 = vsel %vm600, %v2720, 0
    %v2729 = vsel %vm600, %v2722, 0
    %v2731 = vsel %vm600, %v2724, 0
    %v2733 = vsel %vm600, %v2726, 0
    %2735 = vmatprep.subr.mxu0 0.0
    %2736 = vmatpush1.xpose.msra.mxu0 0.0
    %2737 = vmatprep.subr.mxu0 0.0
    %2738 = vmatpush1.xpose.msra.mxu0 0.0
    %2739 = vmatprep.subr.mxu0 0.0
    %2740 = vmatpush1.xpose.msra.mxu0 0.0
    %2741 = vmatprep.subr.mxu0 0.0
    %2742 = vmatpush1.xpose.msra.mxu0 0.0
    %2743 = vmatprep.subr.mxu0 0.0
    %2744 = vmatpush1.xpose.msra.mxu0 0.0
    %2745 = vmatprep.subr.mxu0 0.0
    %2746 = vmatpush1.xpose.msra.mxu0 0.0
    %2747 = vmatprep.subr.mxu0 0.0
    %2748 = vmatpush1.xpose.msra.mxu0 0.0
    %2749 = vmatprep.subr.mxu0 0.0
    %2750 = vmatpush1.xpose.msra.mxu0 0.0
    %2751 = vmatprep.subr.mxu0 0.0
    %2752 = vmatpush1.xpose.msra.mxu0 0.0
    %2753 = vmatprep.subr.mxu0 0.0
    %2754 = vmatpush1.xpose.msra.mxu0 0.0
    %2755 = vmatprep.subr.mxu0 0.0
    %2756 = vmatpush1.xpose.msra.mxu0 0.0
    %2757 = vmatprep.subr.mxu0 0.0
    %2758 = vmatpush1.xpose.msra.mxu0 0.0
    %2759 = vmatprep.subr.mxu0 0.0
    %2760 = vmatpush1.xpose.msra.mxu0 0.0
    %2761 = vmatprep.subr.mxu0 0.0
    %2762 = vmatpush1.xpose.msra.mxu0 0.0
    %2763 = vmatprep.subr.mxu0 0.0
    %2764 = vmatpush1.xpose.msra.mxu0 %v2733
    %2765 = vmatprep.subr.mxu0 0.0
    %2766 = vmatpush1.xpose.msra.mxu0 %v2731
    %2767 = vmatprep.subr.mxu0 0.0
    %2768 = vmatpush2.xpose.msra.mxu0 0.0
    %2769 = vmatprep.subr.mxu0 0.0
    %2770 = vmatpush2.xpose.msra.mxu0 0.0
    %2771 = vmatprep.subr.mxu0 0.0
    %2772 = vmatpush2.xpose.msra.mxu0 0.0
    %2773 = vmatprep.subr.mxu0 0.0
    %2774 = vmatpush2.xpose.msra.mxu0 0.0
    %2775 = vmatprep.subr.mxu0 0.0
    %2776 = vmatpush2.xpose.msra.mxu0 0.0
    %2777 = vmatprep.subr.mxu0 0.0
    %2778 = vmatpush2.xpose.msra.mxu0 0.0
    %2779 = vmatprep.subr.mxu0 0.0
    %2780 = vmatpush2.xpose.msra.mxu0 0.0
    %2781 = vmatprep.subr.mxu0 0.0
    %2782 = vmatpush2.xpose.msra.mxu0 0.0
    %2783 = vmatprep.subr.mxu0 0.0
    %2784 = vmatpush2.xpose.msra.mxu0 0.0
    %2785 = vmatprep.subr.mxu0 0.0
    %2786 = vmatpush2.xpose.msra.mxu0 0.0
    %2787 = vmatprep.subr.mxu0 0.0
    %2788 = vmatpush2.xpose.msra.mxu0 0.0
    %2789 = vmatprep.subr.mxu0 0.0
    %2790 = vmatpush2.xpose.msra.mxu0 0.0
    %2791 = vmatprep.subr.mxu0 0.0
    %2792 = vmatpush2.xpose.msra.mxu0 0.0
    %2793 = vmatprep.subr.mxu0 0.0
    %2794 = vmatpush2.xpose.msra.mxu0 0.0
    %2795 = vmatprep.subr.mxu0 0.0
    %2796 = vmatpush2.xpose.msra.mxu0 0.0
    %2797 = vmatprep.subr.mxu0 0.0
    %2798 = vmatpush2.xpose.msra.mxu0 0.0
    %2799 = vmatprep.mubr.f32.mxu0 0.0
    %2800 = vmatmul.mubr.f32.gmra.mxu0 %v2727
    %v2801 = vpop.f32.mrf.mxu0
    %v2802 = vadd.f32 %v379, %v2801
    %v2803 = vpop.f32.mrf.mxu0
    %2804 = vmatprep.mubr.f32.mxu0 0.0
    %2805 = vmatmul.mubr.f32.gmra.mxu0 %v2729
    %v2806 = vpop.f32.mrf.mxu0
    %v2807 = vadd.f32 %v380, %v2806
    %v2808 = vpop.f32.mrf.mxu0
    %2809 = vdwg.mxu0
    %v2810 = vsel %vm688, %v2802, -inf
    %2811 = vmax.xlane.f32.xlu0 %v2810
    %v2812 = vpop.xlane.xlu0 %2811
    %v2813 = vsel %vm688, %v2807, -inf
    %2814 = vmax.xlane.f32.xlu0 %v2813
    %v2815 = vpop.xlane.xlu0 %2814
    %v2816 = vsub.f32 %v2802, %v2812
    %v2817 = vsub.f32 %v2807, %v2815
    %v2818 = vmul.f32 %v2816, 1.442695
    %v2819 = vpow.pop %v2818
    %v2820 = vmul.f32 %v2817, 1.442695
    %v2821 = vpow.pop %v2820
    %v2822 = vsel %vm688, %v2819, 0.0
    %2823 = vadd.xlane.f32.xlu0 %v2822
    %v2824 = vpop.xlane.xlu0 %2823
    %v2825 = vsel %vm688, %v2821, 0.0
    %2826 = vadd.xlane.f32.xlu0 %v2825
    %v2827 = vpop.xlane.xlu0 %2826
    %v2828 = vrcp.pop %v2824
    %v2829 = vrcp.pop %v2827
    %v2830 = vmul.f32 %v2819, %v2828
    %v2831 = vmul.f32 %v2821, %v2829
    %2832 = vrot.lane.b32.xlu0 %v2095, 32
    %v2833 = vpop.permute.xlu0 %2832
    %2834 = vrot.lane.b32.xlu0 %v2100, 32
    %v2835 = vpop.permute.xlu0 %2834
    %v2839 = vsel %vm688, %v2830, 0
    %v2842 = vsel %vm688, %v2831, 0
    %2844 = vmatprep.subr.mxu0 0.0
    %2845 = vmatpush1.msra.mxu0 0.0
    %2846 = vmatprep.subr.mxu0 0.0
    %2847 = vmatpush1.msra.mxu0 0.0
    %2848 = vmatprep.subr.mxu0 0.0
    %2849 = vmatpush1.msra.mxu0 0.0
    %2850 = vmatprep.subr.mxu0 0.0
    %2851 = vmatpush1.msra.mxu0 0.0
    %2852 = vmatprep.subr.mxu0 0.0
    %2853 = vmatpush1.msra.mxu0 0.0
    %2854 = vmatprep.subr.mxu0 0.0
    %2855 = vmatpush1.msra.mxu0 0.0
    %2856 = vmatprep.subr.mxu0 0.0
    %2857 = vmatpush1.msra.mxu0 0.0
    %2858 = vmatprep.subr.mxu0 0.0
    %2859 = vmatpush1.msra.mxu0 0.0
    %2860 = vmatprep.subr.mxu0 0.0
    %2861 = vmatpush1.msra.mxu0 0.0
    %2862 = vmatprep.subr.mxu0 0.0
    %2863 = vmatpush1.msra.mxu0 0.0
    %2864 = vmatprep.subr.mxu0 0.0
    %2865 = vmatpush1.msra.mxu0 0.0
    %2866 = vmatprep.subr.mxu0 0.0
    %2867 = vmatpush1.msra.mxu0 0.0
    %2868 = vmatprep.subr.mxu0 0.0
    %2869 = vmatpush1.msra.mxu0 0.0
    %2870 = vmatprep.subr.mxu0 0.0
    %2871 = vmatpush1.msra.mxu0 0.0
    %2872 = vmatprep.subr.mxu0 0.0
    %2873 = vmatpush1.msra.mxu0 %v2835
    %2874 = vmatprep.subr.mxu0 0.0
    %2875 = vmatpush1.msra.mxu0 %v2833
    %2876 = vmatprep.subr.mxu0 0.0
    %2877 = vmatpush2.msra.mxu0 0.0
    %2878 = vmatprep.subr.mxu0 0.0
    %2879 = vmatpush2.msra.mxu0 0.0
    %2880 = vmatprep.subr.mxu0 0.0
    %2881 = vmatpush2.msra.mxu0 0.0
    %2882 = vmatprep.subr.mxu0 0.0
    %2883 = vmatpush2.msra.mxu0 0.0
    %2884 = vmatprep.subr.mxu0 0.0
    %2885 = vmatpush2.msra.mxu0 0.0
    %2886 = vmatprep.subr.mxu0 0.0
    %2887 = vmatpush2.msra.mxu0 0.0
    %2888 = vmatprep.subr.mxu0 0.0
    %2889 = vmatpush2.msra.mxu0 0.0
    %2890 = vmatprep.subr.mxu0 0.0
    %2891 = vmatpush2.msra.mxu0 0.0
    %2892 = vmatprep.subr.mxu0 0.0
    %2893 = vmatpush2.msra.mxu0 0.0
    %2894 = vmatprep.subr.mxu0 0.0
    %2895 = vmatpush2.msra.mxu0 0.0
    %2896 = vmatprep.subr.mxu0 0.0
    %2897 = vmatpush2.msra.mxu0 0.0
    %2898 = vmatprep.subr.mxu0 0.0
    %2899 = vmatpush2.msra.mxu0 0.0
    %2900 = vmatprep.subr.mxu0 0.0
    %2901 = vmatpush2.msra.mxu0 0.0
    %2902 = vmatprep.subr.mxu0 0.0
    %2903 = vmatpush2.msra.mxu0 0.0
    %2904 = vmatprep.subr.mxu0 0.0
    %2905 = vmatpush2.msra.mxu0 0.0
    %2906 = vmatprep.subr.mxu0 0.0
    %2907 = vmatpush2.msra.mxu0 0.0
    %2908 = vmatprep.mubr.f32.mxu0 0.0
    %2909 = vmatmul.mubr.f32.gmra.mxu0 %v2839
    %v2910 = vpop.f32.mrf.mxu0
    %v2911 = vadd.f32 0.0, %v2910
    %v2912 = vpop.f32.mrf.mxu0
    %2913 = vmatprep.mubr.f32.mxu0 0.0
    %2914 = vmatmul.mubr.f32.gmra.mxu0 %v2842
    %v2915 = vpop.f32.mrf.mxu0
    %v2916 = vadd.f32 0.0, %v2915
    %v2917 = vpop.f32.mrf.mxu0
    %2918 = vdwg.mxu0
    %2921 = vrot.lane.b32.xlu0 %v2911, 96
    %v2922 = vpop.permute.xlu0 %2921
    %2923 = vrot.lane.b32.xlu0 %v2916, 96
    %v2924 = vpop.permute.xlu0 %2923
    %2927 = vst.msk [vmem:[#allocation2] sm:$0xff] %vm1426, %v2922
    %2928 = vst.msk [vmem:[#allocation2 + $0x8] sm:$0xff] %vm1426, %v2924
    %v2929 = vld [vmem:[#allocation2] sm:$0xff]
    %v2930 = vld [vmem:[#allocation2 + $0x8] sm:$0xff]
    %s2931 = scalar_lea.vmem [#allocation12], 128
    %v2932 = vld [vmem:[%s2931] sm:$0xff]
    %v2933 = vld [vmem:[%s2931 + $0x8] sm:$0xff]
    %v2934 = vld [vmem:[%s2931 + $0x10] sm:$0xff]
    %v2935 = vld [vmem:[%s2931 + $0x18] sm:$0xff]
    %v2936 = vld [vmem:[%s2931 + $0x20] sm:$0xff]
    %v2937 = vld [vmem:[%s2931 + $0x28] sm:$0xff]
    %v2938 = vld [vmem:[%s2931 + $0x30] sm:$0xff]
    %v2939 = vld [vmem:[%s2931 + $0x38] sm:$0xff]
    %v2940 = vld [vmem:[%s2931 + $0x40] sm:$0xff]
    %v2941 = vld [vmem:[%s2931 + $0x48] sm:$0xff]
    %v2942 = vld [vmem:[%s2931 + $0x50] sm:$0xff]
    %v2943 = vld [vmem:[%s2931 + $0x58] sm:$0xff]
    %v2944 = vld [vmem:[%s2931 + $0x60] sm:$0xff]
    %v2945 = vld [vmem:[%s2931 + $0x68] sm:$0xff]
    %v2946 = vld [vmem:[%s2931 + $0x70] sm:$0xff]
    %v2947 = vld [vmem:[%s2931 + $0x78] sm:$0xff]
    %s2948 = scalar_lea.vmem [#allocation14], 1
    %v2949 = vld [vmem:[%s2948] sm:$0x1]
    %v2951 = vlaneseq
    %v2952 = vshrl.u32 %v2951, 7
    %v2953 = vsub.s32 0, %v2952
    %v2954 = vrot.slane %v2949, %v2953
    %2956 = vmatprep.subr.mxu0 0.0
    %2957 = vmatpush1.msra.mxu0 %v2947
    %2958 = vmatprep.subr.mxu0 0.0
    %2959 = vmatpush1.msra.mxu0 %v2946
    %2960 = vmatprep.subr.mxu0 0.0
    %2961 = vmatpush1.msra.mxu0 %v2945
    %2962 = vmatprep.subr.mxu0 0.0
    %2963 = vmatpush1.msra.mxu0 %v2944
    %2964 = vmatprep.subr.mxu0 0.0
    %2965 = vmatpush1.msra.mxu0 %v2943
    %2966 = vmatprep.subr.mxu0 0.0
    %2967 = vmatpush1.msra.mxu0 %v2942
    %2968 = vmatprep.subr.mxu0 0.0
    %2969 = vmatpush1.msra.mxu0 %v2941
    %2970 = vmatprep.subr.mxu0 0.0
    %2971 = vmatpush1.msra.mxu0 %v2940
    %2972 = vmatprep.subr.mxu0 0.0
    %2973 = vmatpush1.msra.mxu0 %v2939
    %2974 = vmatprep.subr.mxu0 0.0
    %2975 = vmatpush1.msra.mxu0 %v2938
    %2976 = vmatprep.subr.mxu0 0.0
    %2977 = vmatpush1.msra.mxu0 %v2937
    %2978 = vmatprep.subr.mxu0 0.0
    %2979 = vmatpush1.msra.mxu0 %v2936
    %2980 = vmatprep.subr.mxu0 0.0
    %2981 = vmatpush1.msra.mxu0 %v2935
    %2982 = vmatprep.subr.mxu0 0.0
    %2983 = vmatpush1.msra.mxu0 %v2934
    %2984 = vmatprep.subr.mxu0 0.0
    %2985 = vmatpush1.msra.mxu0 %v2933
    %2986 = vmatprep.subr.mxu0 0.0
    %2987 = vmatpush1.msra.mxu0 %v2932
    %2988 = vmatprep.subr.mxu0 0.0
    %2989 = vmatpush2.msra.mxu0 0.0
    %2990 = vmatprep.subr.mxu0 0.0
    %2991 = vmatpush2.msra.mxu0 0.0
    %2992 = vmatprep.subr.mxu0 0.0
    %2993 = vmatpush2.msra.mxu0 0.0
    %2994 = vmatprep.subr.mxu0 0.0
    %2995 = vmatpush2.msra.mxu0 0.0
    %2996 = vmatprep.subr.mxu0 0.0
    %2997 = vmatpush2.msra.mxu0 0.0
    %2998 = vmatprep.subr.mxu0 0.0
    %2999 = vmatpush2.msra.mxu0 0.0
    %3000 = vmatprep.subr.mxu0 0.0
    %3001 = vmatpush2.msra.mxu0 0.0
    %3002 = vmatprep.subr.mxu0 0.0
    %3003 = vmatpush2.msra.mxu0 0.0
    %3004 = vmatprep.subr.mxu0 0.0
    %3005 = vmatpush2.msra.mxu0 0.0
    %3006 = vmatprep.subr.mxu0 0.0
    %3007 = vmatpush2.msra.mxu0 0.0
    %3008 = vmatprep.subr.mxu0 0.0
    %3009 = vmatpush2.msra.mxu0 0.0
    %3010 = vmatprep.subr.mxu0 0.0
    %3011 = vmatpush2.msra.mxu0 0.0
    %3012 = vmatprep.subr.mxu0 0.0
    %3013 = vmatpush2.msra.mxu0 0.0
    %3014 = vmatprep.subr.mxu0 0.0
    %3015 = vmatpush2.msra.mxu0 0.0
    %3016 = vmatprep.subr.mxu0 0.0
    %3017 = vmatpush2.msra.mxu0 0.0
    %3018 = vmatprep.subr.mxu0 0.0
    %3019 = vmatpush2.msra.mxu0 0.0
    %3020 = vmatprep.mubr.f32.mxu0 0.0
    %3021 = vmatmul.mubr.f32.gmra.mxu0 %v2929
    %v3022 = vpop.f32.mrf.mxu0
    %v3023 = vadd.f32 %v2954, %v3022
    %v3024 = vpop.f32.mrf.mxu0
    %3025 = vmatprep.mubr.f32.mxu0 0.0
    %3026 = vmatmul.mubr.f32.gmra.mxu0 %v2930
    %v3027 = vpop.f32.mrf.mxu0
    %v3028 = vadd.f32 %v2954, %v3027
    %v3029 = vpop.f32.mrf.mxu0
    %3030 = vdwg.mxu0
    %v3031 = vadd.f32 %v3023, %v1882
    %v3032 = vadd.f32 %v3028, %v1883
    %s3033 = scalar_lea.vmem [#allocation15], 1
    %v3034 = vld [vmem:[%s3033] sm:$0x1]
    %s3035 = scalar_lea.vmem [#allocation17], 1
    %v3036 = vld [vmem:[%s3035] sm:$0x1]
    %3037 = vadd.xlane.f32.xlu0 %v3031
    %v3038 = vpop.xlane.xlu0 %3037
    %3039 = vadd.xlane.f32.xlu0 %v3032
    %v3040 = vpop.xlane.xlu0 %3039
    %v3041 = vmul.f32 %v3038, %v344
    %v3042 = vmul.f32 %v3040, %v344
    %v3043 = vsub.f32 %v3031, %v3041
    %v3044 = vsub.f32 %v3032, %v3042
    %v3045 = vmul.f32 %v3043, %v3043
    %v3046 = vmul.f32 %v3044, %v3044
    %3047 = vadd.xlane.f32.xlu0 %v3045
    %v3048 = vpop.xlane.xlu0 %3047
    %3049 = vadd.xlane.f32.xlu0 %v3046
    %v3050 = vpop.xlane.xlu0 %3049
    %v3051 = vmul.f32 %v3048, %v344
    %v3052 = vmul.f32 %v3050, %v344
    %v3053 = vadd.f32 %v3051, 1e-12
    %v3054 = vadd.f32 %v3052, 1e-12
    %v3055 = vrsqrt.pop %v3053
    %v3056 = vrsqrt.pop %v3054
    %v3057 = vmul.f32 %v3043, %v3055
    %v3058 = vmul.f32 %v3044, %v3056
    %v3060 = vlaneseq
    %v3061 = vshrl.u32 %v3060, 7
    %v3062 = vsub.s32 0, %v3061
    %v3063 = vrot.slane %v3034, %v3062
    %v3065 = vmul.f32 %v3057, %v3063
    %v3066 = vmul.f32 %v3058, %v3063
    %v3068 = vlaneseq
    %v3069 = vshrl.u32 %v3068, 7
    %v3070 = vsub.s32 0, %v3069
    %v3071 = vrot.slane %v3036, %v3070
    %v3073 = vadd.f32 %v3065, %v3071
    %v3074 = vadd.f32 %v3066, %v3071
    %s3075 = scalar_lea.vmem [#allocation18], 256
    %v3076 = vld [vmem:[%s3075] sm:$0xff]
    %v3077 = vld [vmem:[%s3075 + $0x8] sm:$0xff]
    %v3078 = vld [vmem:[%s3075 + $0x10] sm:$0xff]
    %v3079 = vld [vmem:[%s3075 + $0x18] sm:$0xff]
    %v3080 = vld [vmem:[%s3075 + $0x20] sm:$0xff]
    %v3081 = vld [vmem:[%s3075 + $0x28] sm:$0xff]
    %v3082 = vld [vmem:[%s3075 + $0x30] sm:$0xff]
    %v3083 = vld [vmem:[%s3075 + $0x38] sm:$0xff]
    %v3084 = vld [vmem:[%s3075 + $0x40] sm:$0xff]
    %v3085 = vld [vmem:[%s3075 + $0x48] sm:$0xff]
    %v3086 = vld [vmem:[%s3075 + $0x50] sm:$0xff]
    %v3087 = vld [vmem:[%s3075 + $0x58] sm:$0xff]
    %v3088 = vld [vmem:[%s3075 + $0x60] sm:$0xff]
    %v3089 = vld [vmem:[%s3075 + $0x68] sm:$0xff]
    %v3090 = vld [vmem:[%s3075 + $0x70] sm:$0xff]
    %v3091 = vld [vmem:[%s3075 + $0x78] sm:$0xff]
    %v3092 = vld [vmem:[%s3075 + $0x80] sm:$0xff]
    %v3093 = vld [vmem:[%s3075 + $0x88] sm:$0xff]
    %v3094 = vld [vmem:[%s3075 + $0x90] sm:$0xff]
    %v3095 = vld [vmem:[%s3075 + $0x98] sm:$0xff]
    %v3096 = vld [vmem:[%s3075 + $0xa0] sm:$0xff]
    %v3097 = vld [vmem:[%s3075 + $0xa8] sm:$0xff]
    %v3098 = vld [vmem:[%s3075 + $0xb0] sm:$0xff]
    %v3099 = vld [vmem:[%s3075 + $0xb8] sm:$0xff]
    %v3100 = vld [vmem:[%s3075 + $0xc0] sm:$0xff]
    %v3101 = vld [vmem:[%s3075 + $0xc8] sm:$0xff]
    %v3102 = vld [vmem:[%s3075 + $0xd0] sm:$0xff]
    %v3103 = vld [vmem:[%s3075 + $0xd8] sm:$0xff]
    %v3104 = vld [vmem:[%s3075 + $0xe0] sm:$0xff]
    %v3105 = vld [vmem:[%s3075 + $0xe8] sm:$0xff]
    %v3106 = vld [vmem:[%s3075 + $0xf0] sm:$0xff]
    %v3107 = vld [vmem:[%s3075 + $0xf8] sm:$0xff]
    %s3108 = scalar_lea.vmem [#allocation20], 2
    %v3109 = vld [vmem:[%s3108] sm:$0x3]
    %v3111 = vlaneseq
    %v3112 = vshrl.u32 %v3111, 7
    %v3113 = vsub.s32 0, %v3112
    %v3114 = vrot.slane %v3109, %v3113
    %v3115 = vlaneseq
    %v3116 = vshrl.u32 %v3115, 7
    %v3117 = vsub.s32 1, %v3116
    %v3118 = vrot.slane %v3109, %v3117
    %3121 = vmatprep.subr.mxu0 %v3107
    %3122 = vmatpush1.msra.mxu0 %v3106
    %3123 = vmatprep.subr.mxu0 %v3105
    %3124 = vmatpush1.msra.mxu0 %v3104
    %3125 = vmatprep.subr.mxu0 %v3103
    %3126 = vmatpush1.msra.mxu0 %v3102
    %3127 = vmatprep.subr.mxu0 %v3101
    %3128 = vmatpush1.msra.mxu0 %v3100
    %3129 = vmatprep.subr.mxu0 %v3099
    %3130 = vmatpush1.msra.mxu0 %v3098
    %3131 = vmatprep.subr.mxu0 %v3097
    %3132 = vmatpush1.msra.mxu0 %v3096
    %3133 = vmatprep.subr.mxu0 %v3095
    %3134 = vmatpush1.msra.mxu0 %v3094
    %3135 = vmatprep.subr.mxu0 %v3093
    %3136 = vmatpush1.msra.mxu0 %v3092
    %3137 = vmatprep.subr.mxu0 %v3091
    %3138 = vmatpush1.msra.mxu0 %v3090
    %3139 = vmatprep.subr.mxu0 %v3089
    %3140 = vmatpush1.msra.mxu0 %v3088
    %3141 = vmatprep.subr.mxu0 %v3087
    %3142 = vmatpush1.msra.mxu0 %v3086
    %3143 = vmatprep.subr.mxu0 %v3085
    %3144 = vmatpush1.msra.mxu0 %v3084
    %3145 = vmatprep.subr.mxu0 %v3083
    %3146 = vmatpush1.msra.mxu0 %v3082
    %3147 = vmatprep.subr.mxu0 %v3081
    %3148 = vmatpush1.msra.mxu0 %v3080
    %3149 = vmatprep.subr.mxu0 %v3079
    %3150 = vmatpush1.msra.mxu0 %v3078
    %3151 = vmatprep.subr.mxu0 %v3077
    %3152 = vmatpush1.msra.mxu0 %v3076
    %3153 = vmatprep.subr.mxu0 0.0
    %3154 = vmatpush2.msra.mxu0 0.0
    %3155 = vmatprep.subr.mxu0 0.0
    %3156 = vmatpush2.msra.mxu0 0.0
    %3157 = vmatprep.subr.mxu0 0.0
    %3158 = vmatpush2.msra.mxu0 0.0
    %3159 = vmatprep.subr.mxu0 0.0
    %3160 = vmatpush2.msra.mxu0 0.0
    %3161 = vmatprep.subr.mxu0 0.0
    %3162 = vmatpush2.msra.mxu0 0.0
    %3163 = vmatprep.subr.mxu0 0.0
    %3164 = vmatpush2.msra.mxu0 0.0
    %3165 = vmatprep.subr.mxu0 0.0
    %3166 = vmatpush2.msra.mxu0 0.0
    %3167 = vmatprep.subr.mxu0 0.0
    %3168 = vmatpush2.msra.mxu0 0.0
    %3169 = vmatprep.subr.mxu0 0.0
    %3170 = vmatpush2.msra.mxu0 0.0
    %3171 = vmatprep.subr.mxu0 0.0
    %3172 = vmatpush2.msra.mxu0 0.0
    %3173 = vmatprep.subr.mxu0 0.0
    %3174 = vmatpush2.msra.mxu0 0.0
    %3175 = vmatprep.subr.mxu0 0.0
    %3176 = vmatpush2.msra.mxu0 0.0
    %3177 = vmatprep.subr.mxu0 0.0
    %3178 = vmatpush2.msra.mxu0 0.0
    %3179 = vmatprep.subr.mxu0 0.0
    %3180 = vmatpush2.msra.mxu0 0.0
    %3181 = vmatprep.subr.mxu0 0.0
    %3182 = vmatpush2.msra.mxu0 0.0
    %3183 = vmatprep.subr.mxu0 0.0
    %3184 = vmatpush2.msra.mxu0 0.0
    %3185 = vmatprep.mubr.f32.mxu0 0.0
    %3186 = vmatmul.mubr.f32.gmra.mxu0 %v3073
    %v3187 = vpop.f32.mrf.mxu0
    %v3188 = vadd.f32 %v3114, %v3187
    %v3189 = vpop.f32.mrf.mxu0
    %v3190 = vadd.f32 %v3118, %v3189
    %3191 = vmatprep.mubr.f32.mxu0 0.0
    %3192 = vmatmul.mubr.f32.gmra.mxu0 %v3074
    %v3193 = vpop.f32.mrf.mxu0
    %v3194 = vadd.f32 %v3114, %v3193
    %v3195 = vpop.f32.mrf.mxu0
    %v3196 = vadd.f32 %v3118, %v3195
    %3197 = vdwg.mxu0
    %v3198 = vmul.f32 %v3188, 0.5
    %v3199 = vmul.f32 %v3190, 0.5
    %v3200 = vmul.f32 %v3194, 0.5
    %v3201 = vmul.f32 %v3196, 0.5
    %v3202 = vmul.f32 %v3188, 0.044715
    %v3203 = vmul.f32 %v3190, 0.044715
    %v3204 = vmul.f32 %v3194, 0.044715
    %v3205 = vmul.f32 %v3196, 0.044715
    %v3206 = vmul.f32 %v3202, %v3188
    %v3207 = vmul.f32 %v3203, %v3190
    %v3208 = vmul.f32 %v3204, %v3194
    %v3209 = vmul.f32 %v3205, %v3196
    %v3210 = vmul.f32 %v3206, %v3188
    %v3211 = vmul.f32 %v3207, %v3190
    %v3212 = vmul.f32 %v3208, %v3194
    %v3213 = vmul.f32 %v3209, %v3196
    %v3214 = vadd.f32 %v3188, %v3210
    %v3215 = vadd.f32 %v3190, %v3211
    %v3216 = vadd.f32 %v3194, %v3212
    %v3217 = vadd.f32 %v3196, %v3213
    %v3218 = vmul.f32 %v3214, 0.7978846
    %v3219 = vmul.f32 %v3215, 0.7978846
    %v3220 = vmul.f32 %v3216, 0.7978846
    %v3221 = vmul.f32 %v3217, 0.7978846
    %v3222 = vtanh.pop %v3218
    %v3223 = vtanh.pop %v3219
    %v3224 = vtanh.pop %v3220
    %v3225 = vtanh.pop %v3221
    %v3226 = vadd.f32 %v3222, 1.0
    %v3227 = vadd.f32 %v3223, 1.0
    %v3228 = vadd.f32 %v3224, 1.0
    %v3229 = vadd.f32 %v3225, 1.0
    %v3230 = vmul.f32 %v3198, %v3226
    %v3231 = vmul.f32 %v3199, %v3227
    %v3232 = vmul.f32 %v3200, %v3228
    %v3233 = vmul.f32 %v3201, %v3229
    %s3234 = scalar_lea.vmem [#allocation21], 256
    %v3235 = vld [vmem:[%s3234] sm:$0xff]
    %v3236 = vld [vmem:[%s3234 + $0x8] sm:$0xff]
    %v3237 = vld [vmem:[%s3234 + $0x10] sm:$0xff]
    %v3238 = vld [vmem:[%s3234 + $0x18] sm:$0xff]
    %v3239 = vld [vmem:[%s3234 + $0x20] sm:$0xff]
    %v3240 = vld [vmem:[%s3234 + $0x28] sm:$0xff]
    %v3241 = vld [vmem:[%s3234 + $0x30] sm:$0xff]
    %v3242 = vld [vmem:[%s3234 + $0x38] sm:$0xff]
    %v3243 = vld [vmem:[%s3234 + $0x40] sm:$0xff]
    %v3244 = vld [vmem:[%s3234 + $0x48] sm:$0xff]
    %v3245 = vld [vmem:[%s3234 + $0x50] sm:$0xff]
    %v3246 = vld [vmem:[%s3234 + $0x58] sm:$0xff]
    %v3247 = vld [vmem:[%s3234 + $0x60] sm:$0xff]
    %v3248 = vld [vmem:[%s3234 + $0x68] sm:$0xff]
    %v3249 = vld [vmem:[%s3234 + $0x70] sm:$0xff]
    %v3250 = vld [vmem:[%s3234 + $0x78] sm:$0xff]
    %v3251 = vld [vmem:[%s3234 + $0x80] sm:$0xff]
    %v3252 = vld [vmem:[%s3234 + $0x88] sm:$0xff]
    %v3253 = vld [vmem:[%s3234 + $0x90] sm:$0xff]
    %v3254 = vld [vmem:[%s3234 + $0x98] sm:$0xff]
    %v3255 = vld [vmem:[%s3234 + $0xa0] sm:$0xff]
    %v3256 = vld [vmem:[%s3234 + $0xa8] sm:$0xff]
    %v3257 = vld [vmem:[%s3234 + $0xb0] sm:$0xff]
    %v3258 = vld [vmem:[%s3234 + $0xb8] sm:$0xff]
    %v3259 = vld [vmem:[%s3234 + $0xc0] sm:$0xff]
    %v3260 = vld [vmem:[%s3234 + $0xc8] sm:$0xff]
    %v3261 = vld [vmem:[%s3234 + $0xd0] sm:$0xff]
    %v3262 = vld [vmem:[%s3234 + $0xd8] sm:$0xff]
    %v3263 = vld [vmem:[%s3234 + $0xe0] sm:$0xff]
    %v3264 = vld [vmem:[%s3234 + $0xe8] sm:$0xff]
    %v3265 = vld [vmem:[%s3234 + $0xf0] sm:$0xff]
    %v3266 = vld [vmem:[%s3234 + $0xf8] sm:$0xff]
    %s3267 = scalar_lea.vmem [#allocation23], 1
    %v3268 = vld [vmem:[%s3267] sm:$0x1]
    %v3270 = vlaneseq
    %v3271 = vshrl.u32 %v3270, 7
    %v3272 = vsub.s32 0, %v3271
    %v3273 = vrot.slane %v3268, %v3272
    %3275 = vmatprep.subr.mxu0 0.0
    %3276 = vmatpush1.msra.mxu0 %v3250
    %3277 = vmatprep.subr.mxu0 0.0
    %3278 = vmatpush1.msra.mxu0 %v3249
    %3279 = vmatprep.subr.mxu0 0.0
    %3280 = vmatpush1.msra.mxu0 %v3248
    %3281 = vmatprep.subr.mxu0 0.0
    %3282 = vmatpush1.msra.mxu0 %v3247
    %3283 = vmatprep.subr.mxu0 0.0
    %3284 = vmatpush1.msra.mxu0 %v3246
    %3285 = vmatprep.subr.mxu0 0.0
    %3286 = vmatpush1.msra.mxu0 %v3245
    %3287 = vmatprep.subr.mxu0 0.0
    %3288 = vmatpush1.msra.mxu0 %v3244
    %3289 = vmatprep.subr.mxu0 0.0
    %3290 = vmatpush1.msra.mxu0 %v3243
    %3291 = vmatprep.subr.mxu0 0.0
    %3292 = vmatpush1.msra.mxu0 %v3242
    %3293 = vmatprep.subr.mxu0 0.0
    %3294 = vmatpush1.msra.mxu0 %v3241
    %3295 = vmatprep.subr.mxu0 0.0
    %3296 = vmatpush1.msra.mxu0 %v3240
    %3297 = vmatprep.subr.mxu0 0.0
    %3298 = vmatpush1.msra.mxu0 %v3239
    %3299 = vmatprep.subr.mxu0 0.0
    %3300 = vmatpush1.msra.mxu0 %v3238
    %3301 = vmatprep.subr.mxu0 0.0
    %3302 = vmatpush1.msra.mxu0 %v3237
    %3303 = vmatprep.subr.mxu0 0.0
    %3304 = vmatpush1.msra.mxu0 %v3236
    %3305 = vmatprep.subr.mxu0 0.0
    %3306 = vmatpush1.msra.mxu0 %v3235
    %3307 = vmatprep.subr.mxu0 0.0
    %3308 = vmatpush2.msra.mxu0 %v3266
    %3309 = vmatprep.subr.mxu0 0.0
    %3310 = vmatpush2.msra.mxu0 %v3265
    %3311 = vmatprep.subr.mxu0 0.0
    %3312 = vmatpush2.msra.mxu0 %v3264
    %3313 = vmatprep.subr.mxu0 0.0
    %3314 = vmatpush2.msra.mxu0 %v3263
    %3315 = vmatprep.subr.mxu0 0.0
    %3316 = vmatpush2.msra.mxu0 %v3262
    %3317 = vmatprep.subr.mxu0 0.0
    %3318 = vmatpush2.msra.mxu0 %v3261
    %3319 = vmatprep.subr.mxu0 0.0
    %3320 = vmatpush2.msra.mxu0 %v3260
    %3321 = vmatprep.subr.mxu0 0.0
    %3322 = vmatpush2.msra.mxu0 %v3259
    %3323 = vmatprep.subr.mxu0 0.0
    %3324 = vmatpush2.msra.mxu0 %v3258
    %3325 = vmatprep.subr.mxu0 0.0
    %3326 = vmatpush2.msra.mxu0 %v3257
    %3327 = vmatprep.subr.mxu0 0.0
    %3328 = vmatpush2.msra.mxu0 %v3256
    %3329 = vmatprep.subr.mxu0 0.0
    %3330 = vmatpush2.msra.mxu0 %v3255
    %3331 = vmatprep.subr.mxu0 0.0
    %3332 = vmatpush2.msra.mxu0 %v3254
    %3333 = vmatprep.subr.mxu0 0.0
    %3334 = vmatpush2.msra.mxu0 %v3253
    %3335 = vmatprep.subr.mxu0 0.0
    %3336 = vmatpush2.msra.mxu0 %v3252
    %3337 = vmatprep.subr.mxu0 0.0
    %3338 = vmatpush2.msra.mxu0 %v3251
    %3339 = vmatprep.mubr.f32.mxu0 %v3231
    %3340 = vmatmul.mubr.f32.gmra.mxu0 %v3230
    %v3341 = vpop.f32.mrf.mxu0
    %v3342 = vadd.f32 %v3273, %v3341
    %v3343 = vpop.f32.mrf.mxu0
    %3344 = vmatprep.mubr.f32.mxu0 %v3233
    %3345 = vmatmul.mubr.f32.gmra.mxu0 %v3232
    %v3346 = vpop.f32.mrf.mxu0
    %v3347 = vadd.f32 %v3273, %v3346
    %v3348 = vpop.f32.mrf.mxu0
    %3349 = vdwg.mxu0
    %v3350 = vadd.f32 %v3342, %v3073
    %v3351 = vadd.f32 %v3347, %v3074
    %s3352 = scalar_lea.vmem [#allocation24], 1
    %v3353 = vld [vmem:[%s3352] sm:$0x1]
    %s3354 = scalar_lea.vmem [#allocation26], 1
    %v3355 = vld [vmem:[%s3354] sm:$0x1]
    %3356 = vadd.xlane.f32.xlu0 %v3350
    %v3357 = vpop.xlane.xlu0 %3356
    %3358 = vadd.xlane.f32.xlu0 %v3351
    %v3359 = vpop.xlane.xlu0 %3358
    %v3360 = vmul.f32 %v3357, %v344
    %v3361 = vmul.f32 %v3359, %v344
    %v3362 = vsub.f32 %v3350, %v3360
    %v3363 = vsub.f32 %v3351, %v3361
    %v3364 = vmul.f32 %v3362, %v3362
    %v3365 = vmul.f32 %v3363, %v3363
    %3366 = vadd.xlane.f32.xlu0 %v3364
    %v3367 = vpop.xlane.xlu0 %3366
    %3368 = vadd.xlane.f32.xlu0 %v3365
    %v3369 = vpop.xlane.xlu0 %3368
    %v3370 = vmul.f32 %v3367, %v344
    %v3371 = vmul.f32 %v3369, %v344
    %v3372 = vadd.f32 %v3370, 1e-12
    %v3373 = vadd.f32 %v3371, 1e-12
    %v3374 = vrsqrt.pop %v3372
    %v3375 = vrsqrt.pop %v3373
    %v3376 = vmul.f32 %v3362, %v3374
    %v3377 = vmul.f32 %v3363, %v3375
    %v3379 = vlaneseq
    %v3380 = vshrl.u32 %v3379, 7
    %v3381 = vsub.s32 0, %v3380
    %v3382 = vrot.slane %v3353, %v3381
    %v3384 = vmul.f32 %v3376, %v3382
    %v3385 = vmul.f32 %v3377, %v3382
    %v3387 = vlaneseq
    %v3388 = vshrl.u32 %v3387, 7
    %v3389 = vsub.s32 0, %v3388
    %v3390 = vrot.slane %v3355, %v3389
    %v3392 = vadd.f32 %v3384, %v3390
    %v3393 = vadd.f32 %v3385, %v3390
    %v3394 = vld [vmem:[#allocation3] sm:$0x3]
    %v3396 = vsel %vm688, %v3394, 0
    %3398 = vmatprep.subr.mxu0 0.0
    %3399 = vmatpush1.msra.mxu0 0.0
    %3400 = vmatprep.subr.mxu0 0.0
    %3401 = vmatpush1.msra.mxu0 0.0
    %3402 = vmatprep.subr.mxu0 0.0
    %3403 = vmatpush1.msra.mxu0 0.0
    %3404 = vmatprep.subr.mxu0 0.0
    %3405 = vmatpush1.msra.mxu0 0.0
    %3406 = vmatprep.subr.mxu0 0.0
    %3407 = vmatpush1.msra.mxu0 0.0
    %3408 = vmatprep.subr.mxu0 0.0
    %3409 = vmatpush1.msra.mxu0 0.0
    %3410 = vmatprep.subr.mxu0 0.0
    %3411 = vmatpush1.msra.mxu0 0.0
    %3412 = vmatprep.subr.mxu0 0.0
    %3413 = vmatpush1.msra.mxu0 0.0
    %3414 = vmatprep.subr.mxu0 0.0
    %3415 = vmatpush1.msra.mxu0 0.0
    %3416 = vmatprep.subr.mxu0 0.0
    %3417 = vmatpush1.msra.mxu0 0.0
    %3418 = vmatprep.subr.mxu0 0.0
    %3419 = vmatpush1.msra.mxu0 0.0
    %3420 = vmatprep.subr.mxu0 0.0
    %3421 = vmatpush1.msra.mxu0 0.0
    %3422 = vmatprep.subr.mxu0 0.0
    %3423 = vmatpush1.msra.mxu0 0.0
    %3424 = vmatprep.subr.mxu0 0.0
    %3425 = vmatpush1.msra.mxu0 0.0
    %3426 = vmatprep.subr.mxu0 0.0
    %3427 = vmatpush1.msra.mxu0 %v3393
    %3428 = vmatprep.subr.mxu0 0.0
    %3429 = vmatpush1.msra.mxu0 %v3392
    %3430 = vmatprep.subr.mxu0 0.0
    %3431 = vmatpush2.msra.mxu0 0.0
    %3432 = vmatprep.subr.mxu0 0.0
    %3433 = vmatpush2.msra.mxu0 0.0
    %3434 = vmatprep.subr.mxu0 0.0
    %3435 = vmatpush2.msra.mxu0 0.0
    %3436 = vmatprep.subr.mxu0 0.0
    %3437 = vmatpush2.msra.mxu0 0.0
    %3438 = vmatprep.subr.mxu0 0.0
    %3439 = vmatpush2.msra.mxu0 0.0
    %3440 = vmatprep.subr.mxu0 0.0
    %3441 = vmatpush2.msra.mxu0 0.0
    %3442 = vmatprep.subr.mxu0 0.0
    %3443 = vmatpush2.msra.mxu0 0.0
    %3444 = vmatprep.subr.mxu0 0.0
    %3445 = vmatpush2.msra.mxu0 0.0
    %3446 = vmatprep.subr.mxu0 0.0
    %3447 = vmatpush2.msra.mxu0 0.0
    %3448 = vmatprep.subr.mxu0 0.0
    %3449 = vmatpush2.msra.mxu0 0.0
    %3450 = vmatprep.subr.mxu0 0.0
    %3451 = vmatpush2.msra.mxu0 0.0
    %3452 = vmatprep.subr.mxu0 0.0
    %3453 = vmatpush2.msra.mxu0 0.0
    %3454 = vmatprep.subr.mxu0 0.0
    %3455 = vmatpush2.msra.mxu0 0.0
    %3456 = vmatprep.subr.mxu0 0.0
    %3457 = vmatpush2.msra.mxu0 0.0
    %3458 = vmatprep.subr.mxu0 0.0
    %3459 = vmatpush2.msra.mxu0 0.0
    %3460 = vmatprep.subr.mxu0 0.0
    %3461 = vmatpush2.msra.mxu0 0.0
    %3462 = vmatprep.mubr.f32.mxu0 0.0
    %3463 = vmatmul.mubr.f32.gmra.mxu0 %v3396
    %v3464 = vpop.f32.mrf.mxu0
    %v3465 = vadd.f32 0.0, %v3464
    %v3466 = vpop.f32.mrf.mxu0
    %3467 = vdwg.mxu0
    %v3468 = vld [vmem:[%s17] sm:$0xff]
    %v3469 = vld [vmem:[%s17 + $0x8] sm:$0xff]
    %v3470 = vld [vmem:[%s17 + $0x10] sm:$0xff]
    %v3471 = vld [vmem:[%s17 + $0x18] sm:$0xff]
    %v3472 = vld [vmem:[%s17 + $0x20] sm:$0xff]
    %v3473 = vld [vmem:[%s17 + $0x28] sm:$0xff]
    %v3474 = vld [vmem:[%s17 + $0x30] sm:$0xff]
    %v3475 = vld [vmem:[%s17 + $0x38] sm:$0xff]
    %v3476 = vld [vmem:[%s17 + $0x40] sm:$0xff]
    %v3477 = vld [vmem:[%s17 + $0x48] sm:$0xff]
    %v3478 = vld [vmem:[%s17 + $0x50] sm:$0xff]
    %v3479 = vld [vmem:[%s17 + $0x58] sm:$0xff]
    %v3480 = vld [vmem:[%s17 + $0x60] sm:$0xff]
    %v3481 = vld [vmem:[%s17 + $0x68] sm:$0xff]
    %v3482 = vld [vmem:[%s17 + $0x70] sm:$0xff]
    %v3483 = vld [vmem:[%s17 + $0x78] sm:$0xff]
    %v3484 = vld [vmem:[#allocation27] sm:$0x1]
    %v3486 = vlaneseq
    %v3487 = vshrl.u32 %v3486, 7
    %v3488 = vsub.s32 0, %v3487
    %v3489 = vrot.slane %v3484, %v3488
    %3491 = vmatprep.subr.mxu0 0.0
    %3492 = vmatpush1.msra.mxu0 %v3483
    %3493 = vmatprep.subr.mxu0 0.0
    %3494 = vmatpush1.msra.mxu0 %v3482
    %3495 = vmatprep.subr.mxu0 0.0
    %3496 = vmatpush1.msra.mxu0 %v3481
    %3497 = vmatprep.subr.mxu0 0.0
    %3498 = vmatpush1.msra.mxu0 %v3480
    %3499 = vmatprep.subr.mxu0 0.0
    %3500 = vmatpush1.msra.mxu0 %v3479
    %3501 = vmatprep.subr.mxu0 0.0
    %3502 = vmatpush1.msra.mxu0 %v3478
    %3503 = vmatprep.subr.mxu0 0.0
    %3504 = vmatpush1.msra.mxu0 %v3477
    %3505 = vmatprep.subr.mxu0 0.0
    %3506 = vmatpush1.msra.mxu0 %v3476
    %3507 = vmatprep.subr.mxu0 0.0
    %3508 = vmatpush1.msra.mxu0 %v3475
    %3509 = vmatprep.subr.mxu0 0.0
    %3510 = vmatpush1.msra.mxu0 %v3474
    %3511 = vmatprep.subr.mxu0 0.0
    %3512 = vmatpush1.msra.mxu0 %v3473
    %3513 = vmatprep.subr.mxu0 0.0
    %3514 = vmatpush1.msra.mxu0 %v3472
    %3515 = vmatprep.subr.mxu0 0.0
    %3516 = vmatpush1.msra.mxu0 %v3471
    %3517 = vmatprep.subr.mxu0 0.0
    %3518 = vmatpush1.msra.mxu0 %v3470
    %3519 = vmatprep.subr.mxu0 0.0
    %3520 = vmatpush1.msra.mxu0 %v3469
    %3521 = vmatprep.subr.mxu0 0.0
    %3522 = vmatpush1.msra.mxu0 %v3468
    %3523 = vmatprep.subr.mxu0 0.0
    %3524 = vmatpush2.msra.mxu0 0.0
    %3525 = vmatprep.subr.mxu0 0.0
    %3526 = vmatpush2.msra.mxu0 0.0
    %3527 = vmatprep.subr.mxu0 0.0
    %3528 = vmatpush2.msra.mxu0 0.0
    %3529 = vmatprep.subr.mxu0 0.0
    %3530 = vmatpush2.msra.mxu0 0.0
    %3531 = vmatprep.subr.mxu0 0.0
    %3532 = vmatpush2.msra.mxu0 0.0
    %3533 = vmatprep.subr.mxu0 0.0
    %3534 = vmatpush2.msra.mxu0 0.0
    %3535 = vmatprep.subr.mxu0 0.0
    %3536 = vmatpush2.msra.mxu0 0.0
    %3537 = vmatprep.subr.mxu0 0.0
    %3538 = vmatpush2.msra.mxu0 0.0
    %3539 = vmatprep.subr.mxu0 0.0
    %3540 = vmatpush2.msra.mxu0 0.0
    %3541 = vmatprep.subr.mxu0 0.0
    %3542 = vmatpush2.msra.mxu0 0.0
    %3543 = vmatprep.subr.mxu0 0.0
    %3544 = vmatpush2.msra.mxu0 0.0
    %3545 = vmatprep.subr.mxu0 0.0
    %3546 = vmatpush2.msra.mxu0 0.0
    %3547 = vmatprep.subr.mxu0 0.0
    %3548 = vmatpush2.msra.mxu0 0.0
    %3549 = vmatprep.subr.mxu0 0.0
    %3550 = vmatpush2.msra.mxu0 0.0
    %3551 = vmatprep.subr.mxu0 0.0
    %3552 = vmatpush2.msra.mxu0 0.0
    %3553 = vmatprep.subr.mxu0 0.0
    %3554 = vmatpush2.msra.mxu0 0.0
    %3555 = vmatprep.mubr.f32.mxu0 0.0
    %3556 = vmatmul.mubr.f32.gmra.mxu0 %v3465
    %v3557 = vpop.f32.mrf.mxu0
    %v3558 = vadd.f32 %v3489, %v3557
    %v3559 = vpop.f32.mrf.mxu0
    %3560 = vdwg.mxu0
    %v3561 = vld [vmem:[#allocation29] sm:$0xff]
    %v3562 = vld [vmem:[#allocation29 + $0x8] sm:$0xff]
    %v3563 = vld [vmem:[#allocation29 + $0x10] sm:$0xff]
    %v3564 = vld [vmem:[#allocation29 + $0x18] sm:$0xff]
    %v3565 = vld [vmem:[#allocation29 + $0x20] sm:$0xff]
    %v3566 = vld [vmem:[#allocation29 + $0x28] sm:$0xff]
    %v3567 = vld [vmem:[#allocation29 + $0x30] sm:$0xff]
    %v3568 = vld [vmem:[#allocation29 + $0x38] sm:$0xff]
    %v3569 = vld [vmem:[#allocation29 + $0x40] sm:$0xff]
    %v3570 = vld [vmem:[#allocation29 + $0x48] sm:$0xff]
    %v3571 = vld [vmem:[#allocation29 + $0x50] sm:$0xff]
    %v3572 = vld [vmem:[#allocation29 + $0x58] sm:$0xff]
    %v3573 = vld [vmem:[#allocation29 + $0x60] sm:$0xff]
    %v3574 = vld [vmem:[#allocation29 + $0x68] sm:$0xff]
    %v3575 = vld [vmem:[#allocation29 + $0x70] sm:$0xff]
    %v3576 = vld [vmem:[#allocation29 + $0x78] sm:$0xff]
    %v3577 = vld [vmem:[#allocation29 + $0x80] sm:$0xff]
    %v3578 = vld [vmem:[#allocation29 + $0x88] sm:$0xff]
    %v3579 = vld [vmem:[#allocation29 + $0x90] sm:$0xff]
    %v3580 = vld [vmem:[#allocation29 + $0x98] sm:$0xff]
    %v3581 = vld [vmem:[#allocation29 + $0xa0] sm:$0xff]
    %v3582 = vld [vmem:[#allocation29 + $0xa8] sm:$0xff]
    %v3583 = vld [vmem:[#allocation29 + $0xb0] sm:$0xff]
    %v3584 = vld [vmem:[#allocation29 + $0xb8] sm:$0xff]
    %v3585 = vld [vmem:[#allocation29 + $0xc0] sm:$0xff]
    %v3586 = vld [vmem:[#allocation29 + $0xc8] sm:$0xff]
    %v3587 = vld [vmem:[#allocation29 + $0xd0] sm:$0xff]
    %v3588 = vld [vmem:[#allocation29 + $0xd8] sm:$0xff]
    %v3589 = vld [vmem:[#allocation29 + $0xe0] sm:$0xff]
    %v3590 = vld [vmem:[#allocation29 + $0xe8] sm:$0xff]
    %v3591 = vld [vmem:[#allocation29 + $0xf0] sm:$0xff]
    %v3592 = vld [vmem:[#allocation29 + $0xf8] sm:$0xff]
    %v3593 = vld [vmem:[%s20] sm:$0x3]
    %v3595 = vlaneseq
    %v3596 = vshrl.u32 %v3595, 7
    %v3597 = vsub.s32 0, %v3596
    %v3598 = vrot.slane %v3593, %v3597
    %v3599 = vlaneseq
    %v3600 = vshrl.u32 %v3599, 7
    %v3601 = vsub.s32 1, %v3600
    %v3602 = vrot.slane %v3593, %v3601
    %3605 = vmatprep.subr.mxu0 %v3592
    %3606 = vmatpush1.msra.mxu0 %v3591
    %3607 = vmatprep.subr.mxu0 %v3590
    %3608 = vmatpush1.msra.mxu0 %v3589
    %3609 = vmatprep.subr.mxu0 %v3588
    %3610 = vmatpush1.msra.mxu0 %v3587
    %3611 = vmatprep.subr.mxu0 %v3586
    %3612 = vmatpush1.msra.mxu0 %v3585
    %3613 = vmatprep.subr.mxu0 %v3584
    %3614 = vmatpush1.msra.mxu0 %v3583
    %3615 = vmatprep.subr.mxu0 %v3582
    %3616 = vmatpush1.msra.mxu0 %v3581
    %3617 = vmatprep.subr.mxu0 %v3580
    %3618 = vmatpush1.msra.mxu0 %v3579
    %3619 = vmatprep.subr.mxu0 %v3578
    %3620 = vmatpush1.msra.mxu0 %v3577
    %3621 = vmatprep.subr.mxu0 %v3576
    %3622 = vmatpush1.msra.mxu0 %v3575
    %3623 = vmatprep.subr.mxu0 %v3574
    %3624 = vmatpush1.msra.mxu0 %v3573
    %3625 = vmatprep.subr.mxu0 %v3572
    %3626 = vmatpush1.msra.mxu0 %v3571
    %3627 = vmatprep.subr.mxu0 %v3570
    %3628 = vmatpush1.msra.mxu0 %v3569
    %3629 = vmatprep.subr.mxu0 %v3568
    %3630 = vmatpush1.msra.mxu0 %v3567
    %3631 = vmatprep.subr.mxu0 %v3566
    %3632 = vmatpush1.msra.mxu0 %v3565
    %3633 = vmatprep.subr.mxu0 %v3564
    %3634 = vmatpush1.msra.mxu0 %v3563
    %3635 = vmatprep.subr.mxu0 %v3562
    %3636 = vmatpush1.msra.mxu0 %v3561
    %3637 = vmatprep.subr.mxu0 0.0
    %3638 = vmatpush2.msra.mxu0 0.0
    %3639 = vmatprep.subr.mxu0 0.0
    %3640 = vmatpush2.msra.mxu0 0.0
    %3641 = vmatprep.subr.mxu0 0.0
    %3642 = vmatpush2.msra.mxu0 0.0
    %3643 = vmatprep.subr.mxu0 0.0
    %3644 = vmatpush2.msra.mxu0 0.0
    %3645 = vmatprep.subr.mxu0 0.0
    %3646 = vmatpush2.msra.mxu0 0.0
    %3647 = vmatprep.subr.mxu0 0.0
    %3648 = vmatpush2.msra.mxu0 0.0
    %3649 = vmatprep.subr.mxu0 0.0
    %3650 = vmatpush2.msra.mxu0 0.0
    %3651 = vmatprep.subr.mxu0 0.0
    %3652 = vmatpush2.msra.mxu0 0.0
    %3653 = vmatprep.subr.mxu0 0.0
    %3654 = vmatpush2.msra.mxu0 0.0
    %3655 = vmatprep.subr.mxu0 0.0
    %3656 = vmatpush2.msra.mxu0 0.0
    %3657 = vmatprep.subr.mxu0 0.0
    %3658 = vmatpush2.msra.mxu0 0.0
    %3659 = vmatprep.subr.mxu0 0.0
    %3660 = vmatpush2.msra.mxu0 0.0
    %3661 = vmatprep.subr.mxu0 0.0
    %3662 = vmatpush2.msra.mxu0 0.0
    %3663 = vmatprep.subr.mxu0 0.0
    %3664 = vmatpush2.msra.mxu0 0.0
    %3665 = vmatprep.subr.mxu0 0.0
    %3666 = vmatpush2.msra.mxu0 0.0
    %3667 = vmatprep.subr.mxu0 0.0
    %3668 = vmatpush2.msra.mxu0 0.0
    %3669 = vmatprep.mubr.f32.mxu0 0.0
    %3670 = vmatmul.mubr.f32.gmra.mxu0 %v3558
    %v3671 = vpop.f32.mrf.mxu0
    %v3672 = vadd.f32 %v3598, %v3671
    %v3673 = vpop.f32.mrf.mxu0
    %v3674 = vadd.f32 %v3602, %v3673
    %3675 = vdwg.mxu0
    %v3676 = vmax.f32 %v3672, 0.0
    %v3677 = vmax.f32 %v3674, 0.0
    %v3678 = vld [vmem:[#allocation30] sm:$0xff]
    %v3679 = vld [vmem:[#allocation30 + $0x8] sm:$0xff]
    %v3680 = vld [vmem:[#allocation30 + $0x10] sm:$0xff]
    %v3681 = vld [vmem:[#allocation30 + $0x18] sm:$0xff]
    %v3682 = vld [vmem:[#allocation30 + $0x20] sm:$0xff]
    %v3683 = vld [vmem:[#allocation30 + $0x28] sm:$0xff]
    %v3684 = vld [vmem:[#allocation30 + $0x30] sm:$0xff]
    %v3685 = vld [vmem:[#allocation30 + $0x38] sm:$0xff]
    %v3686 = vld [vmem:[#allocation30 + $0x40] sm:$0xff]
    %v3687 = vld [vmem:[#allocation30 + $0x48] sm:$0xff]
    %v3688 = vld [vmem:[#allocation30 + $0x50] sm:$0xff]
    %v3689 = vld [vmem:[#allocation30 + $0x58] sm:$0xff]
    %v3690 = vld [vmem:[#allocation30 + $0x60] sm:$0xff]
    %v3691 = vld [vmem:[#allocation30 + $0x68] sm:$0xff]
    %v3692 = vld [vmem:[#allocation30 + $0x70] sm:$0xff]
    %v3693 = vld [vmem:[#allocation30 + $0x78] sm:$0xff]
    %v3694 = vld [vmem:[#allocation30 + $0x80] sm:$0xff]
    %v3695 = vld [vmem:[#allocation30 + $0x88] sm:$0xff]
    %v3696 = vld [vmem:[#allocation30 + $0x90] sm:$0xff]
    %v3697 = vld [vmem:[#allocation30 + $0x98] sm:$0xff]
    %v3698 = vld [vmem:[#allocation30 + $0xa0] sm:$0xff]
    %v3699 = vld [vmem:[#allocation30 + $0xa8] sm:$0xff]
    %v3700 = vld [vmem:[#allocation30 + $0xb0] sm:$0xff]
    %v3701 = vld [vmem:[#allocation30 + $0xb8] sm:$0xff]
    %v3702 = vld [vmem:[#allocation30 + $0xc0] sm:$0xff]
    %v3703 = vld [vmem:[#allocation30 + $0xc8] sm:$0xff]
    %v3704 = vld [vmem:[#allocation30 + $0xd0] sm:$0xff]
    %v3705 = vld [vmem:[#allocation30 + $0xd8] sm:$0xff]
    %v3706 = vld [vmem:[#allocation30 + $0xe0] sm:$0xff]
    %v3707 = vld [vmem:[#allocation30 + $0xe8] sm:$0xff]
    %v3708 = vld [vmem:[#allocation30 + $0xf0] sm:$0xff]
    %v3709 = vld [vmem:[#allocation30 + $0xf8] sm:$0xff]
    %v3710 = vld [vmem:[%s22] sm:$0x1]
    %v3712 = vlaneseq
    %v3713 = vshrl.u32 %v3712, 7
    %v3714 = vsub.s32 0, %v3713
    %v3715 = vrot.slane %v3710, %v3714
    %3717 = vmatprep.subr.mxu0 0.0
    %3718 = vmatpush1.msra.mxu0 %v3693
    %3719 = vmatprep.subr.mxu0 0.0
    %3720 = vmatpush1.msra.mxu0 %v3692
    %3721 = vmatprep.subr.mxu0 0.0
    %3722 = vmatpush1.msra.mxu0 %v3691
    %3723 = vmatprep.subr.mxu0 0.0
    %3724 = vmatpush1.msra.mxu0 %v3690
    %3725 = vmatprep.subr.mxu0 0.0
    %3726 = vmatpush1.msra.mxu0 %v3689
    %3727 = vmatprep.subr.mxu0 0.0
    %3728 = vmatpush1.msra.mxu0 %v3688
    %3729 = vmatprep.subr.mxu0 0.0
    %3730 = vmatpush1.msra.mxu0 %v3687
    %3731 = vmatprep.subr.mxu0 0.0
    %3732 = vmatpush1.msra.mxu0 %v3686
    %3733 = vmatprep.subr.mxu0 0.0
    %3734 = vmatpush1.msra.mxu0 %v3685
    %3735 = vmatprep.subr.mxu0 0.0
    %3736 = vmatpush1.msra.mxu0 %v3684
    %3737 = vmatprep.subr.mxu0 0.0
    %3738 = vmatpush1.msra.mxu0 %v3683
    %3739 = vmatprep.subr.mxu0 0.0
    %3740 = vmatpush1.msra.mxu0 %v3682
    %3741 = vmatprep.subr.mxu0 0.0
    %3742 = vmatpush1.msra.mxu0 %v3681
    %3743 = vmatprep.subr.mxu0 0.0
    %3744 = vmatpush1.msra.mxu0 %v3680
    %3745 = vmatprep.subr.mxu0 0.0
    %3746 = vmatpush1.msra.mxu0 %v3679
    %3747 = vmatprep.subr.mxu0 0.0
    %3748 = vmatpush1.msra.mxu0 %v3678
    %3749 = vmatprep.subr.mxu0 0.0
    %3750 = vmatpush2.msra.mxu0 %v3709
    %3751 = vmatprep.subr.mxu0 0.0
    %3752 = vmatpush2.msra.mxu0 %v3708
    %3753 = vmatprep.subr.mxu0 0.0
    %3754 = vmatpush2.msra.mxu0 %v3707
    %3755 = vmatprep.subr.mxu0 0.0
    %3756 = vmatpush2.msra.mxu0 %v3706
    %3757 = vmatprep.subr.mxu0 0.0
    %3758 = vmatpush2.msra.mxu0 %v3705
    %3759 = vmatprep.subr.mxu0 0.0
    %3760 = vmatpush2.msra.mxu0 %v3704
    %3761 = vmatprep.subr.mxu0 0.0
    %3762 = vmatpush2.msra.mxu0 %v3703
    %3763 = vmatprep.subr.mxu0 0.0
    %3764 = vmatpush2.msra.mxu0 %v3702
    %3765 = vmatprep.subr.mxu0 0.0
    %3766 = vmatpush2.msra.mxu0 %v3701
    %3767 = vmatprep.subr.mxu0 0.0
    %3768 = vmatpush2.msra.mxu0 %v3700
    %3769 = vmatprep.subr.mxu0 0.0
    %3770 = vmatpush2.msra.mxu0 %v3699
    %3771 = vmatprep.subr.mxu0 0.0
    %3772 = vmatpush2.msra.mxu0 %v3698
    %3773 = vmatprep.subr.mxu0 0.0
    %3774 = vmatpush2.msra.mxu0 %v3697
    %3775 = vmatprep.subr.mxu0 0.0
    %3776 = vmatpush2.msra.mxu0 %v3696
    %3777 = vmatprep.subr.mxu0 0.0
    %3778 = vmatpush2.msra.mxu0 %v3695
    %3779 = vmatprep.subr.mxu0 0.0
    %3780 = vmatpush2.msra.mxu0 %v3694
    %3781 = vmatprep.mubr.f32.mxu0 %v3677
    %3782 = vmatmul.mubr.f32.gmra.mxu0 %v3676
    %v3783 = vpop.f32.mrf.mxu0
    %v3784 = vadd.f32 %v3715, %v3783
    %v3785 = vpop.f32.mrf.mxu0
    %3786 = vdwg.mxu0
    %v3787 = vld [vmem:[#allocation32] sm:$0xff]
    %v3788 = vld [vmem:[#allocation32 + $0x8] sm:$0xff]
    %v3789 = vld [vmem:[#allocation32 + $0x10] sm:$0xff]
    %v3790 = vld [vmem:[#allocation32 + $0x18] sm:$0xff]
    %v3791 = vld [vmem:[#allocation32 + $0x20] sm:$0xff]
    %v3792 = vld [vmem:[#allocation32 + $0x28] sm:$0xff]
    %v3793 = vld [vmem:[#allocation32 + $0x30] sm:$0xff]
    %v3794 = vld [vmem:[#allocation32 + $0x38] sm:$0xff]
    %v3795 = vld [vmem:[#allocation32 + $0x40] sm:$0xff]
    %v3796 = vld [vmem:[#allocation32 + $0x48] sm:$0xff]
    %v3797 = vld [vmem:[#allocation32 + $0x50] sm:$0xff]
    %v3798 = vld [vmem:[#allocation32 + $0x58] sm:$0xff]
    %v3799 = vld [vmem:[#allocation32 + $0x60] sm:$0xff]
    %v3800 = vld [vmem:[#allocation32 + $0x68] sm:$0xff]
    %v3801 = vld [vmem:[#allocation32 + $0x70] sm:$0xff]
    %v3802 = vld [vmem:[#allocation32 + $0x78] sm:$0xff]
    %v3803 = vld [vmem:[%s24] sm:$0x1]
    %v3805 = vlaneseq
    %v3806 = vshrl.u32 %v3805, 7
    %v3807 = vsub.s32 0, %v3806
    %v3808 = vrot.slane %v3803, %v3807
    %3810 = vmatprep.subr.mxu0 0.0
    %3811 = vmatpush1.msra.mxu0 %v3802
    %3812 = vmatprep.subr.mxu0 0.0
    %3813 = vmatpush1.msra.mxu0 %v3801
    %3814 = vmatprep.subr.mxu0 0.0
    %3815 = vmatpush1.msra.mxu0 %v3800
    %3816 = vmatprep.subr.mxu0 0.0
    %3817 = vmatpush1.msra.mxu0 %v3799
    %3818 = vmatprep.subr.mxu0 0.0
    %3819 = vmatpush1.msra.mxu0 %v3798
    %3820 = vmatprep.subr.mxu0 0.0
    %3821 = vmatpush1.msra.mxu0 %v3797
    %3822 = vmatprep.subr.mxu0 0.0
    %3823 = vmatpush1.msra.mxu0 %v3796
    %3824 = vmatprep.subr.mxu0 0.0
    %3825 = vmatpush1.msra.mxu0 %v3795
    %3826 = vmatprep.subr.mxu0 0.0
    %3827 = vmatpush1.msra.mxu0 %v3794
    %3828 = vmatprep.subr.mxu0 0.0
    %3829 = vmatpush1.msra.mxu0 %v3793
    %3830 = vmatprep.subr.mxu0 0.0
    %3831 = vmatpush1.msra.mxu0 %v3792
    %3832 = vmatprep.subr.mxu0 0.0
    %3833 = vmatpush1.msra.mxu0 %v3791
    %3834 = vmatprep.subr.mxu0 0.0
    %3835 = vmatpush1.msra.mxu0 %v3790
    %3836 = vmatprep.subr.mxu0 0.0
    %3837 = vmatpush1.msra.mxu0 %v3789
    %3838 = vmatprep.subr.mxu0 0.0
    %3839 = vmatpush1.msra.mxu0 %v3788
    %3840 = vmatprep.subr.mxu0 0.0
    %3841 = vmatpush1.msra.mxu0 %v3787
    %3842 = vmatprep.subr.mxu0 0.0
    %3843 = vmatpush2.msra.mxu0 0.0
    %3844 = vmatprep.subr.mxu0 0.0
    %3845 = vmatpush2.msra.mxu0 0.0
    %3846 = vmatprep.subr.mxu0 0.0
    %3847 = vmatpush2.msra.mxu0 0.0
    %3848 = vmatprep.subr.mxu0 0.0
    %3849 = vmatpush2.msra.mxu0 0.0
    %3850 = vmatprep.subr.mxu0 0.0
    %3851 = vmatpush2.msra.mxu0 0.0
    %3852 = vmatprep.subr.mxu0 0.0
    %3853 = vmatpush2.msra.mxu0 0.0
    %3854 = vmatprep.subr.mxu0 0.0
    %3855 = vmatpush2.msra.mxu0 0.0
    %3856 = vmatprep.subr.mxu0 0.0
    %3857 = vmatpush2.msra.mxu0 0.0
    %3858 = vmatprep.subr.mxu0 0.0
    %3859 = vmatpush2.msra.mxu0 0.0
    %3860 = vmatprep.subr.mxu0 0.0
    %3861 = vmatpush2.msra.mxu0 0.0
    %3862 = vmatprep.subr.mxu0 0.0
    %3863 = vmatpush2.msra.mxu0 0.0
    %3864 = vmatprep.subr.mxu0 0.0
    %3865 = vmatpush2.msra.mxu0 0.0
    %3866 = vmatprep.subr.mxu0 0.0
    %3867 = vmatpush2.msra.mxu0 0.0
    %3868 = vmatprep.subr.mxu0 0.0
    %3869 = vmatpush2.msra.mxu0 0.0
    %3870 = vmatprep.subr.mxu0 0.0
    %3871 = vmatpush2.msra.mxu0 0.0
    %3872 = vmatprep.subr.mxu0 0.0
    %3873 = vmatpush2.msra.mxu0 0.0
    %3874 = vmatprep.mubr.f32.mxu0 0.0
    %3875 = vmatmul.mubr.f32.gmra.mxu0 %v3784
    %v3876 = vpop.f32.mrf.mxu0
    %v3877 = vadd.f32 %v3808, %v3876
    %v3878 = vpop.f32.mrf.mxu0
    %3879 = vdwg.mxu0
    %v3880 = vld [vmem:[%s25] sm:$0xff]
    %v3881 = vld [vmem:[%s25 + $0x8] sm:$0xff]
    %v3882 = vld [vmem:[%s25 + $0x10] sm:$0xff]
    %v3883 = vld [vmem:[%s25 + $0x18] sm:$0xff]
    %v3884 = vld [vmem:[%s25 + $0x20] sm:$0xff]
    %v3885 = vld [vmem:[%s25 + $0x28] sm:$0xff]
    %v3886 = vld [vmem:[%s25 + $0x30] sm:$0xff]
    %v3887 = vld [vmem:[%s25 + $0x38] sm:$0xff]
    %v3888 = vld [vmem:[%s25 + $0x40] sm:$0xff]
    %v3889 = vld [vmem:[%s25 + $0x48] sm:$0xff]
    %v3890 = vld [vmem:[%s25 + $0x50] sm:$0xff]
    %v3891 = vld [vmem:[%s25 + $0x58] sm:$0xff]
    %v3892 = vld [vmem:[%s25 + $0x60] sm:$0xff]
    %v3893 = vld [vmem:[%s25 + $0x68] sm:$0xff]
    %v3894 = vld [vmem:[%s25 + $0x70] sm:$0xff]
    %v3895 = vld [vmem:[%s25 + $0x78] sm:$0xff]
    %v3896 = vld [vmem:[%s26] sm:$0x1]
    %v3898 = vlaneseq
    %v3899 = vshrl.u32 %v3898, 7
    %v3900 = vsub.s32 0, %v3899
    %v3901 = vrot.slane %v3896, %v3900
    %3903 = vmatprep.subr.mxu0 0.0
    %3904 = vmatpush1.msra.mxu0 %v3895
    %3905 = vmatprep.subr.mxu0 0.0
    %3906 = vmatpush1.msra.mxu0 %v3894
    %3907 = vmatprep.subr.mxu0 0.0
    %3908 = vmatpush1.msra.mxu0 %v3893
    %3909 = vmatprep.subr.mxu0 0.0
    %3910 = vmatpush1.msra.mxu0 %v3892
    %3911 = vmatprep.subr.mxu0 0.0
    %3912 = vmatpush1.msra.mxu0 %v3891
    %3913 = vmatprep.subr.mxu0 0.0
    %3914 = vmatpush1.msra.mxu0 %v3890
    %3915 = vmatprep.subr.mxu0 0.0
    %3916 = vmatpush1.msra.mxu0 %v3889
    %3917 = vmatprep.subr.mxu0 0.0
    %3918 = vmatpush1.msra.mxu0 %v3888
    %3919 = vmatprep.subr.mxu0 0.0
    %3920 = vmatpush1.msra.mxu0 %v3887
    %3921 = vmatprep.subr.mxu0 0.0
    %3922 = vmatpush1.msra.mxu0 %v3886
    %3923 = vmatprep.subr.mxu0 0.0
    %3924 = vmatpush1.msra.mxu0 %v3885
    %3925 = vmatprep.subr.mxu0 0.0
    %3926 = vmatpush1.msra.mxu0 %v3884
    %3927 = vmatprep.subr.mxu0 0.0
    %3928 = vmatpush1.msra.mxu0 %v3883
    %3929 = vmatprep.subr.mxu0 0.0
    %3930 = vmatpush1.msra.mxu0 %v3882
    %3931 = vmatprep.subr.mxu0 0.0
    %3932 = vmatpush1.msra.mxu0 %v3881
    %3933 = vmatprep.subr.mxu0 0.0
    %3934 = vmatpush1.msra.mxu0 %v3880
    %3935 = vmatprep.subr.mxu0 0.0
    %3936 = vmatpush2.msra.mxu0 0.0
    %3937 = vmatprep.subr.mxu0 0.0
    %3938 = vmatpush2.msra.mxu0 0.0
    %3939 = vmatprep.subr.mxu0 0.0
    %3940 = vmatpush2.msra.mxu0 0.0
    %3941 = vmatprep.subr.mxu0 0.0
    %3942 = vmatpush2.msra.mxu0 0.0
    %3943 = vmatprep.subr.mxu0 0.0
    %3944 = vmatpush2.msra.mxu0 0.0
    %3945 = vmatprep.subr.mxu0 0.0
    %3946 = vmatpush2.msra.mxu0 0.0
    %3947 = vmatprep.subr.mxu0 0.0
    %3948 = vmatpush2.msra.mxu0 0.0
    %3949 = vmatprep.subr.mxu0 0.0
    %3950 = vmatpush2.msra.mxu0 0.0
    %3951 = vmatprep.subr.mxu0 0.0
    %3952 = vmatpush2.msra.mxu0 0.0
    %3953 = vmatprep.subr.mxu0 0.0
    %3954 = vmatpush2.msra.mxu0 0.0
    %3955 = vmatprep.subr.mxu0 0.0
    %3956 = vmatpush2.msra.mxu0 0.0
    %3957 = vmatprep.subr.mxu0 0.0
    %3958 = vmatpush2.msra.mxu0 0.0
    %3959 = vmatprep.subr.mxu0 0.0
    %3960 = vmatpush2.msra.mxu0 0.0
    %3961 = vmatprep.subr.mxu0 0.0
    %3962 = vmatpush2.msra.mxu0 0.0
    %3963 = vmatprep.subr.mxu0 0.0
    %3964 = vmatpush2.msra.mxu0 0.0
    %3965 = vmatprep.subr.mxu0 0.0
    %3966 = vmatpush2.msra.mxu0 0.0
    %3967 = vmatprep.mubr.f32.mxu0 0.0
    %3968 = vmatmul.mubr.f32.gmra.mxu0 %v3877
    %v3969 = vpop.f32.mrf.mxu0
    %v3970 = vadd.f32 %v3901, %v3969
    %v3971 = vpop.f32.mrf.mxu0
    %3972 = vdwg.mxu0
    %vm3973 = vcmask 9216
    %3974 = vst.msk [vmem:[#allocation33] sm:$0x3] %vm3973, %v3970
    // Predicated region
    $region186: #{tpu_custom_call.1} parent=1 // pred_check
      _
    $region187: #{tpu_custom_call.1} parent=1 // pred_check_branch
      %3976 = sbr.rel (0) target = $region189
    $region188: #{tpu_custom_call.1} parent=1 // pred_region
      %s3978 = ssub.s32 32, 32
      %3979 = vsyncadd [#allocation5], %s3978
      %s3981 = sshll.u32 [#allocation33], 4
      %s3982 = int_to_ptr.vmem [resolvable:$true] %s3981
      %3984 = dma.vmem_to_hbm [thread:$0]  %s3982, 32, %s27, [#allocation5]
    $region189: #{tpu_custom_call.1} parent=1 // pred_fallthru
      _
    // Predicated region
    $region190: #{tpu_custom_call.1} parent=1 // pred_check
      _
    $region191: #{tpu_custom_call.1} parent=1 // pred_check_branch
      %3986 = sbr.rel (0) target = $region193
    $region192: #{tpu_custom_call.1} parent=1 // pred_region
      %3987 = dma.done [#allocation5], 32
    $region193: #{tpu_custom_call.1} parent=1 // pred_fallthru
      _
    %3988 = vsyncpa [#allocation4], 1
    %3989 = vsyncpa [#allocation7], 1
    %3990 = vsyncpa [#allocation10], 1
    %3991 = vsyncpa [#allocation13], 1
    %3992 = vsyncpa [#allocation16], 1
    %3993 = vsyncpa [#allocation19], 1
    %3994 = vsyncpa [#allocation22], 1
    %3995 = vsyncpa [#allocation25], 1
    %3996 = vsyncpa [#allocation28], 1
    %3997 = vsyncpa [#allocation31], 1
    %3998 = vsyncpa [#allocation5], 1

</llo_original>
